<compile_context>
chip_gen: v7x
topology: tpu7x:2x2x1
jax: 0.10.0
libtpu: 0.0.40
codegen_flags: <defaults>
</compile_context>

<pallas_src>
import functools

import jax
import jax.numpy as jnp
from jax import lax
from jax.experimental import pallas as pl
from jax.experimental.pallas import tpu as pltpu


def _round_up(v: int, m: int) -> int:
    return ((v + m - 1) // m) * m


def _appnp_kernel(x_ref, w1_ref, b1_ref, w2_ref, b2_ref, a_ref, o_ref,
                  zbuf_ref, az0_ref, *, K: int, alpha: float,
                  tm: int, c_valid: int, a_resident: bool):
    # grid = (K + 1, n_pad // tm):
    #   k == 0    -> MLP sweep: z0 row block -> scratch (no A, no output)
    #   k == 1..K -> propagation step k, row block j (output only at k == K)
    k = pl.program_id(0)
    j = pl.program_id(1)
    rs = pl.multiple_of(j * tm, tm)                 # row offset of this block

    @pl.when(k == 0)
    def _mlp():
        # lin1 + ReLU (dropout is identity in eval mode), then lin2.
        h = jnp.dot(x_ref[...], w1_ref[...],
                    preferred_element_type=jnp.float32) + b1_ref[...]
        h = jnp.maximum(h, 0.0)                                        # f32 ReLU
        z0 = jnp.dot(h.astype(jnp.bfloat16), w2_ref[...],
                     preferred_element_type=jnp.float32) + b2_ref[...]  # (tm, Cp)
        az0_ref[pl.ds(rs, tm), :] = alpha * z0          # hoisted alpha * z0 (f32)
        zbuf_ref[0, pl.ds(rs, tm), :] = z0.astype(jnp.bfloat16)   # slot 0 = z0

    @pl.when(k > 0)
    def _prop():
        read_slot = lax.rem(k - 1, 2)
        write_slot = lax.rem(k, 2)

        z_old = zbuf_ref[read_slot]                      # (n_pad, c_pad) bf16
        if a_resident:
            # A held resident in VMEM for the whole kernel; slice our rows.
            a_rows = a_ref[pl.ds(rs, tm), :]             # (tm, n_pad) bf16
        else:
            a_rows = a_ref[...]                          # streamed (tm, n_pad)

        # A was pre-scaled by (1 - alpha) in the wrapper; add is kept in f32.
        z_new = (jnp.dot(a_rows, z_old, preferred_element_type=jnp.float32)
                 + az0_ref[pl.ds(rs, tm), :])            # (tm, c_pad) f32

        zbuf_ref[write_slot, pl.ds(rs, tm), :] = z_new.astype(jnp.bfloat16)

        @pl.when(k == K)
        def _final():
            # log_softmax over the valid class columns only (rest are padding).
            cols = lax.broadcasted_iota(jnp.int32, z_new.shape, 1)
            zm = jnp.where(cols < c_valid, z_new, -1e30)
            m = jnp.max(zm, axis=1, keepdims=True)
            zc = zm - m
            o_ref[...] = zc - jnp.log(jnp.sum(jnp.exp(zc), axis=1, keepdims=True))


def appnp_forward(x, w1_t, b1, w2_t, b2, a_hat, *, K: int, alpha: float, tm=None):
    """x:(N,Fin) f32, w1_t:(Fin,H), b1:(H,), w2_t:(H,C), b2:(C,), a_hat:(N,N)."""
    if K < 1:
        raise ValueError("K must be >= 1")
    N, fin = x.shape
    hid, C = w2_t.shape

    c_pad = _round_up(C, 128)                  # lane-dense class dim
    if tm is None:
        # Big row tile: fewer grid steps (per-step overhead) and wider LHS
        # streaming per MXU RHS push on the 256-wide MXU generations.
        tm = min(512, _round_up(N, 128))
    assert tm % 128 == 0
    n_pad = _round_up(N, tm)                   # node dim padded to row-tile
    nb = n_pad // tm

    # --- per-generation VMEM budget (v5e/v6e: 128 MiB, v7x: 64 MiB/core) ----
    try:
        vmem_cap = int(pltpu.get_tpu_info().vmem_capacity_bytes)
    except Exception:
        vmem_cap = 64 * 1024 * 1024            # conservative fallback (v7x)

    bytes_fixed = (2 * n_pad * c_pad * 2       # bf16 z ping-pong carry
                   + n_pad * c_pad * 4         # f32 alpha * z0
                   + 2 * tm * fin * 2          # x row block (double-buffered bf16)
                   + 2 * tm * c_pad * 4        # out block (double-buffered f32)
                   + 2 * (fin * hid + hid * c_pad) * 2   # bf16 weights (2-buf)
                   + 2 * (hid + c_pad) * 4)    # f32 biases (2-buf)
    bytes_a_resident = 2 * n_pad * n_pad * 2   # full A block (default 2-buf, bf16)
    bytes_a_stream = 2 * tm * n_pad * 2        # (tm, n_pad) A block (2-buf, bf16)
    a_resident = (bytes_fixed + bytes_a_resident) <= int(0.7 * vmem_cap)
    needed = bytes_fixed + (bytes_a_resident if a_resident else bytes_a_stream)
    vmem_limit = int(min(int(0.9 * vmem_cap), max(needed + (4 << 20), 32 << 20)))

    # --- wrapper-side layout prep (hoisted out of the kernel loop) ----------
    w2_p = jnp.zeros((hid, c_pad), jnp.float32).at[:, :C].set(w2_t)
    b2_p = jnp.zeros((1, c_pad), jnp.float32).at[:, :C].set(b2.reshape(1, C))
    b1_2d = b1.reshape(1, hid).astype(jnp.float32)
    x_p = jnp.zeros((n_pad, fin), jnp.bfloat16).at[:N, :].set(x.astype(jnp.bfloat16))
    a_p = jnp.zeros((n_pad, n_pad), jnp.float32).at[:N, :N].set(a_hat)

    # Hoist the (1 - alpha) scaling; bf16 matmul operands, f32 accumulation.
    a_bf = ((1.0 - alpha) * a_p).astype(jnp.bfloat16)
    w1_bf = w1_t.astype(jnp.bfloat16)
    w2_bf = w2_p.astype(jnp.bfloat16)

    # --- BlockSpecs ----------------------------------------------------------
    if a_resident:
        # Constant block index -> A is DMA'd exactly once and stays in VMEM.
        a_spec = pl.BlockSpec((n_pad, n_pad), lambda k, j: (0, 0))
    else:
        # Streamed row blocks; frozen to block 0 during the (A-free) MLP sweep.
        a_spec = pl.BlockSpec((tm, n_pad),
                              lambda k, j: (jnp.where(k == 0, 0, j), 0))

    # x is only read at k == 0; park its index afterwards (no re-fetch).
    x_spec = pl.BlockSpec((tm, fin),
                          lambda k, j: (jnp.where(k == 0, j, nb - 1), 0))
    # Output is only produced at k == K; park the index for earlier sweeps so
    # no intermediate HBM writebacks are issued.
    out_spec = pl.BlockSpec((tm, c_pad),
                            lambda k, j: (jnp.where(k == K, j, 0), 0))

    kernel = functools.partial(_appnp_kernel, K=K, alpha=float(alpha), tm=tm,
                               c_valid=C, a_resident=a_resident)

    out = pl.pallas_call(
        kernel,
        out_shape=jax.ShapeDtypeStruct((n_pad, c_pad), jnp.float32),
        grid_spec=pltpu.PrefetchScalarGridSpec(
            num_scalar_prefetch=0,
            grid=(K + 1, nb),
            in_specs=[
                x_spec,                                              # x rows
                pl.BlockSpec((fin, hid), lambda k, j: (0, 0)),       # W1^T
                pl.BlockSpec((1, hid), lambda k, j: (0, 0)),         # b1
                pl.BlockSpec((hid, c_pad), lambda k, j: (0, 0)),     # W2^T (padded)
                pl.BlockSpec((1, c_pad), lambda k, j: (0, 0)),       # b2 (padded)
                a_spec,                                              # (1-a)*A
            ],
            out_specs=out_spec,
            scratch_shapes=[
                pltpu.VMEM((2, n_pad, c_pad), jnp.bfloat16),         # z ping-pong
                pltpu.VMEM((n_pad, c_pad), jnp.float32),             # alpha * z0
            ],
        ),
        # Row axis shares the step-k carry through VMEM scratch, so both grid
        # axes must stay "arbitrary" (a "parallel" row axis on v7x would give
        # each TensorCore a private, incomplete z carry).
        compiler_params=pltpu.CompilerParams(
            dimension_semantics=("arbitrary", "arbitrary"),
            vmem_limit_bytes=vmem_limit),
    )(x_p, w1_bf, b1_2d, w2_bf, b2_p, a_bf)

    return out[:N, :C]


def build_normalized_adjacency(edge_index, num_nodes):
    """Dense symmetric GCN normalization with self loops (torch_geometric gcn_norm)."""
    src, dst = edge_index[0], edge_index[1]
    a = jnp.zeros((num_nodes, num_nodes), jnp.float32)
    a = a.at[dst, src].set(1.0)
    a = a + jnp.eye(num_nodes, dtype=jnp.float32)        # add self loops
    deg = jnp.sum(a, axis=1)
    d_inv_sqrt = jnp.where(deg > 0, 1.0 / jnp.sqrt(deg), 0.0)
    return d_inv_sqrt[:, None] * a * d_inv_sqrt[None, :]


def init_linear(key, fan_in, fan_out):
    """PyTorch nn.Linear default init: U(-1/sqrt(fan_in), 1/sqrt(fan_in))."""
    kw, kb = jax.random.split(key)
    bound = 1.0 / jnp.sqrt(fan_in)
    w = jax.random.uniform(kw, (fan_out, fan_in), jnp.float32, -bound, bound)
    b = jax.random.uniform(kb, (fan_out,), jnp.float32, -bound, bound)
    return w, b


if __name__ == "__main__":
    # Small, deterministic synthetic problem (big enough to exercise the kernel).
    N = 512            # number of graph nodes
    IN_CH = 32         # in_channels
    HID = 64           # hidden_channels
    OUT_CH = 16        # out_channels
    K = 4              # APPNP power-iteration steps
    ALPHA = 0.1        # teleport probability
    E = 2048           # number of directed edges
    # dropout = 0.5 but forward is run in eval mode -> identity.

    key = jax.random.PRNGKey(0)
    kx, ke, k1, k2 = jax.random.split(key, 4)

    x = jax.random.normal(kx, (N, IN_CH), jnp.float32)
    edge_index = jax.random.randint(ke, (2, E), 0, N, jnp.int32)

    w1, b1 = init_linear(k1, IN_CH, HID)      # lin1: (HID, IN_CH), (HID,)
    w2, b2 = init_linear(k2, HID, OUT_CH)     # lin2: (OUT_CH, HID), (OUT_CH,)

    a_hat = build_normalized_adjacency(edge_index, N)

    w1_t = jnp.transpose(w1)                  # (IN_CH, HID)
    w2_t = jnp.transpose(w2)                  # (HID, OUT_CH)

    out = appnp_forward(x, w1_t, b1, w2_t, b2, a_hat, K=K, alpha=ALPHA)
    out = jax.block_until_ready(out)

    # Pure-JAX f32 reference of the same forward pass.
    h_ref = jnp.maximum(x @ w1_t + b1, 0.0)
    z0_ref = h_ref @ w2_t + b2
    z_ref = z0_ref
    for _ in range(K):
        z_ref = (1.0 - ALPHA) * (a_hat @ z_ref) + ALPHA * z0_ref
    ref = jax.nn.log_softmax(z_ref, axis=1)

    # Sanity checks: shape, finiteness, valid log-probabilities, match reference
    # (bf16 matmul operands / bf16 carry with f32 accumulation -> loose tolerance).
    assert out.shape == (N, OUT_CH)
    assert bool(jnp.all(jnp.isfinite(out)))
    row_sums = jnp.sum(jnp.exp(out), axis=1)
    assert bool(jnp.all(jnp.abs(row_sums - 1.0) < 1e-3))
    max_err = float(jnp.max(jnp.abs(out - ref)))
    assert max_err < 0.15, f"max abs error vs f32 reference: {max_err}"

    print("KERNEL_OK")
</pallas_src>

<mosaic_0001>
module attributes {stable_mosaic.version = 11 : i64} {
  func.func @_appnp_kernel(%arg0: i32, %arg1: i32, %arg2: memref<512x32xbf16, #tpu.memory_space<vmem>>, %arg3: memref<32x64xbf16, #tpu.memory_space<vmem>>, %arg4: memref<1x64xf32, #tpu.memory_space<vmem>>, %arg5: memref<64x128xbf16, #tpu.memory_space<vmem>>, %arg6: memref<1x128xf32, #tpu.memory_space<vmem>>, %arg7: memref<512x512xbf16, #tpu.memory_space<vmem>>, %arg8: memref<512x128xf32, #tpu.memory_space<vmem>>, %arg9: memref<2x512x128xbf16, #tpu.memory_space<vmem>>, %arg10: memref<512x128xf32, #tpu.memory_space<vmem>>) attributes {dimension_semantics = [#tpu.dimension_semantics<arbitrary>, #tpu.dimension_semantics<arbitrary>], iteration_bounds = array<i64: 5, 1>, scalar_prefetch = 0 : i64, scratch_operands = 2 : i64, tpu.core_type = #tpu.core_type<tc>, window_params = [{transform_indices = @transform_0, window_bounds = array<i64: 512, 32>}, {pipeline_mode = #tpu.pipeline_mode<synchronous>, transform_indices = @transform_1, window_bounds = array<i64: 32, 64>}, {pipeline_mode = #tpu.pipeline_mode<synchronous>, transform_indices = @transform_2, window_bounds = array<i64: 1, 64>}, {pipeline_mode = #tpu.pipeline_mode<synchronous>, transform_indices = @transform_3, window_bounds = array<i64: 64, 128>}, {pipeline_mode = #tpu.pipeline_mode<synchronous>, transform_indices = @transform_4, window_bounds = array<i64: 1, 128>}, {pipeline_mode = #tpu.pipeline_mode<synchronous>, transform_indices = @transform_5, window_bounds = array<i64: 512, 512>}, {transform_indices = @transform_6, window_bounds = array<i64: 512, 128>}]} {
    %c512_i32 = arith.constant 512 : i32
    %0 = arith.muli %arg1, %c512_i32 : i32
    %1 = tpu.assume_multiple %0, 512 : i32
    %c0_i32 = arith.constant 0 : i32
    %2 = arith.cmpi eq, %arg0, %c0_i32 : i32
    %3 = arith.extui %2 : i1 to i32
    %c0_i32_0 = arith.constant 0 : i32
    %4 = arith.cmpi ne, %3, %c0_i32_0 : i32
    scf.if %4 {
      %c0 = arith.constant 0 : index
      %c0_3 = arith.constant 0 : index
      %8 = vector.load %arg2[%c0, %c0_3] : memref<512x32xbf16, #tpu.memory_space<vmem>>, vector<512x32xbf16>
      %c0_4 = arith.constant 0 : index
      %c0_5 = arith.constant 0 : index
      %9 = vector.load %arg3[%c0_4, %c0_5] : memref<32x64xbf16, #tpu.memory_space<vmem>>, vector<32x64xbf16>
      %cst = arith.constant dense<0.000000e+00> : vector<512x64xf32>
      %10 = tpu.matmul %8, %9, %cst {dimension_numbers = #tpu.dot_dimension_numbers<[1], [0], [0], [1], [0, 0, 1, 1], [], []>} : vector<512x32xbf16>, vector<32x64xbf16>, vector<512x64xf32> -> vector<512x64xf32>
      %c0_6 = arith.constant 0 : index
      %c0_7 = arith.constant 0 : index
      %11 = vector.load %arg4[%c0_6, %c0_7] : memref<1x64xf32, #tpu.memory_space<vmem>>, vector<1x64xf32>
      %12 = vector.broadcast %11 : vector<1x64xf32> to vector<512x64xf32>
      %13 = arith.addf %10, %12 : vector<512x64xf32>
      %cst_8 = arith.constant 0.000000e+00 : f32
      %14 = vector.broadcast %cst_8 : f32 to vector<512x64xf32>
      %15 = arith.maximumf %13, %14 : vector<512x64xf32>
      %16 = arith.truncf %15 : vector<512x64xf32> to vector<512x64xbf16>
      %c0_9 = arith.constant 0 : index
      %c0_10 = arith.constant 0 : index
      %17 = vector.load %arg5[%c0_9, %c0_10] : memref<64x128xbf16, #tpu.memory_space<vmem>>, vector<64x128xbf16>
      %cst_11 = arith.constant dense<0.000000e+00> : vector<512x128xf32>
      %18 = tpu.matmul %16, %17, %cst_11 {dimension_numbers = #tpu.dot_dimension_numbers<[1], [0], [0], [1], [0, 0, 1, 1], [], []>} : vector<512x64xbf16>, vector<64x128xbf16>, vector<512x128xf32> -> vector<512x128xf32>
      %c0_12 = arith.constant 0 : index
      %c0_13 = arith.constant 0 : index
      %19 = vector.load %arg6[%c0_12, %c0_13] : memref<1x128xf32, #tpu.memory_space<vmem>>, vector<1x128xf32>
      %20 = vector.broadcast %19 : vector<1x128xf32> to vector<512x128xf32>
      %21 = arith.addf %18, %20 : vector<512x128xf32>
      %cst_14 = arith.constant 1.000000e-01 : f32
      %22 = vector.broadcast %cst_14 : f32 to vector<512x128xf32>
      %23 = arith.mulf %22, %21 : vector<512x128xf32>
      %24 = arith.index_cast %1 : i32 to index
      %c0_15 = arith.constant 0 : index
      %25 = vector.load %arg10[%24, %c0_15] : memref<512x128xf32, #tpu.memory_space<vmem>>, vector<512x128xf32>
      tpu.vector_store %arg10[%24, %c0_15], %23 {strides = array<i32>} : memref<512x128xf32, #tpu.memory_space<vmem>>, vector<512x128xf32>,
      %26 = arith.truncf %21 : vector<512x128xf32> to vector<512x128xbf16>
      %c0_16 = arith.constant 0 : index
      %27 = arith.index_cast %1 : i32 to index
      %c0_17 = arith.constant 0 : index
      %28 = vector.load %arg9[%c0_16, %27, %c0_17] : memref<2x512x128xbf16, #tpu.memory_space<vmem>>, vector<1x512x128xbf16>
      %29 = vector.shape_cast %28 : vector<1x512x128xbf16> to vector<512x128xbf16>
      %30 = vector.shape_cast %26 : vector<512x128xbf16> to vector<1x512x128xbf16>
      tpu.vector_store %arg9[%c0_16, %27, %c0_17], %30 {strides = array<i32>} : memref<2x512x128xbf16, #tpu.memory_space<vmem>>, vector<1x512x128xbf16>,
    } else {
    }
    %c0_i32_1 = arith.constant 0 : i32
    %5 = arith.cmpi sgt, %arg0, %c0_i32_1 : i32
    %6 = arith.extui %5 : i1 to i32
    %c0_i32_2 = arith.constant 0 : i32
    %7 = arith.cmpi ne, %6, %c0_i32_2 : i32
    scf.if %7 {
      %c1_i32 = arith.constant 1 : i32
      %8 = arith.subi %arg0, %c1_i32 : i32
      %c2_i32 = arith.constant 2 : i32
      %9 = arith.remsi %8, %c2_i32 : i32
      %c2_i32_3 = arith.constant 2 : i32
      %10 = arith.remsi %arg0, %c2_i32_3 : i32
      %11 = arith.index_cast %9 : i32 to index
      %c0 = arith.constant 0 : index
      %c0_4 = arith.constant 0 : index
      %12 = vector.load %arg9[%11, %c0, %c0_4] : memref<2x512x128xbf16, #tpu.memory_space<vmem>>, vector<1x512x128xbf16>
      %13 = vector.shape_cast %12 : vector<1x512x128xbf16> to vector<512x128xbf16>
      %14 = arith.index_cast %1 : i32 to index
      %c0_5 = arith.constant 0 : index
      %15 = vector.load %arg7[%14, %c0_5] : memref<512x512xbf16, #tpu.memory_space<vmem>>, vector<512x512xbf16>
      %cst = arith.constant dense<0.000000e+00> : vector<512x128xf32>
      %16 = tpu.matmul %15, %13, %cst {dimension_numbers = #tpu.dot_dimension_numbers<[1], [0], [0], [1], [0, 0, 1, 1], [], []>} : vector<512x512xbf16>, vector<512x128xbf16>, vector<512x128xf32> -> vector<512x128xf32>
      %17 = arith.index_cast %1 : i32 to index
      %c0_6 = arith.constant 0 : index
      %18 = vector.load %arg10[%17, %c0_6] : memref<512x128xf32, #tpu.memory_space<vmem>>, vector<512x128xf32>
      %19 = arith.addf %16, %18 : vector<512x128xf32>
      %20 = arith.truncf %19 : vector<512x128xf32> to vector<512x128xbf16>
      %21 = arith.index_cast %10 : i32 to index
      %22 = arith.index_cast %1 : i32 to index
      %c0_7 = arith.constant 0 : index
      %23 = vector.load %arg9[%21, %22, %c0_7] : memref<2x512x128xbf16, #tpu.memory_space<vmem>>, vector<1x512x128xbf16>
      %24 = vector.shape_cast %23 : vector<1x512x128xbf16> to vector<512x128xbf16>
      %25 = vector.shape_cast %20 : vector<512x128xbf16> to vector<1x512x128xbf16>
      tpu.vector_store %arg9[%21, %22, %c0_7], %25 {strides = array<i32>} : memref<2x512x128xbf16, #tpu.memory_space<vmem>>, vector<1x512x128xbf16>,
      %c4_i32 = arith.constant 4 : i32
      %26 = arith.cmpi eq, %arg0, %c4_i32 : i32
      %27 = arith.extui %26 : i1 to i32
      %c0_i32_8 = arith.constant 0 : i32
      %28 = arith.cmpi ne, %27, %c0_i32_8 : i32
      scf.if %28 {
        %29 = tpu.iota {dimensions = array<i32: 1>} : vector<512x128xi32>
        %c16_i32 = arith.constant 16 : i32
        %30 = vector.broadcast %c16_i32 : i32 to vector<512x128xi32>
        %31 = arith.cmpi slt, %29, %30 : vector<512x128xi32>
        %cst_9 = arith.constant -1.000000e+30 : f32
        %32 = vector.broadcast %cst_9 : f32 to vector<512x128xf32>
        %33 = arith.select %31, %19, %32 : vector<512x128xi1>, vector<512x128xf32>
        %cst_10 = arith.constant dense<0xFF800000> : vector<512xf32>
        %34 = vector.multi_reduction <maximumf>, %33, %cst_10 [1] : vector<512x128xf32> to vector<512xf32>
        %35 = vector.shape_cast %34 : vector<512xf32> to vector<512x1xf32>
        %36 = vector.broadcast %35 : vector<512x1xf32> to vector<512x128xf32>
        %37 = arith.subf %33, %36 : vector<512x128xf32>
        %38 = math.exp %37 : vector<512x128xf32>
        %cst_11 = arith.constant dense<0.000000e+00> : vector<512xf32>
        %39 = vector.multi_reduction <add>, %38, %cst_11 [1] : vector<512x128xf32> to vector<512xf32>
        %40 = vector.shape_cast %39 : vector<512xf32> to vector<512x1xf32>
        %41 = math.log %40 : vector<512x1xf32>
        %42 = vector.broadcast %41 : vector<512x1xf32> to vector<512x128xf32>
        %43 = arith.subf %37, %42 : vector<512x128xf32>
        %c0_12 = arith.constant 0 : index
        %c0_13 = arith.constant 0 : index
        %44 = vector.load %arg8[%c0_12, %c0_13] : memref<512x128xf32, #tpu.memory_space<vmem>>, vector<512x128xf32>
        tpu.vector_store %arg8[%c0_12, %c0_13], %43 {strides = array<i32>} : memref<512x128xf32, #tpu.memory_space<vmem>>, vector<512x128xf32>,
      } else {
      }
    } else {
    }
    return
  }
  func.func @transform_0(%arg0: i32, %arg1: i32) -> (i32, i32) {
    %c0_i32 = arith.constant 0 : i32
    %0 = arith.cmpi eq, %arg0, %c0_i32 : i32
    %c0_i32_0 = arith.constant 0 : i32
    %1 = arith.select %0, %arg1, %c0_i32_0 : i32
    %c0_i32_1 = arith.constant 0 : i32
    %c0_i32_2 = arith.constant 0 : i32
    return %1, %c0_i32_1 : i32, i32
  }
  func.func @transform_1(%arg0: i32, %arg1: i32) -> (i32, i32) {
    %c0_i32 = arith.constant 0 : i32
    %c0_i32_0 = arith.constant 0 : i32
    %c0_i32_1 = arith.constant 0 : i32
    return %c0_i32, %c0_i32_0 : i32, i32
  }
  func.func @transform_2(%arg0: i32, %arg1: i32) -> (i32, i32) {
    %c0_i32 = arith.constant 0 : i32
    %c0_i32_0 = arith.constant 0 : i32
    %c0_i32_1 = arith.constant 0 : i32
    return %c0_i32, %c0_i32_0 : i32, i32
  }
  func.func @transform_3(%arg0: i32, %arg1: i32) -> (i32, i32) {
    %c0_i32 = arith.constant 0 : i32
    %c0_i32_0 = arith.constant 0 : i32
    %c0_i32_1 = arith.constant 0 : i32
    return %c0_i32, %c0_i32_0 : i32, i32
  }
  func.func @transform_4(%arg0: i32, %arg1: i32) -> (i32, i32) {
    %c0_i32 = arith.constant 0 : i32
    %c0_i32_0 = arith.constant 0 : i32
    %c0_i32_1 = arith.constant 0 : i32
    return %c0_i32, %c0_i32_0 : i32, i32
  }
  func.func @transform_5(%arg0: i32, %arg1: i32) -> (i32, i32) {
    %c0_i32 = arith.constant 0 : i32
    %c0_i32_0 = arith.constant 0 : i32
    %c0_i32_1 = arith.constant 0 : i32
    return %c0_i32, %c0_i32_0 : i32, i32
  }
  func.func @transform_6(%arg0: i32, %arg1: i32) -> (i32, i32) {
    %c4_i32 = arith.constant 4 : i32
    %0 = arith.cmpi eq, %arg0, %c4_i32 : i32
    %c0_i32 = arith.constant 0 : i32
    %1 = arith.select %0, %arg1, %c0_i32 : i32
    %c0_i32_0 = arith.constant 0 : i32
    %c0_i32_1 = arith.constant 0 : i32
    return %1, %c0_i32_0 : i32, i32
  }
}

</mosaic_0001>

<llo_original>
// kernel: tpu_custom_call.1
$region0: #{tpu_custom_call.1}
  #allocation0 [shape = 'u32[]', space=smem, size = 0x4, offset = 0x4, fixed_abs, tag = 'smem constant byte address 0x4 - core index']
  #allocation1 [shape = 'u32[144,128]{1,0:T(1,128)}', space=vmem, size = 0x12000, scoped, tag = 'internal scratch']
  #allocation2 [shape = 'bf16[2,512,128]{2,1,0:T(16,128)(2,1)}', space=vmem, size = 0x40000, scoped, tag = 'scratch operand']
  #allocation3 [shape = 'f32[512,128]{1,0:T(8,128)}', space=vmem, size = 0x40000, scoped, tag = 'scratch operand']
  %s0 = inlined_call_operand.vmem [shape: bf16[512,32], index: 0, kind: input, shape index: {}]
  %s1 = inlined_call_operand.vmem [shape: bf16[32,64], index: 1, kind: input, shape index: {}]
  %s2 = inlined_call_operand.vmem [shape: f32[1,64], index: 2, kind: input, shape index: {}]
  %s3 = inlined_call_operand.vmem [shape: bf16[64,128], index: 3, kind: input, shape index: {}]
  %s4 = inlined_call_operand.vmem [shape: f32[1,128], index: 4, kind: input, shape index: {}]
  %s5 = inlined_call_operand.hbm [shape: bf16[512,512], index: 5, kind: input, shape index: {}]
  %s6 = inlined_call_operand.hbm [shape: f32[512,128], index: 6, kind: output, shape index: {}]
  %s7 = sld [smem:[#allocation0]]
  $region73: #{tpu_custom_call.1} parent=0
    _
  %s9 = ssub.s32 1, %s7
  %s10 = scalar_select 0, %s9, %s7
  $region1: #{tpu_custom_call.1} parent=0
    #allocation4 [shape = 'u8[524288]{0}', space=vmem, size = 0x80000, scoped, tag = 'input window, operand 5, single buffered']
    #allocation5 [shape = 's32[2]{0}', space=sflag, size = 0x8, scoped, tag = 'scoped memory for tpu_custom_call.1']
    #allocation6 [shape = 's32[2]{0}', space=sflag, size = 0x8, scoped, tag = 'scoped memory for tpu_custom_call.1']
    #allocation7 [shape = 'u8[524288]{0}', space=vmem, size = 0x80000, scoped, tag = 'output window, operand 0']
    %11 = vsyncpa [#allocation5], 0
    %12 = vsyncpa [#allocation6], 0
    %s13 = scalar_lea.sflag [#allocation6], 1
    %14 = vsyncpa %s13, 0
    loop: start=0, step=1, limit=7
    $region2: #{tpu_custom_call.1} parent=1 // loop_pre_header
      _
    $region3: #{tpu_custom_call.1} parent=1 // loop_header
      %s16 = sphi 0, %s20
      %p17 = scmp.ge.s32.totalorder %s16, 7
      %s23 = sphi 0, %s35
      %s24 = sphi 0, %s31
      %s25 = sphi 0, %s23
      %s26 = sphi 0, %s24
      %s27 = sphi 0, %s25
      %s28 = sphi 0, %s26
      %s42 = sphi 0, %s44
      %s45 = sphi 0, %s42
      %s46 = sphi 0, %s45
      %s62 = sphi 0, %s46
      %s66 = sphi 0, %s66
      %s68 = sphi 0, %s66
      %s69 = sphi 0, %s68
      %s83 = sphi 0, %s69
      %s87 = sphi 0, %s87
      %s89 = sphi 0, %s87
      %s90 = sphi 0, %s89
      %s104 = sphi 0, %s90
      %s108 = sphi 0, %s108
      %s110 = sphi 0, %s108
      %s111 = sphi 0, %s110
      %s125 = sphi 0, %s111
      %s129 = sphi 0, %s129
      %s131 = sphi 0, %s129
      %s132 = sphi 0, %s131
      %s146 = sphi 0, %s132
      %s150 = sphi 0, %s150
      %s152 = sphi 0, %s150
      %s153 = sphi 0, %s152
      %s167 = sphi 0, %s153
      %s177 = sphi 0, %s179
      %s180 = sphi 0, %s177
      %s181 = sphi 0, %s180
      %s197 = sphi 0, %s181
    $region4: #{tpu_custom_call.1} parent=1 // loop_header_branch
      %19 = sbr.rel (%p17) target = $region8
    $region5: #{tpu_custom_call.1} parent=1 // loop_body
      %s21 = ssub.s32 %s16, 1
      %s22 = ssub.s32 %s16, 2
      %s29 = sadd.s32 1, %s24
      %p30 = scmp.ge.s32.totalorder %s29, 1
      %s31 = scalar_select %p30, 0, %s29
      %s32 = sadd.s32 1, %s23
      %s33 = scalar_select %p30, %s32, %s23
      %p34 = scmp.ge.s32.totalorder %s33, 5
      %s35 = scalar_select %p34, 0, %s33
      %p36 = scmp.eq.s32.totalorder %s23, 0
      %s37 = scalar_select %p36, %s24, 0
      %p38 = scmp.eq.s32.totalorder %s35, 0
      %s39 = scalar_select %p38, %s31, 0
      %s40 = ssub.s32 %s37, %s39
      %p41 = scmp.eq.s32.totalorder %s40, 0
      %s43 = sadd.s32 %s42, 1
      %s44 = scalar_select %p41, %s42, %s43
      %p47 = pneg %p41
      %p48 = scmp.eq.s32.totalorder %s16, 4
      %p49 = por %p47, %p48
      %p50 = scmp.ne.s32.totalorder %s42, %s45
      %p51 = scmp.eq.s32.totalorder %s16, 0
      %p52 = por %p50, %p51
      %p53 = scmp.ne.s32.totalorder %s42, %s45
      %p54 = scmp.eq.s32.totalorder %s21, 4
      %p55 = por %p53, %p54
      %p56 = scmp.ne.s32.totalorder %s45, %s46
      %p57 = scmp.eq.s32.totalorder %s21, 0
      %p58 = por %p56, %p57
      %p59 = scmp.ne.s32.totalorder %s45, %s46
      %p60 = scmp.eq.s32.totalorder %s22, 4
      %p61 = por %p59, %p60
      %p63 = scmp.ne.s32.totalorder %s46, %s62
      %p64 = scmp.eq.s32.totalorder %s22, 0
      %p65 = por %p63, %p64
      %s67 = sadd.s32 %s66, 1
      %p70 = scmp.eq.s32.totalorder %s16, 4
      %p71 = scmp.ne.s32.totalorder %s66, %s68
      %p72 = scmp.eq.s32.totalorder %s16, 0
      %p73 = por %p71, %p72
      %p74 = scmp.ne.s32.totalorder %s66, %s68
      %p75 = scmp.eq.s32.totalorder %s21, 4
      %p76 = por %p74, %p75
      %p77 = scmp.ne.s32.totalorder %s68, %s69
      %p78 = scmp.eq.s32.totalorder %s21, 0
      %p79 = por %p77, %p78
      %p80 = scmp.ne.s32.totalorder %s68, %s69
      %p81 = scmp.eq.s32.totalorder %s22, 4
      %p82 = por %p80, %p81
      %p84 = scmp.ne.s32.totalorder %s69, %s83
      %p85 = scmp.eq.s32.totalorder %s22, 0
      %p86 = por %p84, %p85
      %s88 = sadd.s32 %s87, 1
      %p91 = scmp.eq.s32.totalorder %s16, 4
      %p92 = scmp.ne.s32.totalorder %s87, %s89
      %p93 = scmp.eq.s32.totalorder %s16, 0
      %p94 = por %p92, %p93
      %p95 = scmp.ne.s32.totalorder %s87, %s89
      %p96 = scmp.eq.s32.totalorder %s21, 4
      %p97 = por %p95, %p96
      %p98 = scmp.ne.s32.totalorder %s89, %s90
      %p99 = scmp.eq.s32.totalorder %s21, 0
      %p100 = por %p98, %p99
      %p101 = scmp.ne.s32.totalorder %s89, %s90
      %p102 = scmp.eq.s32.totalorder %s22, 4
      %p103 = por %p101, %p102
      %p105 = scmp.ne.s32.totalorder %s90, %s104
      %p106 = scmp.eq.s32.totalorder %s22, 0
      %p107 = por %p105, %p106
      %s109 = sadd.s32 %s108, 1
      %p112 = scmp.eq.s32.totalorder %s16, 4
      %p113 = scmp.ne.s32.totalorder %s108, %s110
      %p114 = scmp.eq.s32.totalorder %s16, 0
      %p115 = por %p113, %p114
      %p116 = scmp.ne.s32.totalorder %s108, %s110
      %p117 = scmp.eq.s32.totalorder %s21, 4
      %p118 = por %p116, %p117
      %p119 = scmp.ne.s32.totalorder %s110, %s111
      %p120 = scmp.eq.s32.totalorder %s21, 0
      %p121 = por %p119, %p120
      %p122 = scmp.ne.s32.totalorder %s110, %s111
      %p123 = scmp.eq.s32.totalorder %s22, 4
      %p124 = por %p122, %p123
      %p126 = scmp.ne.s32.totalorder %s111, %s125
      %p127 = scmp.eq.s32.totalorder %s22, 0
      %p128 = por %p126, %p127
      %s130 = sadd.s32 %s129, 1
      %p133 = scmp.eq.s32.totalorder %s16, 4
      %p134 = scmp.ne.s32.totalorder %s129, %s131
      %p135 = scmp.eq.s32.totalorder %s16, 0
      %p136 = por %p134, %p135
      %p137 = scmp.ne.s32.totalorder %s129, %s131
      %p138 = scmp.eq.s32.totalorder %s21, 4
      %p139 = por %p137, %p138
      %p140 = scmp.ne.s32.totalorder %s131, %s132
      %p141 = scmp.eq.s32.totalorder %s21, 0
      %p142 = por %p140, %p141
      %p143 = scmp.ne.s32.totalorder %s131, %s132
      %p144 = scmp.eq.s32.totalorder %s22, 4
      %p145 = por %p143, %p144
      %p147 = scmp.ne.s32.totalorder %s132, %s146
      %p148 = scmp.eq.s32.totalorder %s22, 0
      %p149 = por %p147, %p148
      %s151 = sadd.s32 %s150, 1
      %p154 = scmp.eq.s32.totalorder %s16, 4
      %p155 = scmp.ne.s32.totalorder %s150, %s152
      %p156 = scmp.eq.s32.totalorder %s16, 0
      %p157 = por %p155, %p156
      %p158 = scmp.ne.s32.totalorder %s150, %s152
      %p159 = scmp.eq.s32.totalorder %s21, 4
      %p160 = por %p158, %p159
      %p161 = scmp.ne.s32.totalorder %s152, %s153
      %p162 = scmp.eq.s32.totalorder %s21, 0
      %p163 = por %p161, %p162
      %p164 = scmp.ne.s32.totalorder %s152, %s153
      %p165 = scmp.eq.s32.totalorder %s22, 4
      %p166 = por %p164, %p165
      %p168 = scmp.ne.s32.totalorder %s153, %s167
      %p169 = scmp.eq.s32.totalorder %s22, 0
      %p170 = por %p168, %p169
      %p171 = scmp.eq.s32.totalorder %s23, 4
      %s172 = scalar_select %p171, %s24, 0
      %p173 = scmp.eq.s32.totalorder %s35, 4
      %s174 = scalar_select %p173, %s31, 0
      %s175 = ssub.s32 %s172, %s174
      %p176 = scmp.eq.s32.totalorder %s175, 0
      %s178 = sadd.s32 %s177, 1
      %s179 = scalar_select %p176, %s177, %s178
      %p182 = pneg %p176
      %p183 = scmp.eq.s32.totalorder %s16, 4
      %p184 = por %p182, %p183
      %p185 = scmp.ne.s32.totalorder %s177, %s180
      %p186 = scmp.eq.s32.totalorder %s16, 0
      %p187 = por %p185, %p186
      %p188 = scmp.ne.s32.totalorder %s177, %s180
      %p189 = scmp.eq.s32.totalorder %s21, 4
      %p190 = por %p188, %p189
      %p191 = scmp.ne.s32.totalorder %s180, %s181
      %p192 = scmp.eq.s32.totalorder %s21, 0
      %p193 = por %p191, %p192
      %p194 = scmp.ne.s32.totalorder %s180, %s181
      %p195 = scmp.eq.s32.totalorder %s22, 4
      %p196 = por %p194, %p195
      %p198 = scmp.ne.s32.totalorder %s181, %s197
      %p199 = scmp.eq.s32.totalorder %s22, 0
      %p200 = por %p198, %p199
      %p201 = scmp.le.s32.totalorder 1, %s16
      %p202 = scmp.lt.s32.totalorder %s16, 6
      %p203 = pnand %p201, %p202
      %p204 = pneg %p203
      // Predicated region
      $region9: #{tpu_custom_call.1} parent=5 // pred_check
        _
      $region10: #{tpu_custom_call.1} parent=5 // pred_check_branch
        %206 = sbr.rel (%p203) target = $region12
      $region11: #{tpu_custom_call.1} parent=5 // pred_region
        %s207 = ssub.s32 %s16, 1
        // Predicated region
        $region13: #{tpu_custom_call.1} parent=11 // pred_check
          %p208 = pneg %p79
        $region14: #{tpu_custom_call.1} parent=11 // pred_check_branch
          %210 = sbr.rel (%p208) target = $region16
        $region15: #{tpu_custom_call.1} parent=11 // pred_region
          _
        $region16: #{tpu_custom_call.1} parent=11 // pred_fallthru
          _
        // Predicated region
        $region17: #{tpu_custom_call.1} parent=11 // pred_check
          %p211 = pneg %p100
        $region18: #{tpu_custom_call.1} parent=11 // pred_check_branch
          %213 = sbr.rel (%p211) target = $region20
        $region19: #{tpu_custom_call.1} parent=11 // pred_region
          _
        $region20: #{tpu_custom_call.1} parent=11 // pred_fallthru
          _
        // Predicated region
        $region21: #{tpu_custom_call.1} parent=11 // pred_check
          %p214 = pneg %p121
        $region22: #{tpu_custom_call.1} parent=11 // pred_check_branch
          %216 = sbr.rel (%p214) target = $region24
        $region23: #{tpu_custom_call.1} parent=11 // pred_region
          _
        $region24: #{tpu_custom_call.1} parent=11 // pred_fallthru
          _
        // Predicated region
        $region25: #{tpu_custom_call.1} parent=11 // pred_check
          %p217 = pneg %p142
        $region26: #{tpu_custom_call.1} parent=11 // pred_check_branch
          %219 = sbr.rel (%p217) target = $region28
        $region27: #{tpu_custom_call.1} parent=11 // pred_region
          _
        $region28: #{tpu_custom_call.1} parent=11 // pred_fallthru
          _
        // Predicated region
        $region29: #{tpu_custom_call.1} parent=11 // pred_check
          %p220 = pneg %p163
        $region30: #{tpu_custom_call.1} parent=11 // pred_check_branch
          %222 = sbr.rel (%p220) target = $region32
        $region31: #{tpu_custom_call.1} parent=11 // pred_region
          %s224 = ssub.s32 16384, 16384
          %225 = vsyncadd [#allocation5], %s224
          %s226 = sshll.u32 [#allocation4], 4
          %s227 = int_to_ptr.vmem [resolvable:$true] %s226
          %232 = dma.hbm_to_vmem [thread:$0]  %s5, 16384, %s227, [#allocation5], 256, 256, 16
        $region32: #{tpu_custom_call.1} parent=11 // pred_fallthru
          _
      $region12: #{tpu_custom_call.1} parent=5 // pred_fallthru
        _
      %p233 = scmp.lt.s32.totalorder %s16, 5
      // Predicated region
      $region33: #{tpu_custom_call.1} parent=5 // pred_check
        %p234 = pneg %p233
      $region34: #{tpu_custom_call.1} parent=5 // pred_check_branch
        %236 = sbr.rel (%p234) target = $region36
      $region35: #{tpu_custom_call.1} parent=5 // pred_region
        // Predicated region
        $region37: #{tpu_custom_call.1} parent=35 // pred_check
          %p237 = pneg %p52
        $region38: #{tpu_custom_call.1} parent=35 // pred_check_branch
          %239 = sbr.rel (%p237) target = $region40
        $region39: #{tpu_custom_call.1} parent=35 // pred_region
          %p240 = scmp.eq.s32.totalorder %s23, 0
          %s241 = scalar_select %p240, %s24, 0
          %s242 = smul.u32 64, %s241
          %p243 = scmp.lt.s32.totalorder %s242, 63
          %s244 = scalar_select %p243, %s242, 63
          %s245 = smul.addr %s244, 4
          %s246 = scalar_lea.vmem %s0, %s245
          %p247 = scmp.eq.s32.totalorder %s23, 0
          %s248 = scalar_select %p247, %s24, 0
          %s249 = smul.u32 64, %s248
        $region40: #{tpu_custom_call.1} parent=35 // pred_fallthru
          _
      $region36: #{tpu_custom_call.1} parent=5 // pred_fallthru
        _
      %p250 = scmp.le.s32.totalorder 1, %s16
      %p251 = scmp.lt.s32.totalorder %s16, 6
      %p252 = pnand %p250, %p251
      %p253 = pneg %p252
      // Predicated region
      $region41: #{tpu_custom_call.1} parent=5 // pred_check
        _
      $region42: #{tpu_custom_call.1} parent=5 // pred_check_branch
        %255 = sbr.rel (%p252) target = $region44
      $region43: #{tpu_custom_call.1} parent=5 // pred_region
        %s256 = ssub.s32 %s16, 1
        // Predicated region
        $region45: #{tpu_custom_call.1} parent=43 // pred_check
          %p257 = pneg %p163
        $region46: #{tpu_custom_call.1} parent=43 // pred_check_branch
          %259 = sbr.rel (%p257) target = $region48
        $region47: #{tpu_custom_call.1} parent=43 // pred_region
          %260 = dma.done [#allocation5], 16384
        $region48: #{tpu_custom_call.1} parent=43 // pred_fallthru
          _
        %p261 = scmp.eq.s32.totalorder %s25, 0
        %s262 = scalar_select %p261, %s26, 0
        %s263 = smul.u32 64, %s262
        %p264 = scmp.lt.s32.totalorder %s263, 63
        %s265 = scalar_select %p264, %s263, 63
        %s266 = smul.addr %s265, 4
        %s267 = scalar_lea.vmem %s0, %s266
        %p268 = pneg %p58
        %p269 = pneg %p55
        %p270 = pneg %p79
        %p271 = pneg %p76
        %p272 = pneg %p100
        %p273 = pneg %p97
        %p274 = pneg %p121
        %p275 = pneg %p118
        %p276 = pneg %p142
        %p277 = pneg %p139
        %p278 = pneg %p163
        %p279 = pneg %p160
        %p280 = pneg %p193
        %p281 = pneg %p190
        %s282 = sand.u32 %s180, 1
        %s283 = scalar_lea.sflag [#allocation6], %s282
        %s284 = sand.u32 %s180, 1
        %s285 = smul.addr %s284, 512
        %s286 = scalar_lea.vmem [#allocation7], %s285
        %p287 = scmp.eq.s32.totalorder %s25, 0
        %s288 = scalar_select %p287, %s26, 0
        %s289 = smul.u32 64, %s288
        %p290 = scmp.lt.s32.totalorder %s289, 63
        %s291 = scalar_select %p290, %s289, 63
        %s292 = smul.addr %s291, 4
        %s293 = scalar_lea.vmem %s0, %s292
        %p294 = scmp.eq.s32.totalorder %s25, 0
        %s295 = scalar_select %p294, %s26, 0
        %s296 = smul.u32 64, %s295
        %p297 = scmp.eq.s32.totalorder %s25, 4
        %s298 = scalar_select %p297, %s26, 0
        %s299 = smul.u32 64, %s298
        %s301 = smul.u32 %s26, 512
        %p302 = scmp.eq.s32.totalorder %s25, 0
        // Predicated region
        $region49: #{tpu_custom_call.1} parent=43 // pred_check
          %p303 = pneg %p302
        $region50: #{tpu_custom_call.1} parent=43 // pred_check_branch
          %305 = sbr.rel (%p303) target = $region52
        $region51: #{tpu_custom_call.1} parent=43 // pred_region
          %v306 = vld [vmem:[%s293] sm:$0xf]
          %v307 = vld [vmem:[%s293 + $0x4] sm:$0xf]
          %v308 = vld [vmem:[%s293 + $0x8] sm:$0xf]
          %v309 = vld [vmem:[%s293 + $0xc] sm:$0xf]
          %v310 = vld [vmem:[%s293 + $0x10] sm:$0xf]
          %v311 = vld [vmem:[%s293 + $0x14] sm:$0xf]
          %v312 = vld [vmem:[%s293 + $0x18] sm:$0xf]
          %v313 = vld [vmem:[%s293 + $0x1c] sm:$0xf]
          %v314 = vld [vmem:[%s293 + $0x20] sm:$0xf]
          %v315 = vld [vmem:[%s293 + $0x24] sm:$0xf]
          %v316 = vld [vmem:[%s293 + $0x28] sm:$0xf]
          %v317 = vld [vmem:[%s293 + $0x2c] sm:$0xf]
          %v318 = vld [vmem:[%s293 + $0x30] sm:$0xf]
          %v319 = vld [vmem:[%s293 + $0x34] sm:$0xf]
          %v320 = vld [vmem:[%s293 + $0x38] sm:$0xf]
          %v321 = vld [vmem:[%s293 + $0x3c] sm:$0xf]
          %v322 = vld [vmem:[%s293 + $0x40] sm:$0xf]
          %v323 = vld [vmem:[%s293 + $0x44] sm:$0xf]
          %v324 = vld [vmem:[%s293 + $0x48] sm:$0xf]
          %v325 = vld [vmem:[%s293 + $0x4c] sm:$0xf]
          %v326 = vld [vmem:[%s293 + $0x50] sm:$0xf]
          %v327 = vld [vmem:[%s293 + $0x54] sm:$0xf]
          %v328 = vld [vmem:[%s293 + $0x58] sm:$0xf]
          %v329 = vld [vmem:[%s293 + $0x5c] sm:$0xf]
          %v330 = vld [vmem:[%s293 + $0x60] sm:$0xf]
          %v331 = vld [vmem:[%s293 + $0x64] sm:$0xf]
          %v332 = vld [vmem:[%s293 + $0x68] sm:$0xf]
          %v333 = vld [vmem:[%s293 + $0x6c] sm:$0xf]
          %v334 = vld [vmem:[%s293 + $0x70] sm:$0xf]
          %v335 = vld [vmem:[%s293 + $0x74] sm:$0xf]
          %v336 = vld [vmem:[%s293 + $0x78] sm:$0xf]
          %v337 = vld [vmem:[%s293 + $0x7c] sm:$0xf]
          %v338 = vld [vmem:[%s293 + $0x80] sm:$0xf]
          %v339 = vld [vmem:[%s293 + $0x84] sm:$0xf]
          %v340 = vld [vmem:[%s293 + $0x88] sm:$0xf]
          %v341 = vld [vmem:[%s293 + $0x8c] sm:$0xf]
          %v342 = vld [vmem:[%s293 + $0x90] sm:$0xf]
          %v343 = vld [vmem:[%s293 + $0x94] sm:$0xf]
          %v344 = vld [vmem:[%s293 + $0x98] sm:$0xf]
          %v345 = vld [vmem:[%s293 + $0x9c] sm:$0xf]
          %v346 = vld [vmem:[%s293 + $0xa0] sm:$0xf]
          %v347 = vld [vmem:[%s293 + $0xa4] sm:$0xf]
          %v348 = vld [vmem:[%s293 + $0xa8] sm:$0xf]
          %v349 = vld [vmem:[%s293 + $0xac] sm:$0xf]
          %v350 = vld [vmem:[%s293 + $0xb0] sm:$0xf]
          %v351 = vld [vmem:[%s293 + $0xb4] sm:$0xf]
          %v352 = vld [vmem:[%s293 + $0xb8] sm:$0xf]
          %v353 = vld [vmem:[%s293 + $0xbc] sm:$0xf]
          %v354 = vld [vmem:[%s293 + $0xc0] sm:$0xf]
          %v355 = vld [vmem:[%s293 + $0xc4] sm:$0xf]
          %v356 = vld [vmem:[%s293 + $0xc8] sm:$0xf]
          %v357 = vld [vmem:[%s293 + $0xcc] sm:$0xf]
          %v358 = vld [vmem:[%s293 + $0xd0] sm:$0xf]
          %v359 = vld [vmem:[%s293 + $0xd4] sm:$0xf]
          %v360 = vld [vmem:[%s293 + $0xd8] sm:$0xf]
          %v361 = vld [vmem:[%s293 + $0xdc] sm:$0xf]
          %v362 = vld [vmem:[%s293 + $0xe0] sm:$0xf]
          %v363 = vld [vmem:[%s293 + $0xe4] sm:$0xf]
          %v364 = vld [vmem:[%s293 + $0xe8] sm:$0xf]
          %v365 = vld [vmem:[%s293 + $0xec] sm:$0xf]
          %v366 = vld [vmem:[%s293 + $0xf0] sm:$0xf]
          %v367 = vld [vmem:[%s293 + $0xf4] sm:$0xf]
          %v368 = vld [vmem:[%s293 + $0xf8] sm:$0xf]
          %v369 = vld [vmem:[%s293 + $0xfc] sm:$0xf]
          %v370 = vld [vmem:[%s1] sm:$0xf]
          %v371 = vld [vmem:[%s1 + $0x4] sm:$0xf]
          %v372 = vld [vmem:[%s1 + $0x8] sm:$0xf]
          %v373 = vld [vmem:[%s1 + $0xc] sm:$0xf]
          %v374 = vld [vmem:[%s2] sm:$0x1]
          %v376 = vlaneseq
          %v377 = vshrl.u32 %v376, 7
          %v378 = vsub.s32 0, %v377
          %v379 = vrot.slane %v374, %v378
          %v445 = vunpack.c.l.b16 %v306
          %v446 = vunpack.c.l.b16 %v307
          %v447 = vunpack.c.l.b16 %v308
          %v448 = vunpack.c.l.b16 %v309
          %v449 = vunpack.c.l.b16 %v310
          %v450 = vunpack.c.l.b16 %v311
          %v451 = vunpack.c.l.b16 %v312
          %v452 = vunpack.c.l.b16 %v313
          %v453 = vunpack.c.l.b16 %v314
          %v454 = vunpack.c.l.b16 %v315
          %v455 = vunpack.c.l.b16 %v316
          %v456 = vunpack.c.l.b16 %v317
          %v457 = vunpack.c.l.b16 %v318
          %v458 = vunpack.c.l.b16 %v319
          %v459 = vunpack.c.l.b16 %v320
          %v460 = vunpack.c.l.b16 %v321
          %v461 = vunpack.c.l.b16 %v322
          %v462 = vunpack.c.l.b16 %v323
          %v463 = vunpack.c.l.b16 %v324
          %v464 = vunpack.c.l.b16 %v325
          %v465 = vunpack.c.l.b16 %v326
          %v466 = vunpack.c.l.b16 %v327
          %v467 = vunpack.c.l.b16 %v328
          %v468 = vunpack.c.l.b16 %v329
          %v469 = vunpack.c.l.b16 %v330
          %v470 = vunpack.c.l.b16 %v331
          %v471 = vunpack.c.l.b16 %v332
          %v472 = vunpack.c.l.b16 %v333
          %v473 = vunpack.c.l.b16 %v334
          %v474 = vunpack.c.l.b16 %v335
          %v475 = vunpack.c.l.b16 %v336
          %v476 = vunpack.c.l.b16 %v337
          %v477 = vunpack.c.l.b16 %v338
          %v478 = vunpack.c.l.b16 %v339
          %v479 = vunpack.c.l.b16 %v340
          %v480 = vunpack.c.l.b16 %v341
          %v481 = vunpack.c.l.b16 %v342
          %v482 = vunpack.c.l.b16 %v343
          %v483 = vunpack.c.l.b16 %v344
          %v484 = vunpack.c.l.b16 %v345
          %v485 = vunpack.c.l.b16 %v346
          %v486 = vunpack.c.l.b16 %v347
          %v487 = vunpack.c.l.b16 %v348
          %v488 = vunpack.c.l.b16 %v349
          %v489 = vunpack.c.l.b16 %v350
          %v490 = vunpack.c.l.b16 %v351
          %v491 = vunpack.c.l.b16 %v352
          %v492 = vunpack.c.l.b16 %v353
          %v493 = vunpack.c.l.b16 %v354
          %v494 = vunpack.c.l.b16 %v355
          %v495 = vunpack.c.l.b16 %v356
          %v496 = vunpack.c.l.b16 %v357
          %v497 = vunpack.c.l.b16 %v358
          %v498 = vunpack.c.l.b16 %v359
          %v499 = vunpack.c.l.b16 %v360
          %v500 = vunpack.c.l.b16 %v361
          %v501 = vunpack.c.l.b16 %v362
          %v502 = vunpack.c.l.b16 %v363
          %v503 = vunpack.c.l.b16 %v364
          %v504 = vunpack.c.l.b16 %v365
          %v505 = vunpack.c.l.b16 %v366
          %v506 = vunpack.c.l.b16 %v367
          %v507 = vunpack.c.l.b16 %v368
          %v508 = vunpack.c.l.b16 %v369
          %v509 = vpack.c.b16 %v446, %v445
          %v510 = vpack.c.b16 %v448, %v447
          %v511 = vpack.c.b16 %v450, %v449
          %v512 = vpack.c.b16 %v452, %v451
          %v513 = vpack.c.b16 %v454, %v453
          %v514 = vpack.c.b16 %v456, %v455
          %v515 = vpack.c.b16 %v458, %v457
          %v516 = vpack.c.b16 %v460, %v459
          %v517 = vpack.c.b16 %v462, %v461
          %v518 = vpack.c.b16 %v464, %v463
          %v519 = vpack.c.b16 %v466, %v465
          %v520 = vpack.c.b16 %v468, %v467
          %v521 = vpack.c.b16 %v470, %v469
          %v522 = vpack.c.b16 %v472, %v471
          %v523 = vpack.c.b16 %v474, %v473
          %v524 = vpack.c.b16 %v476, %v475
          %v525 = vpack.c.b16 %v478, %v477
          %v526 = vpack.c.b16 %v480, %v479
          %v527 = vpack.c.b16 %v482, %v481
          %v528 = vpack.c.b16 %v484, %v483
          %v529 = vpack.c.b16 %v486, %v485
          %v530 = vpack.c.b16 %v488, %v487
          %v531 = vpack.c.b16 %v490, %v489
          %v532 = vpack.c.b16 %v492, %v491
          %v533 = vpack.c.b16 %v494, %v493
          %v534 = vpack.c.b16 %v496, %v495
          %v535 = vpack.c.b16 %v498, %v497
          %v536 = vpack.c.b16 %v500, %v499
          %v537 = vpack.c.b16 %v502, %v501
          %v538 = vpack.c.b16 %v504, %v503
          %v539 = vpack.c.b16 %v506, %v505
          %v540 = vpack.c.b16 %v508, %v507
          %v545 = vunpack.c.l.b16 %v370
          %v546 = vunpack.c.l.b16 %v371
          %v547 = vunpack.c.l.b16 %v372
          %v548 = vunpack.c.l.b16 %v373
          %v549 = vpack.c.b16 %v546, %v545
          %v550 = vpack.c.b16 %v548, %v547
          %vm553 = vcmask 261120
          %v555 = vsel %vm553, %v509, 0
          %v558 = vsel %vm553, %v510, 0
          %v561 = vsel %vm553, %v511, 0
          %v564 = vsel %vm553, %v512, 0
          %v567 = vsel %vm553, %v513, 0
          %v570 = vsel %vm553, %v514, 0
          %v573 = vsel %vm553, %v515, 0
          %v576 = vsel %vm553, %v516, 0
          %v579 = vsel %vm553, %v517, 0
          %v582 = vsel %vm553, %v518, 0
          %v585 = vsel %vm553, %v519, 0
          %v588 = vsel %vm553, %v520, 0
          %v591 = vsel %vm553, %v521, 0
          %v594 = vsel %vm553, %v522, 0
          %v597 = vsel %vm553, %v523, 0
          %v600 = vsel %vm553, %v524, 0
          %v603 = vsel %vm553, %v525, 0
          %v606 = vsel %vm553, %v526, 0
          %v609 = vsel %vm553, %v527, 0
          %v612 = vsel %vm553, %v528, 0
          %v615 = vsel %vm553, %v529, 0
          %v618 = vsel %vm553, %v530, 0
          %v621 = vsel %vm553, %v531, 0
          %v624 = vsel %vm553, %v532, 0
          %v627 = vsel %vm553, %v533, 0
          %v630 = vsel %vm553, %v534, 0
          %v633 = vsel %vm553, %v535, 0
          %v636 = vsel %vm553, %v536, 0
          %v639 = vsel %vm553, %v537, 0
          %v642 = vsel %vm553, %v538, 0
          %v645 = vsel %vm553, %v539, 0
          %v648 = vsel %vm553, %v540, 0
          %650 = vmatprep.subr.bf16.mxu0 0
          %651 = vmatpush1.bf16.msra.mxu0 %v549
          %652 = vmatprep.subr.bf16.mxu0 0
          %653 = vmatpush1.bf16.msra.mxu0 %v550
          %654 = vmatprep.subr.bf16.mxu0 0
          %655 = vmatpush1.bf16.msra.mxu0 0
          %656 = vmatprep.subr.bf16.mxu0 0
          %657 = vmatpush1.bf16.msra.mxu0 0
          %658 = vmatprep.subr.bf16.mxu0 0
          %659 = vmatpush1.bf16.msra.mxu0 0
          %660 = vmatprep.subr.bf16.mxu0 0
          %661 = vmatpush1.bf16.msra.mxu0 0
          %662 = vmatprep.subr.bf16.mxu0 0
          %663 = vmatpush1.bf16.msra.mxu0 0
          %664 = vmatprep.subr.bf16.mxu0 0
          %665 = vmatpush1.bf16.msra.mxu0 0
          %666 = vmatprep.subr.bf16.mxu0 0
          %667 = vmatpush1.bf16.msra.mxu0 0
          %668 = vmatprep.subr.bf16.mxu0 0
          %669 = vmatpush1.bf16.msra.mxu0 0
          %670 = vmatprep.subr.bf16.mxu0 0
          %671 = vmatpush1.bf16.msra.mxu0 0
          %672 = vmatprep.subr.bf16.mxu0 0
          %673 = vmatpush1.bf16.msra.mxu0 0
          %674 = vmatprep.subr.bf16.mxu0 0
          %675 = vmatpush1.bf16.msra.mxu0 0
          %676 = vmatprep.subr.bf16.mxu0 0
          %677 = vmatpush1.bf16.msra.mxu0 0
          %678 = vmatprep.subr.bf16.mxu0 0
          %679 = vmatpush1.bf16.msra.mxu0 0
          %680 = vmatprep.subr.bf16.mxu0 0
          %681 = vmatpush1.bf16.msra.mxu0 0
          %682 = vmatprep.mubr.bf16.mxu0 0
          %683 = vmatmul.mubr.bf16.gmra.mrb[0].mxu0 %v555
          %v684 = vpop.f32.mrb[0].mxu0
          %v685 = vadd.f32 %v379, %v684
          %v686 = vpop.f32.mrb[0].mxu0
          %v687 = vpop.f32.mrb[0].mxu0
          %v688 = vadd.f32 %v379, %v687
          %v689 = vpop.f32.mrb[0].mxu0
          %690 = vmatprep.mubr.bf16.mxu0 0
          %691 = vmatmul.mubr.bf16.gmra.mrb[0].mxu0 %v558
          %v692 = vpop.f32.mrb[0].mxu0
          %v693 = vadd.f32 %v379, %v692
          %v694 = vpop.f32.mrb[0].mxu0
          %v695 = vpop.f32.mrb[0].mxu0
          %v696 = vadd.f32 %v379, %v695
          %v697 = vpop.f32.mrb[0].mxu0
          %698 = vmatprep.mubr.bf16.mxu0 0
          %699 = vmatmul.mubr.bf16.gmra.mrb[0].mxu0 %v561
          %v700 = vpop.f32.mrb[0].mxu0
          %v701 = vadd.f32 %v379, %v700
          %v702 = vpop.f32.mrb[0].mxu0
          %v703 = vpop.f32.mrb[0].mxu0
          %v704 = vadd.f32 %v379, %v703
          %v705 = vpop.f32.mrb[0].mxu0
          %706 = vmatprep.mubr.bf16.mxu0 0
          %707 = vmatmul.mubr.bf16.gmra.mrb[0].mxu0 %v564
          %v708 = vpop.f32.mrb[0].mxu0
          %v709 = vadd.f32 %v379, %v708
          %v710 = vpop.f32.mrb[0].mxu0
          %v711 = vpop.f32.mrb[0].mxu0
          %v712 = vadd.f32 %v379, %v711
          %v713 = vpop.f32.mrb[0].mxu0
          %714 = vmatprep.mubr.bf16.mxu0 0
          %715 = vmatmul.mubr.bf16.gmra.mrb[0].mxu0 %v567
          %v716 = vpop.f32.mrb[0].mxu0
          %v717 = vadd.f32 %v379, %v716
          %v718 = vpop.f32.mrb[0].mxu0
          %v719 = vpop.f32.mrb[0].mxu0
          %v720 = vadd.f32 %v379, %v719
          %v721 = vpop.f32.mrb[0].mxu0
          %722 = vmatprep.mubr.bf16.mxu0 0
          %723 = vmatmul.mubr.bf16.gmra.mrb[0].mxu0 %v570
          %v724 = vpop.f32.mrb[0].mxu0
          %v725 = vadd.f32 %v379, %v724
          %v726 = vpop.f32.mrb[0].mxu0
          %v727 = vpop.f32.mrb[0].mxu0
          %v728 = vadd.f32 %v379, %v727
          %v729 = vpop.f32.mrb[0].mxu0
          %730 = vmatprep.mubr.bf16.mxu0 0
          %731 = vmatmul.mubr.bf16.gmra.mrb[0].mxu0 %v573
          %v732 = vpop.f32.mrb[0].mxu0
          %v733 = vadd.f32 %v379, %v732
          %v734 = vpop.f32.mrb[0].mxu0
          %v735 = vpop.f32.mrb[0].mxu0
          %v736 = vadd.f32 %v379, %v735
          %v737 = vpop.f32.mrb[0].mxu0
          %738 = vmatprep.mubr.bf16.mxu0 0
          %739 = vmatmul.mubr.bf16.gmra.mrb[0].mxu0 %v576
          %v740 = vpop.f32.mrb[0].mxu0
          %v741 = vadd.f32 %v379, %v740
          %v742 = vpop.f32.mrb[0].mxu0
          %v743 = vpop.f32.mrb[0].mxu0
          %v744 = vadd.f32 %v379, %v743
          %v745 = vpop.f32.mrb[0].mxu0
          %746 = vmatprep.mubr.bf16.mxu0 0
          %747 = vmatmul.mubr.bf16.gmra.mrb[0].mxu0 %v579
          %v748 = vpop.f32.mrb[0].mxu0
          %v749 = vadd.f32 %v379, %v748
          %v750 = vpop.f32.mrb[0].mxu0
          %v751 = vpop.f32.mrb[0].mxu0
          %v752 = vadd.f32 %v379, %v751
          %v753 = vpop.f32.mrb[0].mxu0
          %754 = vmatprep.mubr.bf16.mxu0 0
          %755 = vmatmul.mubr.bf16.gmra.mrb[0].mxu0 %v582
          %v756 = vpop.f32.mrb[0].mxu0
          %v757 = vadd.f32 %v379, %v756
          %v758 = vpop.f32.mrb[0].mxu0
          %v759 = vpop.f32.mrb[0].mxu0
          %v760 = vadd.f32 %v379, %v759
          %v761 = vpop.f32.mrb[0].mxu0
          %762 = vmatprep.mubr.bf16.mxu0 0
          %763 = vmatmul.mubr.bf16.gmra.mrb[0].mxu0 %v585
          %v764 = vpop.f32.mrb[0].mxu0
          %v765 = vadd.f32 %v379, %v764
          %v766 = vpop.f32.mrb[0].mxu0
          %v767 = vpop.f32.mrb[0].mxu0
          %v768 = vadd.f32 %v379, %v767
          %v769 = vpop.f32.mrb[0].mxu0
          %770 = vmatprep.mubr.bf16.mxu0 0
          %771 = vmatmul.mubr.bf16.gmra.mrb[0].mxu0 %v588
          %v772 = vpop.f32.mrb[0].mxu0
          %v773 = vadd.f32 %v379, %v772
          %v774 = vpop.f32.mrb[0].mxu0
          %v775 = vpop.f32.mrb[0].mxu0
          %v776 = vadd.f32 %v379, %v775
          %v777 = vpop.f32.mrb[0].mxu0
          %778 = vmatprep.mubr.bf16.mxu0 0
          %779 = vmatmul.mubr.bf16.gmra.mrb[0].mxu0 %v591
          %v780 = vpop.f32.mrb[0].mxu0
          %v781 = vadd.f32 %v379, %v780
          %v782 = vpop.f32.mrb[0].mxu0
          %v783 = vpop.f32.mrb[0].mxu0
          %v784 = vadd.f32 %v379, %v783
          %v785 = vpop.f32.mrb[0].mxu0
          %786 = vmatprep.mubr.bf16.mxu0 0
          %787 = vmatmul.mubr.bf16.gmra.mrb[0].mxu0 %v594
          %v788 = vpop.f32.mrb[0].mxu0
          %v789 = vadd.f32 %v379, %v788
          %v790 = vpop.f32.mrb[0].mxu0
          %v791 = vpop.f32.mrb[0].mxu0
          %v792 = vadd.f32 %v379, %v791
          %v793 = vpop.f32.mrb[0].mxu0
          %794 = vmatprep.mubr.bf16.mxu0 0
          %795 = vmatmul.mubr.bf16.gmra.mrb[0].mxu0 %v597
          %v796 = vpop.f32.mrb[0].mxu0
          %v797 = vadd.f32 %v379, %v796
          %v798 = vpop.f32.mrb[0].mxu0
          %v799 = vpop.f32.mrb[0].mxu0
          %v800 = vadd.f32 %v379, %v799
          %v801 = vpop.f32.mrb[0].mxu0
          %802 = vmatprep.mubr.bf16.mxu0 0
          %803 = vmatmul.mubr.bf16.gmra.mrb[0].mxu0 %v600
          %v804 = vpop.f32.mrb[0].mxu0
          %v805 = vadd.f32 %v379, %v804
          %v806 = vpop.f32.mrb[0].mxu0
          %v807 = vpop.f32.mrb[0].mxu0
          %v808 = vadd.f32 %v379, %v807
          %v809 = vpop.f32.mrb[0].mxu0
          %810 = vmatprep.mubr.bf16.mxu0 0
          %811 = vmatmul.mubr.bf16.gmra.mrb[0].mxu0 %v603
          %v812 = vpop.f32.mrb[0].mxu0
          %v813 = vadd.f32 %v379, %v812
          %v814 = vpop.f32.mrb[0].mxu0
          %v815 = vpop.f32.mrb[0].mxu0
          %v816 = vadd.f32 %v379, %v815
          %v817 = vpop.f32.mrb[0].mxu0
          %818 = vmatprep.mubr.bf16.mxu0 0
          %819 = vmatmul.mubr.bf16.gmra.mrb[0].mxu0 %v606
          %v820 = vpop.f32.mrb[0].mxu0
          %v821 = vadd.f32 %v379, %v820
          %v822 = vpop.f32.mrb[0].mxu0
          %v823 = vpop.f32.mrb[0].mxu0
          %v824 = vadd.f32 %v379, %v823
          %v825 = vpop.f32.mrb[0].mxu0
          %826 = vmatprep.mubr.bf16.mxu0 0
          %827 = vmatmul.mubr.bf16.gmra.mrb[0].mxu0 %v609
          %v828 = vpop.f32.mrb[0].mxu0
          %v829 = vadd.f32 %v379, %v828
          %v830 = vpop.f32.mrb[0].mxu0
          %v831 = vpop.f32.mrb[0].mxu0
          %v832 = vadd.f32 %v379, %v831
          %v833 = vpop.f32.mrb[0].mxu0
          %834 = vmatprep.mubr.bf16.mxu0 0
          %835 = vmatmul.mubr.bf16.gmra.mrb[0].mxu0 %v612
          %v836 = vpop.f32.mrb[0].mxu0
          %v837 = vadd.f32 %v379, %v836
          %v838 = vpop.f32.mrb[0].mxu0
          %v839 = vpop.f32.mrb[0].mxu0
          %v840 = vadd.f32 %v379, %v839
          %v841 = vpop.f32.mrb[0].mxu0
          %842 = vmatprep.mubr.bf16.mxu0 0
          %843 = vmatmul.mubr.bf16.gmra.mrb[0].mxu0 %v615
          %v844 = vpop.f32.mrb[0].mxu0
          %v845 = vadd.f32 %v379, %v844
          %v846 = vpop.f32.mrb[0].mxu0
          %v847 = vpop.f32.mrb[0].mxu0
          %v848 = vadd.f32 %v379, %v847
          %v849 = vpop.f32.mrb[0].mxu0
          %850 = vmatprep.mubr.bf16.mxu0 0
          %851 = vmatmul.mubr.bf16.gmra.mrb[0].mxu0 %v618
          %v852 = vpop.f32.mrb[0].mxu0
          %v853 = vadd.f32 %v379, %v852
          %v854 = vpop.f32.mrb[0].mxu0
          %v855 = vpop.f32.mrb[0].mxu0
          %v856 = vadd.f32 %v379, %v855
          %v857 = vpop.f32.mrb[0].mxu0
          %858 = vmatprep.mubr.bf16.mxu0 0
          %859 = vmatmul.mubr.bf16.gmra.mrb[0].mxu0 %v621
          %v860 = vpop.f32.mrb[0].mxu0
          %v861 = vadd.f32 %v379, %v860
          %v862 = vpop.f32.mrb[0].mxu0
          %v863 = vpop.f32.mrb[0].mxu0
          %v864 = vadd.f32 %v379, %v863
          %v865 = vpop.f32.mrb[0].mxu0
          %866 = vmatprep.mubr.bf16.mxu0 0
          %867 = vmatmul.mubr.bf16.gmra.mrb[0].mxu0 %v624
          %v868 = vpop.f32.mrb[0].mxu0
          %v869 = vadd.f32 %v379, %v868
          %v870 = vpop.f32.mrb[0].mxu0
          %v871 = vpop.f32.mrb[0].mxu0
          %v872 = vadd.f32 %v379, %v871
          %v873 = vpop.f32.mrb[0].mxu0
          %874 = vmatprep.mubr.bf16.mxu0 0
          %875 = vmatmul.mubr.bf16.gmra.mrb[0].mxu0 %v627
          %v876 = vpop.f32.mrb[0].mxu0
          %v877 = vadd.f32 %v379, %v876
          %v878 = vpop.f32.mrb[0].mxu0
          %v879 = vpop.f32.mrb[0].mxu0
          %v880 = vadd.f32 %v379, %v879
          %v881 = vpop.f32.mrb[0].mxu0
          %882 = vmatprep.mubr.bf16.mxu0 0
          %883 = vmatmul.mubr.bf16.gmra.mrb[0].mxu0 %v630
          %v884 = vpop.f32.mrb[0].mxu0
          %v885 = vadd.f32 %v379, %v884
          %v886 = vpop.f32.mrb[0].mxu0
          %v887 = vpop.f32.mrb[0].mxu0
          %v888 = vadd.f32 %v379, %v887
          %v889 = vpop.f32.mrb[0].mxu0
          %890 = vmatprep.mubr.bf16.mxu0 0
          %891 = vmatmul.mubr.bf16.gmra.mrb[0].mxu0 %v633
          %v892 = vpop.f32.mrb[0].mxu0
          %v893 = vadd.f32 %v379, %v892
          %v894 = vpop.f32.mrb[0].mxu0
          %v895 = vpop.f32.mrb[0].mxu0
          %v896 = vadd.f32 %v379, %v895
          %v897 = vpop.f32.mrb[0].mxu0
          %898 = vmatprep.mubr.bf16.mxu0 0
          %899 = vmatmul.mubr.bf16.gmra.mrb[0].mxu0 %v636
          %v900 = vpop.f32.mrb[0].mxu0
          %v901 = vadd.f32 %v379, %v900
          %v902 = vpop.f32.mrb[0].mxu0
          %v903 = vpop.f32.mrb[0].mxu0
          %v904 = vadd.f32 %v379, %v903
          %v905 = vpop.f32.mrb[0].mxu0
          %906 = vmatprep.mubr.bf16.mxu0 0
          %907 = vmatmul.mubr.bf16.gmra.mrb[0].mxu0 %v639
          %v908 = vpop.f32.mrb[0].mxu0
          %v909 = vadd.f32 %v379, %v908
          %v910 = vpop.f32.mrb[0].mxu0
          %v911 = vpop.f32.mrb[0].mxu0
          %v912 = vadd.f32 %v379, %v911
          %v913 = vpop.f32.mrb[0].mxu0
          %914 = vmatprep.mubr.bf16.mxu0 0
          %915 = vmatmul.mubr.bf16.gmra.mrb[0].mxu0 %v642
          %v916 = vpop.f32.mrb[0].mxu0
          %v917 = vadd.f32 %v379, %v916
          %v918 = vpop.f32.mrb[0].mxu0
          %v919 = vpop.f32.mrb[0].mxu0
          %v920 = vadd.f32 %v379, %v919
          %v921 = vpop.f32.mrb[0].mxu0
          %922 = vmatprep.mubr.bf16.mxu0 0
          %923 = vmatmul.mubr.bf16.gmra.mrb[0].mxu0 %v645
          %v924 = vpop.f32.mrb[0].mxu0
          %v925 = vadd.f32 %v379, %v924
          %v926 = vpop.f32.mrb[0].mxu0
          %v927 = vpop.f32.mrb[0].mxu0
          %v928 = vadd.f32 %v379, %v927
          %v929 = vpop.f32.mrb[0].mxu0
          %930 = vmatprep.mubr.bf16.mxu0 0
          %931 = vmatmul.mubr.bf16.gmra.mrb[0].mxu0 %v648
          %v932 = vpop.f32.mrb[0].mxu0
          %v933 = vadd.f32 %v379, %v932
          %v934 = vpop.f32.mrb[0].mxu0
          %v935 = vpop.f32.mrb[0].mxu0
          %v936 = vadd.f32 %v379, %v935
          %v937 = vpop.f32.mrb[0].mxu0
          %938 = vdwg.mxu0
          %v939 = vmax.f32 %v685, 0.0
          %v940 = vmax.f32 %v688, 0.0
          %v941 = vmax.f32 %v693, 0.0
          %v942 = vmax.f32 %v696, 0.0
          %v943 = vmax.f32 %v701, 0.0
          %v944 = vmax.f32 %v704, 0.0
          %v945 = vmax.f32 %v709, 0.0
          %v946 = vmax.f32 %v712, 0.0
          %v947 = vmax.f32 %v717, 0.0
          %v948 = vmax.f32 %v720, 0.0
          %v949 = vmax.f32 %v725, 0.0
          %v950 = vmax.f32 %v728, 0.0
          %v951 = vmax.f32 %v733, 0.0
          %v952 = vmax.f32 %v736, 0.0
          %v953 = vmax.f32 %v741, 0.0
          %v954 = vmax.f32 %v744, 0.0
          %v955 = vmax.f32 %v749, 0.0
          %v956 = vmax.f32 %v752, 0.0
          %v957 = vmax.f32 %v757, 0.0
          %v958 = vmax.f32 %v760, 0.0
          %v959 = vmax.f32 %v765, 0.0
          %v960 = vmax.f32 %v768, 0.0
          %v961 = vmax.f32 %v773, 0.0
          %v962 = vmax.f32 %v776, 0.0
          %v963 = vmax.f32 %v781, 0.0
          %v964 = vmax.f32 %v784, 0.0
          %v965 = vmax.f32 %v789, 0.0
          %v966 = vmax.f32 %v792, 0.0
          %v967 = vmax.f32 %v797, 0.0
          %v968 = vmax.f32 %v800, 0.0
          %v969 = vmax.f32 %v805, 0.0
          %v970 = vmax.f32 %v808, 0.0
          %v971 = vmax.f32 %v813, 0.0
          %v972 = vmax.f32 %v816, 0.0
          %v973 = vmax.f32 %v821, 0.0
          %v974 = vmax.f32 %v824, 0.0
          %v975 = vmax.f32 %v829, 0.0
          %v976 = vmax.f32 %v832, 0.0
          %v977 = vmax.f32 %v837, 0.0
          %v978 = vmax.f32 %v840, 0.0
          %v979 = vmax.f32 %v845, 0.0
          %v980 = vmax.f32 %v848, 0.0
          %v981 = vmax.f32 %v853, 0.0
          %v982 = vmax.f32 %v856, 0.0
          %v983 = vmax.f32 %v861, 0.0
          %v984 = vmax.f32 %v864, 0.0
          %v985 = vmax.f32 %v869, 0.0
          %v986 = vmax.f32 %v872, 0.0
          %v987 = vmax.f32 %v877, 0.0
          %v988 = vmax.f32 %v880, 0.0
          %v989 = vmax.f32 %v885, 0.0
          %v990 = vmax.f32 %v888, 0.0
          %v991 = vmax.f32 %v893, 0.0
          %v992 = vmax.f32 %v896, 0.0
          %v993 = vmax.f32 %v901, 0.0
          %v994 = vmax.f32 %v904, 0.0
          %v995 = vmax.f32 %v909, 0.0
          %v996 = vmax.f32 %v912, 0.0
          %v997 = vmax.f32 %v917, 0.0
          %v998 = vmax.f32 %v920, 0.0
          %v999 = vmax.f32 %v925, 0.0
          %v1000 = vmax.f32 %v928, 0.0
          %v1001 = vmax.f32 %v933, 0.0
          %v1002 = vmax.f32 %v936, 0.0
          %v1003 = vpack.c.bf16 %v940, %v939
          %v1004 = vpack.c.bf16 %v942, %v941
          %v1005 = vpack.c.bf16 %v944, %v943
          %v1006 = vpack.c.bf16 %v946, %v945
          %v1007 = vpack.c.bf16 %v948, %v947
          %v1008 = vpack.c.bf16 %v950, %v949
          %v1009 = vpack.c.bf16 %v952, %v951
          %v1010 = vpack.c.bf16 %v954, %v953
          %v1011 = vpack.c.bf16 %v956, %v955
          %v1012 = vpack.c.bf16 %v958, %v957
          %v1013 = vpack.c.bf16 %v960, %v959
          %v1014 = vpack.c.bf16 %v962, %v961
          %v1015 = vpack.c.bf16 %v964, %v963
          %v1016 = vpack.c.bf16 %v966, %v965
          %v1017 = vpack.c.bf16 %v968, %v967
          %v1018 = vpack.c.bf16 %v970, %v969
          %v1019 = vpack.c.bf16 %v972, %v971
          %v1020 = vpack.c.bf16 %v974, %v973
          %v1021 = vpack.c.bf16 %v976, %v975
          %v1022 = vpack.c.bf16 %v978, %v977
          %v1023 = vpack.c.bf16 %v980, %v979
          %v1024 = vpack.c.bf16 %v982, %v981
          %v1025 = vpack.c.bf16 %v984, %v983
          %v1026 = vpack.c.bf16 %v986, %v985
          %v1027 = vpack.c.bf16 %v988, %v987
          %v1028 = vpack.c.bf16 %v990, %v989
          %v1029 = vpack.c.bf16 %v992, %v991
          %v1030 = vpack.c.bf16 %v994, %v993
          %v1031 = vpack.c.bf16 %v996, %v995
          %v1032 = vpack.c.bf16 %v998, %v997
          %v1033 = vpack.c.bf16 %v1000, %v999
          %v1034 = vpack.c.bf16 %v1002, %v1001
          %v1035 = vld [vmem:[%s3] sm:$0xf]
          %v1036 = vld [vmem:[%s3 + $0x4] sm:$0xf]
          %v1037 = vld [vmem:[%s3 + $0x8] sm:$0xf]
          %v1038 = vld [vmem:[%s3 + $0xc] sm:$0xf]
          %v1039 = vld [vmem:[%s3 + $0x10] sm:$0xf]
          %v1040 = vld [vmem:[%s3 + $0x14] sm:$0xf]
          %v1041 = vld [vmem:[%s3 + $0x18] sm:$0xf]
          %v1042 = vld [vmem:[%s3 + $0x1c] sm:$0xf]
          %v1043 = vld [vmem:[%s4] sm:$0x1]
          %v1045 = vlaneseq
          %v1046 = vshrl.u32 %v1045, 7
          %v1047 = vsub.s32 0, %v1046
          %v1048 = vrot.slane %v1043, %v1047
          %v1058 = vunpack.c.l.b16 %v1035
          %v1059 = vunpack.c.l.b16 %v1036
          %v1060 = vunpack.c.l.b16 %v1037
          %v1061 = vunpack.c.l.b16 %v1038
          %v1062 = vunpack.c.l.b16 %v1039
          %v1063 = vunpack.c.l.b16 %v1040
          %v1064 = vunpack.c.l.b16 %v1041
          %v1065 = vunpack.c.l.b16 %v1042
          %v1066 = vpack.c.b16 %v1059, %v1058
          %v1067 = vpack.c.b16 %v1061, %v1060
          %v1068 = vpack.c.b16 %v1063, %v1062
          %v1069 = vpack.c.b16 %v1065, %v1064
          %vm1074 = vcmask 523264
          %v1076 = vsel %vm1074, %v1003, 0
          %v1079 = vsel %vm1074, %v1004, 0
          %v1082 = vsel %vm1074, %v1005, 0
          %v1085 = vsel %vm1074, %v1006, 0
          %v1088 = vsel %vm1074, %v1007, 0
          %v1091 = vsel %vm1074, %v1008, 0
          %v1094 = vsel %vm1074, %v1009, 0
          %v1097 = vsel %vm1074, %v1010, 0
          %v1100 = vsel %vm1074, %v1011, 0
          %v1103 = vsel %vm1074, %v1012, 0
          %v1106 = vsel %vm1074, %v1013, 0
          %v1109 = vsel %vm1074, %v1014, 0
          %v1112 = vsel %vm1074, %v1015, 0
          %v1115 = vsel %vm1074, %v1016, 0
          %v1118 = vsel %vm1074, %v1017, 0
          %v1121 = vsel %vm1074, %v1018, 0
          %v1124 = vsel %vm1074, %v1019, 0
          %v1127 = vsel %vm1074, %v1020, 0
          %v1130 = vsel %vm1074, %v1021, 0
          %v1133 = vsel %vm1074, %v1022, 0
          %v1136 = vsel %vm1074, %v1023, 0
          %v1139 = vsel %vm1074, %v1024, 0
          %v1142 = vsel %vm1074, %v1025, 0
          %v1145 = vsel %vm1074, %v1026, 0
          %v1148 = vsel %vm1074, %v1027, 0
          %v1151 = vsel %vm1074, %v1028, 0
          %v1154 = vsel %vm1074, %v1029, 0
          %v1157 = vsel %vm1074, %v1030, 0
          %v1160 = vsel %vm1074, %v1031, 0
          %v1163 = vsel %vm1074, %v1032, 0
          %v1166 = vsel %vm1074, %v1033, 0
          %v1169 = vsel %vm1074, %v1034, 0
          %1171 = vmatprep.subr.bf16.mxu0 0
          %1172 = vmatpush1.bf16.msra.mxu0 %v1066
          %1173 = vmatprep.subr.bf16.mxu0 0
          %1174 = vmatpush1.bf16.msra.mxu0 %v1067
          %1175 = vmatprep.subr.bf16.mxu0 0
          %1176 = vmatpush1.bf16.msra.mxu0 %v1068
          %1177 = vmatprep.subr.bf16.mxu0 0
          %1178 = vmatpush1.bf16.msra.mxu0 %v1069
          %1179 = vmatprep.subr.bf16.mxu0 0
          %1180 = vmatpush1.bf16.msra.mxu0 0
          %1181 = vmatprep.subr.bf16.mxu0 0
          %1182 = vmatpush1.bf16.msra.mxu0 0
          %1183 = vmatprep.subr.bf16.mxu0 0
          %1184 = vmatpush1.bf16.msra.mxu0 0
          %1185 = vmatprep.subr.bf16.mxu0 0
          %1186 = vmatpush1.bf16.msra.mxu0 0
          %1187 = vmatprep.subr.bf16.mxu0 0
          %1188 = vmatpush1.bf16.msra.mxu0 0
          %1189 = vmatprep.subr.bf16.mxu0 0
          %1190 = vmatpush1.bf16.msra.mxu0 0
          %1191 = vmatprep.subr.bf16.mxu0 0
          %1192 = vmatpush1.bf16.msra.mxu0 0
          %1193 = vmatprep.subr.bf16.mxu0 0
          %1194 = vmatpush1.bf16.msra.mxu0 0
          %1195 = vmatprep.subr.bf16.mxu0 0
          %1196 = vmatpush1.bf16.msra.mxu0 0
          %1197 = vmatprep.subr.bf16.mxu0 0
          %1198 = vmatpush1.bf16.msra.mxu0 0
          %1199 = vmatprep.subr.bf16.mxu0 0
          %1200 = vmatpush1.bf16.msra.mxu0 0
          %1201 = vmatprep.subr.bf16.mxu0 0
          %1202 = vmatpush1.bf16.msra.mxu0 0
          %1203 = vmatprep.mubr.bf16.mxu0 0
          %1204 = vmatmul.mubr.bf16.gmra.mrb[0].mxu0 %v1076
          %v1205 = vpop.f32.mrb[0].mxu0
          %v1206 = vadd.f32 %v1048, %v1205
          %v1207 = vpop.f32.mrb[0].mxu0
          %v1208 = vpop.f32.mrb[0].mxu0
          %v1209 = vadd.f32 %v1048, %v1208
          %v1210 = vpop.f32.mrb[0].mxu0
          %1211 = vmatprep.mubr.bf16.mxu0 0
          %1212 = vmatmul.mubr.bf16.gmra.mrb[0].mxu0 %v1079
          %v1213 = vpop.f32.mrb[0].mxu0
          %v1214 = vadd.f32 %v1048, %v1213
          %v1215 = vpop.f32.mrb[0].mxu0
          %v1216 = vpop.f32.mrb[0].mxu0
          %v1217 = vadd.f32 %v1048, %v1216
          %v1218 = vpop.f32.mrb[0].mxu0
          %1219 = vmatprep.mubr.bf16.mxu0 0
          %1220 = vmatmul.mubr.bf16.gmra.mrb[0].mxu0 %v1082
          %v1221 = vpop.f32.mrb[0].mxu0
          %v1222 = vadd.f32 %v1048, %v1221
          %v1223 = vpop.f32.mrb[0].mxu0
          %v1224 = vpop.f32.mrb[0].mxu0
          %v1225 = vadd.f32 %v1048, %v1224
          %v1226 = vpop.f32.mrb[0].mxu0
          %1227 = vmatprep.mubr.bf16.mxu0 0
          %1228 = vmatmul.mubr.bf16.gmra.mrb[0].mxu0 %v1085
          %v1229 = vpop.f32.mrb[0].mxu0
          %v1230 = vadd.f32 %v1048, %v1229
          %v1231 = vpop.f32.mrb[0].mxu0
          %v1232 = vpop.f32.mrb[0].mxu0
          %v1233 = vadd.f32 %v1048, %v1232
          %v1234 = vpop.f32.mrb[0].mxu0
          %1235 = vmatprep.mubr.bf16.mxu0 0
          %1236 = vmatmul.mubr.bf16.gmra.mrb[0].mxu0 %v1088
          %v1237 = vpop.f32.mrb[0].mxu0
          %v1238 = vadd.f32 %v1048, %v1237
          %v1239 = vpop.f32.mrb[0].mxu0
          %v1240 = vpop.f32.mrb[0].mxu0
          %v1241 = vadd.f32 %v1048, %v1240
          %v1242 = vpop.f32.mrb[0].mxu0
          %1243 = vmatprep.mubr.bf16.mxu0 0
          %1244 = vmatmul.mubr.bf16.gmra.mrb[0].mxu0 %v1091
          %v1245 = vpop.f32.mrb[0].mxu0
          %v1246 = vadd.f32 %v1048, %v1245
          %v1247 = vpop.f32.mrb[0].mxu0
          %v1248 = vpop.f32.mrb[0].mxu0
          %v1249 = vadd.f32 %v1048, %v1248
          %v1250 = vpop.f32.mrb[0].mxu0
          %1251 = vmatprep.mubr.bf16.mxu0 0
          %1252 = vmatmul.mubr.bf16.gmra.mrb[0].mxu0 %v1094
          %v1253 = vpop.f32.mrb[0].mxu0
          %v1254 = vadd.f32 %v1048, %v1253
          %v1255 = vpop.f32.mrb[0].mxu0
          %v1256 = vpop.f32.mrb[0].mxu0
          %v1257 = vadd.f32 %v1048, %v1256
          %v1258 = vpop.f32.mrb[0].mxu0
          %1259 = vmatprep.mubr.bf16.mxu0 0
          %1260 = vmatmul.mubr.bf16.gmra.mrb[0].mxu0 %v1097
          %v1261 = vpop.f32.mrb[0].mxu0
          %v1262 = vadd.f32 %v1048, %v1261
          %v1263 = vpop.f32.mrb[0].mxu0
          %v1264 = vpop.f32.mrb[0].mxu0
          %v1265 = vadd.f32 %v1048, %v1264
          %v1266 = vpop.f32.mrb[0].mxu0
          %1267 = vmatprep.mubr.bf16.mxu0 0
          %1268 = vmatmul.mubr.bf16.gmra.mrb[0].mxu0 %v1100
          %v1269 = vpop.f32.mrb[0].mxu0
          %v1270 = vadd.f32 %v1048, %v1269
          %v1271 = vpop.f32.mrb[0].mxu0
          %v1272 = vpop.f32.mrb[0].mxu0
          %v1273 = vadd.f32 %v1048, %v1272
          %v1274 = vpop.f32.mrb[0].mxu0
          %1275 = vmatprep.mubr.bf16.mxu0 0
          %1276 = vmatmul.mubr.bf16.gmra.mrb[0].mxu0 %v1103
          %v1277 = vpop.f32.mrb[0].mxu0
          %v1278 = vadd.f32 %v1048, %v1277
          %v1279 = vpop.f32.mrb[0].mxu0
          %v1280 = vpop.f32.mrb[0].mxu0
          %v1281 = vadd.f32 %v1048, %v1280
          %v1282 = vpop.f32.mrb[0].mxu0
          %1283 = vmatprep.mubr.bf16.mxu0 0
          %1284 = vmatmul.mubr.bf16.gmra.mrb[0].mxu0 %v1106
          %v1285 = vpop.f32.mrb[0].mxu0
          %v1286 = vadd.f32 %v1048, %v1285
          %v1287 = vpop.f32.mrb[0].mxu0
          %v1288 = vpop.f32.mrb[0].mxu0
          %v1289 = vadd.f32 %v1048, %v1288
          %v1290 = vpop.f32.mrb[0].mxu0
          %1291 = vmatprep.mubr.bf16.mxu0 0
          %1292 = vmatmul.mubr.bf16.gmra.mrb[0].mxu0 %v1109
          %v1293 = vpop.f32.mrb[0].mxu0
          %v1294 = vadd.f32 %v1048, %v1293
          %v1295 = vpop.f32.mrb[0].mxu0
          %v1296 = vpop.f32.mrb[0].mxu0
          %v1297 = vadd.f32 %v1048, %v1296
          %v1298 = vpop.f32.mrb[0].mxu0
          %1299 = vmatprep.mubr.bf16.mxu0 0
          %1300 = vmatmul.mubr.bf16.gmra.mrb[0].mxu0 %v1112
          %v1301 = vpop.f32.mrb[0].mxu0
          %v1302 = vadd.f32 %v1048, %v1301
          %v1303 = vpop.f32.mrb[0].mxu0
          %v1304 = vpop.f32.mrb[0].mxu0
          %v1305 = vadd.f32 %v1048, %v1304
          %v1306 = vpop.f32.mrb[0].mxu0
          %1307 = vmatprep.mubr.bf16.mxu0 0
          %1308 = vmatmul.mubr.bf16.gmra.mrb[0].mxu0 %v1115
          %v1309 = vpop.f32.mrb[0].mxu0
          %v1310 = vadd.f32 %v1048, %v1309
          %v1311 = vpop.f32.mrb[0].mxu0
          %v1312 = vpop.f32.mrb[0].mxu0
          %v1313 = vadd.f32 %v1048, %v1312
          %v1314 = vpop.f32.mrb[0].mxu0
          %1315 = vmatprep.mubr.bf16.mxu0 0
          %1316 = vmatmul.mubr.bf16.gmra.mrb[0].mxu0 %v1118
          %v1317 = vpop.f32.mrb[0].mxu0
          %v1318 = vadd.f32 %v1048, %v1317
          %v1319 = vpop.f32.mrb[0].mxu0
          %v1320 = vpop.f32.mrb[0].mxu0
          %v1321 = vadd.f32 %v1048, %v1320
          %v1322 = vpop.f32.mrb[0].mxu0
          %1323 = vmatprep.mubr.bf16.mxu0 0
          %1324 = vmatmul.mubr.bf16.gmra.mrb[0].mxu0 %v1121
          %v1325 = vpop.f32.mrb[0].mxu0
          %v1326 = vadd.f32 %v1048, %v1325
          %v1327 = vpop.f32.mrb[0].mxu0
          %v1328 = vpop.f32.mrb[0].mxu0
          %v1329 = vadd.f32 %v1048, %v1328
          %v1330 = vpop.f32.mrb[0].mxu0
          %1331 = vmatprep.mubr.bf16.mxu0 0
          %1332 = vmatmul.mubr.bf16.gmra.mrb[0].mxu0 %v1124
          %v1333 = vpop.f32.mrb[0].mxu0
          %v1334 = vadd.f32 %v1048, %v1333
          %v1335 = vpop.f32.mrb[0].mxu0
          %v1336 = vpop.f32.mrb[0].mxu0
          %v1337 = vadd.f32 %v1048, %v1336
          %v1338 = vpop.f32.mrb[0].mxu0
          %1339 = vmatprep.mubr.bf16.mxu0 0
          %1340 = vmatmul.mubr.bf16.gmra.mrb[0].mxu0 %v1127
          %v1341 = vpop.f32.mrb[0].mxu0
          %v1342 = vadd.f32 %v1048, %v1341
          %v1343 = vpop.f32.mrb[0].mxu0
          %v1344 = vpop.f32.mrb[0].mxu0
          %v1345 = vadd.f32 %v1048, %v1344
          %v1346 = vpop.f32.mrb[0].mxu0
          %1347 = vmatprep.mubr.bf16.mxu0 0
          %1348 = vmatmul.mubr.bf16.gmra.mrb[0].mxu0 %v1130
          %v1349 = vpop.f32.mrb[0].mxu0
          %v1350 = vadd.f32 %v1048, %v1349
          %v1351 = vpop.f32.mrb[0].mxu0
          %v1352 = vpop.f32.mrb[0].mxu0
          %v1353 = vadd.f32 %v1048, %v1352
          %v1354 = vpop.f32.mrb[0].mxu0
          %1355 = vmatprep.mubr.bf16.mxu0 0
          %1356 = vmatmul.mubr.bf16.gmra.mrb[0].mxu0 %v1133
          %v1357 = vpop.f32.mrb[0].mxu0
          %v1358 = vadd.f32 %v1048, %v1357
          %v1359 = vpop.f32.mrb[0].mxu0
          %v1360 = vpop.f32.mrb[0].mxu0
          %v1361 = vadd.f32 %v1048, %v1360
          %v1362 = vpop.f32.mrb[0].mxu0
          %1363 = vmatprep.mubr.bf16.mxu0 0
          %1364 = vmatmul.mubr.bf16.gmra.mrb[0].mxu0 %v1136
          %v1365 = vpop.f32.mrb[0].mxu0
          %v1366 = vadd.f32 %v1048, %v1365
          %v1367 = vpop.f32.mrb[0].mxu0
          %v1368 = vpop.f32.mrb[0].mxu0
          %v1369 = vadd.f32 %v1048, %v1368
          %v1370 = vpop.f32.mrb[0].mxu0
          %1371 = vmatprep.mubr.bf16.mxu0 0
          %1372 = vmatmul.mubr.bf16.gmra.mrb[0].mxu0 %v1139
          %v1373 = vpop.f32.mrb[0].mxu0
          %v1374 = vadd.f32 %v1048, %v1373
          %v1375 = vpop.f32.mrb[0].mxu0
          %v1376 = vpop.f32.mrb[0].mxu0
          %v1377 = vadd.f32 %v1048, %v1376
          %v1378 = vpop.f32.mrb[0].mxu0
          %1379 = vmatprep.mubr.bf16.mxu0 0
          %1380 = vmatmul.mubr.bf16.gmra.mrb[0].mxu0 %v1142
          %v1381 = vpop.f32.mrb[0].mxu0
          %v1382 = vadd.f32 %v1048, %v1381
          %v1383 = vpop.f32.mrb[0].mxu0
          %v1384 = vpop.f32.mrb[0].mxu0
          %v1385 = vadd.f32 %v1048, %v1384
          %v1386 = vpop.f32.mrb[0].mxu0
          %1387 = vmatprep.mubr.bf16.mxu0 0
          %1388 = vmatmul.mubr.bf16.gmra.mrb[0].mxu0 %v1145
          %v1389 = vpop.f32.mrb[0].mxu0
          %v1390 = vadd.f32 %v1048, %v1389
          %v1391 = vpop.f32.mrb[0].mxu0
          %v1392 = vpop.f32.mrb[0].mxu0
          %v1393 = vadd.f32 %v1048, %v1392
          %v1394 = vpop.f32.mrb[0].mxu0
          %1395 = vmatprep.mubr.bf16.mxu0 0
          %1396 = vmatmul.mubr.bf16.gmra.mrb[0].mxu0 %v1148
          %v1397 = vpop.f32.mrb[0].mxu0
          %v1398 = vadd.f32 %v1048, %v1397
          %v1399 = vpop.f32.mrb[0].mxu0
          %v1400 = vpop.f32.mrb[0].mxu0
          %v1401 = vadd.f32 %v1048, %v1400
          %v1402 = vpop.f32.mrb[0].mxu0
          %1403 = vmatprep.mubr.bf16.mxu0 0
          %1404 = vmatmul.mubr.bf16.gmra.mrb[0].mxu0 %v1151
          %v1405 = vpop.f32.mrb[0].mxu0
          %v1406 = vadd.f32 %v1048, %v1405
          %v1407 = vpop.f32.mrb[0].mxu0
          %v1408 = vpop.f32.mrb[0].mxu0
          %v1409 = vadd.f32 %v1048, %v1408
          %v1410 = vpop.f32.mrb[0].mxu0
          %1411 = vmatprep.mubr.bf16.mxu0 0
          %1412 = vmatmul.mubr.bf16.gmra.mrb[0].mxu0 %v1154
          %v1413 = vpop.f32.mrb[0].mxu0
          %v1414 = vadd.f32 %v1048, %v1413
          %v1415 = vpop.f32.mrb[0].mxu0
          %v1416 = vpop.f32.mrb[0].mxu0
          %v1417 = vadd.f32 %v1048, %v1416
          %v1418 = vpop.f32.mrb[0].mxu0
          %1419 = vmatprep.mubr.bf16.mxu0 0
          %1420 = vmatmul.mubr.bf16.gmra.mrb[0].mxu0 %v1157
          %v1421 = vpop.f32.mrb[0].mxu0
          %v1422 = vadd.f32 %v1048, %v1421
          %v1423 = vpop.f32.mrb[0].mxu0
          %v1424 = vpop.f32.mrb[0].mxu0
          %v1425 = vadd.f32 %v1048, %v1424
          %v1426 = vpop.f32.mrb[0].mxu0
          %1427 = vmatprep.mubr.bf16.mxu0 0
          %1428 = vmatmul.mubr.bf16.gmra.mrb[0].mxu0 %v1160
          %v1429 = vpop.f32.mrb[0].mxu0
          %v1430 = vadd.f32 %v1048, %v1429
          %v1431 = vpop.f32.mrb[0].mxu0
          %v1432 = vpop.f32.mrb[0].mxu0
          %v1433 = vadd.f32 %v1048, %v1432
          %v1434 = vpop.f32.mrb[0].mxu0
          %1435 = vmatprep.mubr.bf16.mxu0 0
          %1436 = vmatmul.mubr.bf16.gmra.mrb[0].mxu0 %v1163
          %v1437 = vpop.f32.mrb[0].mxu0
          %v1438 = vadd.f32 %v1048, %v1437
          %v1439 = vpop.f32.mrb[0].mxu0
          %v1440 = vpop.f32.mrb[0].mxu0
          %v1441 = vadd.f32 %v1048, %v1440
          %v1442 = vpop.f32.mrb[0].mxu0
          %1443 = vmatprep.mubr.bf16.mxu0 0
          %1444 = vmatmul.mubr.bf16.gmra.mrb[0].mxu0 %v1166
          %v1445 = vpop.f32.mrb[0].mxu0
          %v1446 = vadd.f32 %v1048, %v1445
          %v1447 = vpop.f32.mrb[0].mxu0
          %v1448 = vpop.f32.mrb[0].mxu0
          %v1449 = vadd.f32 %v1048, %v1448
          %v1450 = vpop.f32.mrb[0].mxu0
          %1451 = vmatprep.mubr.bf16.mxu0 0
          %1452 = vmatmul.mubr.bf16.gmra.mrb[0].mxu0 %v1169
          %v1453 = vpop.f32.mrb[0].mxu0
          %v1454 = vadd.f32 %v1048, %v1453
          %v1455 = vpop.f32.mrb[0].mxu0
          %v1456 = vpop.f32.mrb[0].mxu0
          %v1457 = vadd.f32 %v1048, %v1456
          %v1458 = vpop.f32.mrb[0].mxu0
          %1459 = vdwg.mxu0
          %v1460 = vmul.f32 %v1206, 0.1
          %v1461 = vmul.f32 %v1209, 0.1
          %v1462 = vmul.f32 %v1214, 0.1
          %v1463 = vmul.f32 %v1217, 0.1
          %v1464 = vmul.f32 %v1222, 0.1
          %v1465 = vmul.f32 %v1225, 0.1
          %v1466 = vmul.f32 %v1230, 0.1
          %v1467 = vmul.f32 %v1233, 0.1
          %v1468 = vmul.f32 %v1238, 0.1
          %v1469 = vmul.f32 %v1241, 0.1
          %v1470 = vmul.f32 %v1246, 0.1
          %v1471 = vmul.f32 %v1249, 0.1
          %v1472 = vmul.f32 %v1254, 0.1
          %v1473 = vmul.f32 %v1257, 0.1
          %v1474 = vmul.f32 %v1262, 0.1
          %v1475 = vmul.f32 %v1265, 0.1
          %v1476 = vmul.f32 %v1270, 0.1
          %v1477 = vmul.f32 %v1273, 0.1
          %v1478 = vmul.f32 %v1278, 0.1
          %v1479 = vmul.f32 %v1281, 0.1
          %v1480 = vmul.f32 %v1286, 0.1
          %v1481 = vmul.f32 %v1289, 0.1
          %v1482 = vmul.f32 %v1294, 0.1
          %v1483 = vmul.f32 %v1297, 0.1
          %v1484 = vmul.f32 %v1302, 0.1
          %v1485 = vmul.f32 %v1305, 0.1
          %v1486 = vmul.f32 %v1310, 0.1
          %v1487 = vmul.f32 %v1313, 0.1
          %v1488 = vmul.f32 %v1318, 0.1
          %v1489 = vmul.f32 %v1321, 0.1
          %v1490 = vmul.f32 %v1326, 0.1
          %v1491 = vmul.f32 %v1329, 0.1
          %v1492 = vmul.f32 %v1334, 0.1
          %v1493 = vmul.f32 %v1337, 0.1
          %v1494 = vmul.f32 %v1342, 0.1
          %v1495 = vmul.f32 %v1345, 0.1
          %v1496 = vmul.f32 %v1350, 0.1
          %v1497 = vmul.f32 %v1353, 0.1
          %v1498 = vmul.f32 %v1358, 0.1
          %v1499 = vmul.f32 %v1361, 0.1
          %v1500 = vmul.f32 %v1366, 0.1
          %v1501 = vmul.f32 %v1369, 0.1
          %v1502 = vmul.f32 %v1374, 0.1
          %v1503 = vmul.f32 %v1377, 0.1
          %v1504 = vmul.f32 %v1382, 0.1
          %v1505 = vmul.f32 %v1385, 0.1
          %v1506 = vmul.f32 %v1390, 0.1
          %v1507 = vmul.f32 %v1393, 0.1
          %v1508 = vmul.f32 %v1398, 0.1
          %v1509 = vmul.f32 %v1401, 0.1
          %v1510 = vmul.f32 %v1406, 0.1
          %v1511 = vmul.f32 %v1409, 0.1
          %v1512 = vmul.f32 %v1414, 0.1
          %v1513 = vmul.f32 %v1417, 0.1
          %v1514 = vmul.f32 %v1422, 0.1
          %v1515 = vmul.f32 %v1425, 0.1
          %v1516 = vmul.f32 %v1430, 0.1
          %v1517 = vmul.f32 %v1433, 0.1
          %v1518 = vmul.f32 %v1438, 0.1
          %v1519 = vmul.f32 %v1441, 0.1
          %v1520 = vmul.f32 %v1446, 0.1
          %v1521 = vmul.f32 %v1449, 0.1
          %v1522 = vmul.f32 %v1454, 0.1
          %v1523 = vmul.f32 %v1457, 0.1
          %s1524 = scalar_lea.vmem [#allocation3], %s301
          %1525 = vst [vmem:[%s1524] sm:$0xff] %v1460
          %1526 = vst [vmem:[%s1524 + $0x8] sm:$0xff] %v1461
          %1527 = vst [vmem:[%s1524 + $0x10] sm:$0xff] %v1462
          %1528 = vst [vmem:[%s1524 + $0x18] sm:$0xff] %v1463
          %1529 = vst [vmem:[%s1524 + $0x20] sm:$0xff] %v1464
          %1530 = vst [vmem:[%s1524 + $0x28] sm:$0xff] %v1465
          %1531 = vst [vmem:[%s1524 + $0x30] sm:$0xff] %v1466
          %1532 = vst [vmem:[%s1524 + $0x38] sm:$0xff] %v1467
          %1533 = vst [vmem:[%s1524 + $0x40] sm:$0xff] %v1468
          %1534 = vst [vmem:[%s1524 + $0x48] sm:$0xff] %v1469
          %1535 = vst [vmem:[%s1524 + $0x50] sm:$0xff] %v1470
          %1536 = vst [vmem:[%s1524 + $0x58] sm:$0xff] %v1471
          %1537 = vst [vmem:[%s1524 + $0x60] sm:$0xff] %v1472
          %1538 = vst [vmem:[%s1524 + $0x68] sm:$0xff] %v1473
          %1539 = vst [vmem:[%s1524 + $0x70] sm:$0xff] %v1474
          %1540 = vst [vmem:[%s1524 + $0x78] sm:$0xff] %v1475
          %1541 = vst [vmem:[%s1524 + $0x80] sm:$0xff] %v1476
          %1542 = vst [vmem:[%s1524 + $0x88] sm:$0xff] %v1477
          %1543 = vst [vmem:[%s1524 + $0x90] sm:$0xff] %v1478
          %1544 = vst [vmem:[%s1524 + $0x98] sm:$0xff] %v1479
          %1545 = vst [vmem:[%s1524 + $0xa0] sm:$0xff] %v1480
          %1546 = vst [vmem:[%s1524 + $0xa8] sm:$0xff] %v1481
          %1547 = vst [vmem:[%s1524 + $0xb0] sm:$0xff] %v1482
          %1548 = vst [vmem:[%s1524 + $0xb8] sm:$0xff] %v1483
          %1549 = vst [vmem:[%s1524 + $0xc0] sm:$0xff] %v1484
          %1550 = vst [vmem:[%s1524 + $0xc8] sm:$0xff] %v1485
          %1551 = vst [vmem:[%s1524 + $0xd0] sm:$0xff] %v1486
          %1552 = vst [vmem:[%s1524 + $0xd8] sm:$0xff] %v1487
          %1553 = vst [vmem:[%s1524 + $0xe0] sm:$0xff] %v1488
          %1554 = vst [vmem:[%s1524 + $0xe8] sm:$0xff] %v1489
          %1555 = vst [vmem:[%s1524 + $0xf0] sm:$0xff] %v1490
          %1556 = vst [vmem:[%s1524 + $0xf8] sm:$0xff] %v1491
          %1557 = vst [vmem:[%s1524 + $0x100] sm:$0xff] %v1492
          %1558 = vst [vmem:[%s1524 + $0x108] sm:$0xff] %v1493
          %1559 = vst [vmem:[%s1524 + $0x110] sm:$0xff] %v1494
          %1560 = vst [vmem:[%s1524 + $0x118] sm:$0xff] %v1495
          %1561 = vst [vmem:[%s1524 + $0x120] sm:$0xff] %v1496
          %1562 = vst [vmem:[%s1524 + $0x128] sm:$0xff] %v1497
          %1563 = vst [vmem:[%s1524 + $0x130] sm:$0xff] %v1498
          %1564 = vst [vmem:[%s1524 + $0x138] sm:$0xff] %v1499
          %1565 = vst [vmem:[%s1524 + $0x140] sm:$0xff] %v1500
          %1566 = vst [vmem:[%s1524 + $0x148] sm:$0xff] %v1501
          %1567 = vst [vmem:[%s1524 + $0x150] sm:$0xff] %v1502
          %1568 = vst [vmem:[%s1524 + $0x158] sm:$0xff] %v1503
          %1569 = vst [vmem:[%s1524 + $0x160] sm:$0xff] %v1504
          %1570 = vst [vmem:[%s1524 + $0x168] sm:$0xff] %v1505
          %1571 = vst [vmem:[%s1524 + $0x170] sm:$0xff] %v1506
          %1572 = vst [vmem:[%s1524 + $0x178] sm:$0xff] %v1507
          %1573 = vst [vmem:[%s1524 + $0x180] sm:$0xff] %v1508
          %1574 = vst [vmem:[%s1524 + $0x188] sm:$0xff] %v1509
          %1575 = vst [vmem:[%s1524 + $0x190] sm:$0xff] %v1510
          %1576 = vst [vmem:[%s1524 + $0x198] sm:$0xff] %v1511
          %1577 = vst [vmem:[%s1524 + $0x1a0] sm:$0xff] %v1512
          %1578 = vst [vmem:[%s1524 + $0x1a8] sm:$0xff] %v1513
          %1579 = vst [vmem:[%s1524 + $0x1b0] sm:$0xff] %v1514
          %1580 = vst [vmem:[%s1524 + $0x1b8] sm:$0xff] %v1515
          %1581 = vst [vmem:[%s1524 + $0x1c0] sm:$0xff] %v1516
          %1582 = vst [vmem:[%s1524 + $0x1c8] sm:$0xff] %v1517
          %1583 = vst [vmem:[%s1524 + $0x1d0] sm:$0xff] %v1518
          %1584 = vst [vmem:[%s1524 + $0x1d8] sm:$0xff] %v1519
          %1585 = vst [vmem:[%s1524 + $0x1e0] sm:$0xff] %v1520
          %1586 = vst [vmem:[%s1524 + $0x1e8] sm:$0xff] %v1521
          %1587 = vst [vmem:[%s1524 + $0x1f0] sm:$0xff] %v1522
          %1588 = vst [vmem:[%s1524 + $0x1f8] sm:$0xff] %v1523
          %v1589 = vpack.c.bf16 %v1209, %v1206
          %v1590 = vpack.c.bf16 %v1217, %v1214
          %v1591 = vpack.c.bf16 %v1225, %v1222
          %v1592 = vpack.c.bf16 %v1233, %v1230
          %v1593 = vpack.c.bf16 %v1241, %v1238
          %v1594 = vpack.c.bf16 %v1249, %v1246
          %v1595 = vpack.c.bf16 %v1257, %v1254
          %v1596 = vpack.c.bf16 %v1265, %v1262
          %v1597 = vpack.c.bf16 %v1273, %v1270
          %v1598 = vpack.c.bf16 %v1281, %v1278
          %v1599 = vpack.c.bf16 %v1289, %v1286
          %v1600 = vpack.c.bf16 %v1297, %v1294
          %v1601 = vpack.c.bf16 %v1305, %v1302
          %v1602 = vpack.c.bf16 %v1313, %v1310
          %v1603 = vpack.c.bf16 %v1321, %v1318
          %v1604 = vpack.c.bf16 %v1329, %v1326
          %v1605 = vpack.c.bf16 %v1337, %v1334
          %v1606 = vpack.c.bf16 %v1345, %v1342
          %v1607 = vpack.c.bf16 %v1353, %v1350
          %v1608 = vpack.c.bf16 %v1361, %v1358
          %v1609 = vpack.c.bf16 %v1369, %v1366
          %v1610 = vpack.c.bf16 %v1377, %v1374
          %v1611 = vpack.c.bf16 %v1385, %v1382
          %v1612 = vpack.c.bf16 %v1393, %v1390
          %v1613 = vpack.c.bf16 %v1401, %v1398
          %v1614 = vpack.c.bf16 %v1409, %v1406
          %v1615 = vpack.c.bf16 %v1417, %v1414
          %v1616 = vpack.c.bf16 %v1425, %v1422
          %v1617 = vpack.c.bf16 %v1433, %v1430
          %v1618 = vpack.c.bf16 %v1441, %v1438
          %v1619 = vpack.c.bf16 %v1449, %v1446
          %v1620 = vpack.c.bf16 %v1457, %v1454
          %s1621 = sshra.s32 %s301, 4
          %s1622 = sand.u32 %s301, 15
          %s1623 = smul.addr %s1621, 8
          %s1624 = scalar_lea.vmem [#allocation2], %s1623
          %1625 = vst [vmem:[%s1624] sm:$0xff] %v1589
          %1626 = vst [vmem:[%s1624 + $0x8] sm:$0xff] %v1590
          %1627 = vst [vmem:[%s1624 + $0x10] sm:$0xff] %v1591
          %1628 = vst [vmem:[%s1624 + $0x18] sm:$0xff] %v1592
          %1629 = vst [vmem:[%s1624 + $0x20] sm:$0xff] %v1593
          %1630 = vst [vmem:[%s1624 + $0x28] sm:$0xff] %v1594
          %1631 = vst [vmem:[%s1624 + $0x30] sm:$0xff] %v1595
          %1632 = vst [vmem:[%s1624 + $0x38] sm:$0xff] %v1596
          %1633 = vst [vmem:[%s1624 + $0x40] sm:$0xff] %v1597
          %1634 = vst [vmem:[%s1624 + $0x48] sm:$0xff] %v1598
          %1635 = vst [vmem:[%s1624 + $0x50] sm:$0xff] %v1599
          %1636 = vst [vmem:[%s1624 + $0x58] sm:$0xff] %v1600
          %1637 = vst [vmem:[%s1624 + $0x60] sm:$0xff] %v1601
          %1638 = vst [vmem:[%s1624 + $0x68] sm:$0xff] %v1602
          %1639 = vst [vmem:[%s1624 + $0x70] sm:$0xff] %v1603
          %1640 = vst [vmem:[%s1624 + $0x78] sm:$0xff] %v1604
          %1641 = vst [vmem:[%s1624 + $0x80] sm:$0xff] %v1605
          %1642 = vst [vmem:[%s1624 + $0x88] sm:$0xff] %v1606
          %1643 = vst [vmem:[%s1624 + $0x90] sm:$0xff] %v1607
          %1644 = vst [vmem:[%s1624 + $0x98] sm:$0xff] %v1608
          %1645 = vst [vmem:[%s1624 + $0xa0] sm:$0xff] %v1609
          %1646 = vst [vmem:[%s1624 + $0xa8] sm:$0xff] %v1610
          %1647 = vst [vmem:[%s1624 + $0xb0] sm:$0xff] %v1611
          %1648 = vst [vmem:[%s1624 + $0xb8] sm:$0xff] %v1612
          %1649 = vst [vmem:[%s1624 + $0xc0] sm:$0xff] %v1613
          %1650 = vst [vmem:[%s1624 + $0xc8] sm:$0xff] %v1614
          %1651 = vst [vmem:[%s1624 + $0xd0] sm:$0xff] %v1615
          %1652 = vst [vmem:[%s1624 + $0xd8] sm:$0xff] %v1616
          %1653 = vst [vmem:[%s1624 + $0xe0] sm:$0xff] %v1617
          %1654 = vst [vmem:[%s1624 + $0xe8] sm:$0xff] %v1618
          %1655 = vst [vmem:[%s1624 + $0xf0] sm:$0xff] %v1619
          %1656 = vst [vmem:[%s1624 + $0xf8] sm:$0xff] %v1620
        $region52: #{tpu_custom_call.1} parent=43 // pred_fallthru
          _
        %p1657 = scmp.gt.s32.totalorder %s25, 0
        // Predicated region
        $region53: #{tpu_custom_call.1} parent=43 // pred_check
          %p1658 = pneg %p1657
        $region54: #{tpu_custom_call.1} parent=43 // pred_check_branch
          %1660 = sbr.rel (%p1658) target = $region56
        $region55: #{tpu_custom_call.1} parent=43 // pred_region
          %s1661 = ssub.s32 %s25, 1
          %p1662 = scmp.lt.s32.totalorder %s1661, 0
          %s1663 = ssub.s32 0, %s1661
          %s1664 = scalar_select %p1662, %s1663, %s1661
          %s1665 = sand.u32 %s1664, 1
          %s1666 = ssub.s32 0, %s1665
          %s1667 = scalar_select %p1662, %s1666, %s1665
          %p1668 = scmp.lt.s32.totalorder %s25, 0
          %s1669 = ssub.s32 0, %s25
          %s1670 = scalar_select %p1668, %s1669, %s25
          %s1671 = sand.u32 %s1670, 1
          %s1672 = ssub.s32 0, %s1671
          %s1673 = scalar_select %p1668, %s1672, %s1671
          %s1674 = smul.u32 %s1667, 32
          %s1675 = smul.addr %s1674, 8
          %s1676 = scalar_lea.vmem [#allocation2], %s1675
          %v1677 = vld [vmem:[%s1676] sm:$0xff]
          %v1678 = vld [vmem:[%s1676 + $0x8] sm:$0xff]
          %v1679 = vld [vmem:[%s1676 + $0x10] sm:$0xff]
          %v1680 = vld [vmem:[%s1676 + $0x18] sm:$0xff]
          %v1681 = vld [vmem:[%s1676 + $0x20] sm:$0xff]
          %v1682 = vld [vmem:[%s1676 + $0x28] sm:$0xff]
          %v1683 = vld [vmem:[%s1676 + $0x30] sm:$0xff]
          %v1684 = vld [vmem:[%s1676 + $0x38] sm:$0xff]
          %v1685 = vld [vmem:[%s1676 + $0x40] sm:$0xff]
          %v1686 = vld [vmem:[%s1676 + $0x48] sm:$0xff]
          %v1687 = vld [vmem:[%s1676 + $0x50] sm:$0xff]
          %v1688 = vld [vmem:[%s1676 + $0x58] sm:$0xff]
          %v1689 = vld [vmem:[%s1676 + $0x60] sm:$0xff]
          %v1690 = vld [vmem:[%s1676 + $0x68] sm:$0xff]
          %v1691 = vld [vmem:[%s1676 + $0x70] sm:$0xff]
          %v1692 = vld [vmem:[%s1676 + $0x78] sm:$0xff]
          %v1693 = vld [vmem:[%s1676 + $0x80] sm:$0xff]
          %v1694 = vld [vmem:[%s1676 + $0x88] sm:$0xff]
          %v1695 = vld [vmem:[%s1676 + $0x90] sm:$0xff]
          %v1696 = vld [vmem:[%s1676 + $0x98] sm:$0xff]
          %v1697 = vld [vmem:[%s1676 + $0xa0] sm:$0xff]
          %v1698 = vld [vmem:[%s1676 + $0xa8] sm:$0xff]
          %v1699 = vld [vmem:[%s1676 + $0xb0] sm:$0xff]
          %v1700 = vld [vmem:[%s1676 + $0xb8] sm:$0xff]
          %v1701 = vld [vmem:[%s1676 + $0xc0] sm:$0xff]
          %v1702 = vld [vmem:[%s1676 + $0xc8] sm:$0xff]
          %v1703 = vld [vmem:[%s1676 + $0xd0] sm:$0xff]
          %v1704 = vld [vmem:[%s1676 + $0xd8] sm:$0xff]
          %v1705 = vld [vmem:[%s1676 + $0xe0] sm:$0xff]
          %v1706 = vld [vmem:[%s1676 + $0xe8] sm:$0xff]
          %v1707 = vld [vmem:[%s1676 + $0xf0] sm:$0xff]
          %v1708 = vld [vmem:[%s1676 + $0xf8] sm:$0xff]
          %s1709 = sshra.s32 %s301, 3
          %s1710 = sand.u32 %s301, 7
          %s1711 = smul.u32 %s1709, 4
          %s1712 = smul.addr %s1711, 4
          %s1713 = scalar_lea.vmem [#allocation4], %s1712
          %v1714 = vld [vmem:[%s1713] sm:$0xff]
          %v1715 = vld [vmem:[%s1713 + $0x8] sm:$0xff]
          %v1716 = vld [vmem:[%s1713 + $0x10] sm:$0xff]
          %v1717 = vld [vmem:[%s1713 + $0x18] sm:$0xff]
          %v1718 = vld [vmem:[%s1713 + $0x20] sm:$0xff]
          %v1719 = vld [vmem:[%s1713 + $0x28] sm:$0xff]
          %v1720 = vld [vmem:[%s1713 + $0x30] sm:$0xff]
          %v1721 = vld [vmem:[%s1713 + $0x38] sm:$0xff]
          %v1722 = vld [vmem:[%s1713 + $0x40] sm:$0xff]
          %v1723 = vld [vmem:[%s1713 + $0x48] sm:$0xff]
          %v1724 = vld [vmem:[%s1713 + $0x50] sm:$0xff]
          %v1725 = vld [vmem:[%s1713 + $0x58] sm:$0xff]
          %v1726 = vld [vmem:[%s1713 + $0x60] sm:$0xff]
          %v1727 = vld [vmem:[%s1713 + $0x68] sm:$0xff]
          %v1728 = vld [vmem:[%s1713 + $0x70] sm:$0xff]
          %v1729 = vld [vmem:[%s1713 + $0x78] sm:$0xff]
          %v1730 = vld [vmem:[%s1713 + $0x80] sm:$0xff]
          %v1731 = vld [vmem:[%s1713 + $0x88] sm:$0xff]
          %v1732 = vld [vmem:[%s1713 + $0x90] sm:$0xff]
          %v1733 = vld [vmem:[%s1713 + $0x98] sm:$0xff]
          %v1734 = vld [vmem:[%s1713 + $0xa0] sm:$0xff]
          %v1735 = vld [vmem:[%s1713 + $0xa8] sm:$0xff]
          %v1736 = vld [vmem:[%s1713 + $0xb0] sm:$0xff]
          %v1737 = vld [vmem:[%s1713 + $0xb8] sm:$0xff]
          %v1738 = vld [vmem:[%s1713 + $0xc0] sm:$0xff]
          %v1739 = vld [vmem:[%s1713 + $0xc8] sm:$0xff]
          %v1740 = vld [vmem:[%s1713 + $0xd0] sm:$0xff]
          %v1741 = vld [vmem:[%s1713 + $0xd8] sm:$0xff]
          %v1742 = vld [vmem:[%s1713 + $0xe0] sm:$0xff]
          %v1743 = vld [vmem:[%s1713 + $0xe8] sm:$0xff]
          %v1744 = vld [vmem:[%s1713 + $0xf0] sm:$0xff]
          %v1745 = vld [vmem:[%s1713 + $0xf8] sm:$0xff]
          %v1746 = vld [vmem:[%s1713 + $0x100] sm:$0xff]
          %v1747 = vld [vmem:[%s1713 + $0x108] sm:$0xff]
          %v1748 = vld [vmem:[%s1713 + $0x110] sm:$0xff]
          %v1749 = vld [vmem:[%s1713 + $0x118] sm:$0xff]
          %v1750 = vld [vmem:[%s1713 + $0x120] sm:$0xff]
          %v1751 = vld [vmem:[%s1713 + $0x128] sm:$0xff]
          %v1752 = vld [vmem:[%s1713 + $0x130] sm:$0xff]
          %v1753 = vld [vmem:[%s1713 + $0x138] sm:$0xff]
          %v1754 = vld [vmem:[%s1713 + $0x140] sm:$0xff]
          %v1755 = vld [vmem:[%s1713 + $0x148] sm:$0xff]
          %v1756 = vld [vmem:[%s1713 + $0x150] sm:$0xff]
          %v1757 = vld [vmem:[%s1713 + $0x158] sm:$0xff]
          %v1758 = vld [vmem:[%s1713 + $0x160] sm:$0xff]
          %v1759 = vld [vmem:[%s1713 + $0x168] sm:$0xff]
          %v1760 = vld [vmem:[%s1713 + $0x170] sm:$0xff]
          %v1761 = vld [vmem:[%s1713 + $0x178] sm:$0xff]
          %v1762 = vld [vmem:[%s1713 + $0x180] sm:$0xff]
          %v1763 = vld [vmem:[%s1713 + $0x188] sm:$0xff]
          %v1764 = vld [vmem:[%s1713 + $0x190] sm:$0xff]
          %v1765 = vld [vmem:[%s1713 + $0x198] sm:$0xff]
          %v1766 = vld [vmem:[%s1713 + $0x1a0] sm:$0xff]
          %v1767 = vld [vmem:[%s1713 + $0x1a8] sm:$0xff]
          %v1768 = vld [vmem:[%s1713 + $0x1b0] sm:$0xff]
          %v1769 = vld [vmem:[%s1713 + $0x1b8] sm:$0xff]
          %v1770 = vld [vmem:[%s1713 + $0x1c0] sm:$0xff]
          %v1771 = vld [vmem:[%s1713 + $0x1c8] sm:$0xff]
          %v1772 = vld [vmem:[%s1713 + $0x1d0] sm:$0xff]
          %v1773 = vld [vmem:[%s1713 + $0x1d8] sm:$0xff]
          %v1774 = vld [vmem:[%s1713 + $0x1e0] sm:$0xff]
          %v1775 = vld [vmem:[%s1713 + $0x1e8] sm:$0xff]
          %v1776 = vld [vmem:[%s1713 + $0x1f0] sm:$0xff]
          %v1777 = vld [vmem:[%s1713 + $0x1f8] sm:$0xff]
          %v1778 = vld [vmem:[%s1713 + $0x200] sm:$0xff]
          %v1779 = vld [vmem:[%s1713 + $0x208] sm:$0xff]
          %v1780 = vld [vmem:[%s1713 + $0x210] sm:$0xff]
          %v1781 = vld [vmem:[%s1713 + $0x218] sm:$0xff]
          %v1782 = vld [vmem:[%s1713 + $0x220] sm:$0xff]
          %v1783 = vld [vmem:[%s1713 + $0x228] sm:$0xff]
          %v1784 = vld [vmem:[%s1713 + $0x230] sm:$0xff]
          %v1785 = vld [vmem:[%s1713 + $0x238] sm:$0xff]
          %v1786 = vld [vmem:[%s1713 + $0x240] sm:$0xff]
          %v1787 = vld [vmem:[%s1713 + $0x248] sm:$0xff]
          %v1788 = vld [vmem:[%s1713 + $0x250] sm:$0xff]
          %v1789 = vld [vmem:[%s1713 + $0x258] sm:$0xff]
          %v1790 = vld [vmem:[%s1713 + $0x260] sm:$0xff]
          %v1791 = vld [vmem:[%s1713 + $0x268] sm:$0xff]
          %v1792 = vld [vmem:[%s1713 + $0x270] sm:$0xff]
          %v1793 = vld [vmem:[%s1713 + $0x278] sm:$0xff]
          %v1794 = vld [vmem:[%s1713 + $0x280] sm:$0xff]
          %v1795 = vld [vmem:[%s1713 + $0x288] sm:$0xff]
          %v1796 = vld [vmem:[%s1713 + $0x290] sm:$0xff]
          %v1797 = vld [vmem:[%s1713 + $0x298] sm:$0xff]
          %v1798 = vld [vmem:[%s1713 + $0x2a0] sm:$0xff]
          %v1799 = vld [vmem:[%s1713 + $0x2a8] sm:$0xff]
          %v1800 = vld [vmem:[%s1713 + $0x2b0] sm:$0xff]
          %v1801 = vld [vmem:[%s1713 + $0x2b8] sm:$0xff]
          %v1802 = vld [vmem:[%s1713 + $0x2c0] sm:$0xff]
          %v1803 = vld [vmem:[%s1713 + $0x2c8] sm:$0xff]
          %v1804 = vld [vmem:[%s1713 + $0x2d0] sm:$0xff]
          %v1805 = vld [vmem:[%s1713 + $0x2d8] sm:$0xff]
          %v1806 = vld [vmem:[%s1713 + $0x2e0] sm:$0xff]
          %v1807 = vld [vmem:[%s1713 + $0x2e8] sm:$0xff]
          %v1808 = vld [vmem:[%s1713 + $0x2f0] sm:$0xff]
          %v1809 = vld [vmem:[%s1713 + $0x2f8] sm:$0xff]
          %v1810 = vld [vmem:[%s1713 + $0x300] sm:$0xff]
          %v1811 = vld [vmem:[%s1713 + $0x308] sm:$0xff]
          %v1812 = vld [vmem:[%s1713 + $0x310] sm:$0xff]
          %v1813 = vld [vmem:[%s1713 + $0x318] sm:$0xff]
          %v1814 = vld [vmem:[%s1713 + $0x320] sm:$0xff]
          %v1815 = vld [vmem:[%s1713 + $0x328] sm:$0xff]
          %v1816 = vld [vmem:[%s1713 + $0x330] sm:$0xff]
          %v1817 = vld [vmem:[%s1713 + $0x338] sm:$0xff]
          %v1818 = vld [vmem:[%s1713 + $0x340] sm:$0xff]
          %v1819 = vld [vmem:[%s1713 + $0x348] sm:$0xff]
          %v1820 = vld [vmem:[%s1713 + $0x350] sm:$0xff]
          %v1821 = vld [vmem:[%s1713 + $0x358] sm:$0xff]
          %v1822 = vld [vmem:[%s1713 + $0x360] sm:$0xff]
          %v1823 = vld [vmem:[%s1713 + $0x368] sm:$0xff]
          %v1824 = vld [vmem:[%s1713 + $0x370] sm:$0xff]
          %v1825 = vld [vmem:[%s1713 + $0x378] sm:$0xff]
          %v1826 = vld [vmem:[%s1713 + $0x380] sm:$0xff]
          %v1827 = vld [vmem:[%s1713 + $0x388] sm:$0xff]
          %v1828 = vld [vmem:[%s1713 + $0x390] sm:$0xff]
          %v1829 = vld [vmem:[%s1713 + $0x398] sm:$0xff]
          %v1830 = vld [vmem:[%s1713 + $0x3a0] sm:$0xff]
          %v1831 = vld [vmem:[%s1713 + $0x3a8] sm:$0xff]
          %v1832 = vld [vmem:[%s1713 + $0x3b0] sm:$0xff]
          %v1833 = vld [vmem:[%s1713 + $0x3b8] sm:$0xff]
          %v1834 = vld [vmem:[%s1713 + $0x3c0] sm:$0xff]
          %v1835 = vld [vmem:[%s1713 + $0x3c8] sm:$0xff]
          %v1836 = vld [vmem:[%s1713 + $0x3d0] sm:$0xff]
          %v1837 = vld [vmem:[%s1713 + $0x3d8] sm:$0xff]
          %v1838 = vld [vmem:[%s1713 + $0x3e0] sm:$0xff]
          %v1839 = vld [vmem:[%s1713 + $0x3e8] sm:$0xff]
          %v1840 = vld [vmem:[%s1713 + $0x3f0] sm:$0xff]
          %v1841 = vld [vmem:[%s1713 + $0x3f8] sm:$0xff]
          %s1842 = scalar_lea.vmem [#allocation3], %s301
          %v1843 = vld [vmem:[%s1842] sm:$0xff]
          %v1844 = vld [vmem:[%s1842 + $0x8] sm:$0xff]
          %v1845 = vld [vmem:[%s1842 + $0x10] sm:$0xff]
          %v1846 = vld [vmem:[%s1842 + $0x18] sm:$0xff]
          %v1847 = vld [vmem:[%s1842 + $0x20] sm:$0xff]
          %v1848 = vld [vmem:[%s1842 + $0x28] sm:$0xff]
          %v1849 = vld [vmem:[%s1842 + $0x30] sm:$0xff]
          %v1850 = vld [vmem:[%s1842 + $0x38] sm:$0xff]
          %v1851 = vld [vmem:[%s1842 + $0x40] sm:$0xff]
          %v1852 = vld [vmem:[%s1842 + $0x48] sm:$0xff]
          %v1853 = vld [vmem:[%s1842 + $0x50] sm:$0xff]
          %v1854 = vld [vmem:[%s1842 + $0x58] sm:$0xff]
          %v1855 = vld [vmem:[%s1842 + $0x60] sm:$0xff]
          %v1856 = vld [vmem:[%s1842 + $0x68] sm:$0xff]
          %v1857 = vld [vmem:[%s1842 + $0x70] sm:$0xff]
          %v1858 = vld [vmem:[%s1842 + $0x78] sm:$0xff]
          %v1859 = vld [vmem:[%s1842 + $0x80] sm:$0xff]
          %v1860 = vld [vmem:[%s1842 + $0x88] sm:$0xff]
          %v1861 = vld [vmem:[%s1842 + $0x90] sm:$0xff]
          %v1862 = vld [vmem:[%s1842 + $0x98] sm:$0xff]
          %v1863 = vld [vmem:[%s1842 + $0xa0] sm:$0xff]
          %v1864 = vld [vmem:[%s1842 + $0xa8] sm:$0xff]
          %v1865 = vld [vmem:[%s1842 + $0xb0] sm:$0xff]
          %v1866 = vld [vmem:[%s1842 + $0xb8] sm:$0xff]
          %v1867 = vld [vmem:[%s1842 + $0xc0] sm:$0xff]
          %v1868 = vld [vmem:[%s1842 + $0xc8] sm:$0xff]
          %v1869 = vld [vmem:[%s1842 + $0xd0] sm:$0xff]
          %v1870 = vld [vmem:[%s1842 + $0xd8] sm:$0xff]
          %v1871 = vld [vmem:[%s1842 + $0xe0] sm:$0xff]
          %v1872 = vld [vmem:[%s1842 + $0xe8] sm:$0xff]
          %v1873 = vld [vmem:[%s1842 + $0xf0] sm:$0xff]
          %v1874 = vld [vmem:[%s1842 + $0xf8] sm:$0xff]
          %v1875 = vld [vmem:[%s1842 + $0x100] sm:$0xff]
          %v1876 = vld [vmem:[%s1842 + $0x108] sm:$0xff]
          %v1877 = vld [vmem:[%s1842 + $0x110] sm:$0xff]
          %v1878 = vld [vmem:[%s1842 + $0x118] sm:$0xff]
          %v1879 = vld [vmem:[%s1842 + $0x120] sm:$0xff]
          %v1880 = vld [vmem:[%s1842 + $0x128] sm:$0xff]
          %v1881 = vld [vmem:[%s1842 + $0x130] sm:$0xff]
          %v1882 = vld [vmem:[%s1842 + $0x138] sm:$0xff]
          %v1883 = vld [vmem:[%s1842 + $0x140] sm:$0xff]
          %v1884 = vld [vmem:[%s1842 + $0x148] sm:$0xff]
          %v1885 = vld [vmem:[%s1842 + $0x150] sm:$0xff]
          %v1886 = vld [vmem:[%s1842 + $0x158] sm:$0xff]
          %v1887 = vld [vmem:[%s1842 + $0x160] sm:$0xff]
          %v1888 = vld [vmem:[%s1842 + $0x168] sm:$0xff]
          %v1889 = vld [vmem:[%s1842 + $0x170] sm:$0xff]
          %v1890 = vld [vmem:[%s1842 + $0x178] sm:$0xff]
          %v1891 = vld [vmem:[%s1842 + $0x180] sm:$0xff]
          %v1892 = vld [vmem:[%s1842 + $0x188] sm:$0xff]
          %v1893 = vld [vmem:[%s1842 + $0x190] sm:$0xff]
          %v1894 = vld [vmem:[%s1842 + $0x198] sm:$0xff]
          %v1895 = vld [vmem:[%s1842 + $0x1a0] sm:$0xff]
          %v1896 = vld [vmem:[%s1842 + $0x1a8] sm:$0xff]
          %v1897 = vld [vmem:[%s1842 + $0x1b0] sm:$0xff]
          %v1898 = vld [vmem:[%s1842 + $0x1b8] sm:$0xff]
          %v1899 = vld [vmem:[%s1842 + $0x1c0] sm:$0xff]
          %v1900 = vld [vmem:[%s1842 + $0x1c8] sm:$0xff]
          %v1901 = vld [vmem:[%s1842 + $0x1d0] sm:$0xff]
          %v1902 = vld [vmem:[%s1842 + $0x1d8] sm:$0xff]
          %v1903 = vld [vmem:[%s1842 + $0x1e0] sm:$0xff]
          %v1904 = vld [vmem:[%s1842 + $0x1e8] sm:$0xff]
          %v1905 = vld [vmem:[%s1842 + $0x1f0] sm:$0xff]
          %v1906 = vld [vmem:[%s1842 + $0x1f8] sm:$0xff]
          %v2035 = vunpack.c.l.b16 %v1714
          %v2036 = vunpack.c.h.b16 %v1714
          %v2037 = vunpack.c.l.b16 %v1715
          %v2038 = vunpack.c.h.b16 %v1715
          %v2039 = vunpack.c.l.b16 %v1716
          %v2040 = vunpack.c.h.b16 %v1716
          %v2041 = vunpack.c.l.b16 %v1717
          %v2042 = vunpack.c.h.b16 %v1717
          %v2043 = vunpack.c.l.b16 %v1718
          %v2044 = vunpack.c.h.b16 %v1718
          %v2045 = vunpack.c.l.b16 %v1719
          %v2046 = vunpack.c.h.b16 %v1719
          %v2047 = vunpack.c.l.b16 %v1720
          %v2048 = vunpack.c.h.b16 %v1720
          %v2049 = vunpack.c.l.b16 %v1721
          %v2050 = vunpack.c.h.b16 %v1721
          %v2051 = vunpack.c.l.b16 %v1722
          %v2052 = vunpack.c.h.b16 %v1722
          %v2053 = vunpack.c.l.b16 %v1723
          %v2054 = vunpack.c.h.b16 %v1723
          %v2055 = vunpack.c.l.b16 %v1724
          %v2056 = vunpack.c.h.b16 %v1724
          %v2057 = vunpack.c.l.b16 %v1725
          %v2058 = vunpack.c.h.b16 %v1725
          %v2059 = vunpack.c.l.b16 %v1726
          %v2060 = vunpack.c.h.b16 %v1726
          %v2061 = vunpack.c.l.b16 %v1727
          %v2062 = vunpack.c.h.b16 %v1727
          %v2063 = vunpack.c.l.b16 %v1728
          %v2064 = vunpack.c.h.b16 %v1728
          %v2065 = vunpack.c.l.b16 %v1729
          %v2066 = vunpack.c.h.b16 %v1729
          %v2067 = vunpack.c.l.b16 %v1730
          %v2068 = vunpack.c.h.b16 %v1730
          %v2069 = vunpack.c.l.b16 %v1731
          %v2070 = vunpack.c.h.b16 %v1731
          %v2071 = vunpack.c.l.b16 %v1732
          %v2072 = vunpack.c.h.b16 %v1732
          %v2073 = vunpack.c.l.b16 %v1733
          %v2074 = vunpack.c.h.b16 %v1733
          %v2075 = vunpack.c.l.b16 %v1734
          %v2076 = vunpack.c.h.b16 %v1734
          %v2077 = vunpack.c.l.b16 %v1735
          %v2078 = vunpack.c.h.b16 %v1735
          %v2079 = vunpack.c.l.b16 %v1736
          %v2080 = vunpack.c.h.b16 %v1736
          %v2081 = vunpack.c.l.b16 %v1737
          %v2082 = vunpack.c.h.b16 %v1737
          %v2083 = vunpack.c.l.b16 %v1738
          %v2084 = vunpack.c.h.b16 %v1738
          %v2085 = vunpack.c.l.b16 %v1739
          %v2086 = vunpack.c.h.b16 %v1739
          %v2087 = vunpack.c.l.b16 %v1740
          %v2088 = vunpack.c.h.b16 %v1740
          %v2089 = vunpack.c.l.b16 %v1741
          %v2090 = vunpack.c.h.b16 %v1741
          %v2091 = vunpack.c.l.b16 %v1742
          %v2092 = vunpack.c.h.b16 %v1742
          %v2093 = vunpack.c.l.b16 %v1743
          %v2094 = vunpack.c.h.b16 %v1743
          %v2095 = vunpack.c.l.b16 %v1744
          %v2096 = vunpack.c.h.b16 %v1744
          %v2097 = vunpack.c.l.b16 %v1745
          %v2098 = vunpack.c.h.b16 %v1745
          %v2099 = vunpack.c.l.b16 %v1746
          %v2100 = vunpack.c.h.b16 %v1746
          %v2101 = vunpack.c.l.b16 %v1747
          %v2102 = vunpack.c.h.b16 %v1747
          %v2103 = vunpack.c.l.b16 %v1748
          %v2104 = vunpack.c.h.b16 %v1748
          %v2105 = vunpack.c.l.b16 %v1749
          %v2106 = vunpack.c.h.b16 %v1749
          %v2107 = vunpack.c.l.b16 %v1750
          %v2108 = vunpack.c.h.b16 %v1750
          %v2109 = vunpack.c.l.b16 %v1751
          %v2110 = vunpack.c.h.b16 %v1751
          %v2111 = vunpack.c.l.b16 %v1752
          %v2112 = vunpack.c.h.b16 %v1752
          %v2113 = vunpack.c.l.b16 %v1753
          %v2114 = vunpack.c.h.b16 %v1753
          %v2115 = vunpack.c.l.b16 %v1754
          %v2116 = vunpack.c.h.b16 %v1754
          %v2117 = vunpack.c.l.b16 %v1755
          %v2118 = vunpack.c.h.b16 %v1755
          %v2119 = vunpack.c.l.b16 %v1756
          %v2120 = vunpack.c.h.b16 %v1756
          %v2121 = vunpack.c.l.b16 %v1757
          %v2122 = vunpack.c.h.b16 %v1757
          %v2123 = vunpack.c.l.b16 %v1758
          %v2124 = vunpack.c.h.b16 %v1758
          %v2125 = vunpack.c.l.b16 %v1759
          %v2126 = vunpack.c.h.b16 %v1759
          %v2127 = vunpack.c.l.b16 %v1760
          %v2128 = vunpack.c.h.b16 %v1760
          %v2129 = vunpack.c.l.b16 %v1761
          %v2130 = vunpack.c.h.b16 %v1761
          %v2131 = vunpack.c.l.b16 %v1762
          %v2132 = vunpack.c.h.b16 %v1762
          %v2133 = vunpack.c.l.b16 %v1763
          %v2134 = vunpack.c.h.b16 %v1763
          %v2135 = vunpack.c.l.b16 %v1764
          %v2136 = vunpack.c.h.b16 %v1764
          %v2137 = vunpack.c.l.b16 %v1765
          %v2138 = vunpack.c.h.b16 %v1765
          %v2139 = vunpack.c.l.b16 %v1766
          %v2140 = vunpack.c.h.b16 %v1766
          %v2141 = vunpack.c.l.b16 %v1767
          %v2142 = vunpack.c.h.b16 %v1767
          %v2143 = vunpack.c.l.b16 %v1768
          %v2144 = vunpack.c.h.b16 %v1768
          %v2145 = vunpack.c.l.b16 %v1769
          %v2146 = vunpack.c.h.b16 %v1769
          %v2147 = vunpack.c.l.b16 %v1770
          %v2148 = vunpack.c.h.b16 %v1770
          %v2149 = vunpack.c.l.b16 %v1771
          %v2150 = vunpack.c.h.b16 %v1771
          %v2151 = vunpack.c.l.b16 %v1772
          %v2152 = vunpack.c.h.b16 %v1772
          %v2153 = vunpack.c.l.b16 %v1773
          %v2154 = vunpack.c.h.b16 %v1773
          %v2155 = vunpack.c.l.b16 %v1774
          %v2156 = vunpack.c.h.b16 %v1774
          %v2157 = vunpack.c.l.b16 %v1775
          %v2158 = vunpack.c.h.b16 %v1775
          %v2159 = vunpack.c.l.b16 %v1776
          %v2160 = vunpack.c.h.b16 %v1776
          %v2161 = vunpack.c.l.b16 %v1777
          %v2162 = vunpack.c.h.b16 %v1777
          %v2163 = vunpack.c.l.b16 %v1778
          %v2164 = vunpack.c.h.b16 %v1778
          %v2165 = vunpack.c.l.b16 %v1779
          %v2166 = vunpack.c.h.b16 %v1779
          %v2167 = vunpack.c.l.b16 %v1780
          %v2168 = vunpack.c.h.b16 %v1780
          %v2169 = vunpack.c.l.b16 %v1781
          %v2170 = vunpack.c.h.b16 %v1781
          %v2171 = vunpack.c.l.b16 %v1782
          %v2172 = vunpack.c.h.b16 %v1782
          %v2173 = vunpack.c.l.b16 %v1783
          %v2174 = vunpack.c.h.b16 %v1783
          %v2175 = vunpack.c.l.b16 %v1784
          %v2176 = vunpack.c.h.b16 %v1784
          %v2177 = vunpack.c.l.b16 %v1785
          %v2178 = vunpack.c.h.b16 %v1785
          %v2179 = vunpack.c.l.b16 %v1786
          %v2180 = vunpack.c.h.b16 %v1786
          %v2181 = vunpack.c.l.b16 %v1787
          %v2182 = vunpack.c.h.b16 %v1787
          %v2183 = vunpack.c.l.b16 %v1788
          %v2184 = vunpack.c.h.b16 %v1788
          %v2185 = vunpack.c.l.b16 %v1789
          %v2186 = vunpack.c.h.b16 %v1789
          %v2187 = vunpack.c.l.b16 %v1790
          %v2188 = vunpack.c.h.b16 %v1790
          %v2189 = vunpack.c.l.b16 %v1791
          %v2190 = vunpack.c.h.b16 %v1791
          %v2191 = vunpack.c.l.b16 %v1792
          %v2192 = vunpack.c.h.b16 %v1792
          %v2193 = vunpack.c.l.b16 %v1793
          %v2194 = vunpack.c.h.b16 %v1793
          %v2195 = vunpack.c.l.b16 %v1794
          %v2196 = vunpack.c.h.b16 %v1794
          %v2197 = vunpack.c.l.b16 %v1795
          %v2198 = vunpack.c.h.b16 %v1795
          %v2199 = vunpack.c.l.b16 %v1796
          %v2200 = vunpack.c.h.b16 %v1796
          %v2201 = vunpack.c.l.b16 %v1797
          %v2202 = vunpack.c.h.b16 %v1797
          %v2203 = vunpack.c.l.b16 %v1798
          %v2204 = vunpack.c.h.b16 %v1798
          %v2205 = vunpack.c.l.b16 %v1799
          %v2206 = vunpack.c.h.b16 %v1799
          %v2207 = vunpack.c.l.b16 %v1800
          %v2208 = vunpack.c.h.b16 %v1800
          %v2209 = vunpack.c.l.b16 %v1801
          %v2210 = vunpack.c.h.b16 %v1801
          %v2211 = vunpack.c.l.b16 %v1802
          %v2212 = vunpack.c.h.b16 %v1802
          %v2213 = vunpack.c.l.b16 %v1803
          %v2214 = vunpack.c.h.b16 %v1803
          %v2215 = vunpack.c.l.b16 %v1804
          %v2216 = vunpack.c.h.b16 %v1804
          %v2217 = vunpack.c.l.b16 %v1805
          %v2218 = vunpack.c.h.b16 %v1805
          %v2219 = vunpack.c.l.b16 %v1806
          %v2220 = vunpack.c.h.b16 %v1806
          %v2221 = vunpack.c.l.b16 %v1807
          %v2222 = vunpack.c.h.b16 %v1807
          %v2223 = vunpack.c.l.b16 %v1808
          %v2224 = vunpack.c.h.b16 %v1808
          %v2225 = vunpack.c.l.b16 %v1809
          %v2226 = vunpack.c.h.b16 %v1809
          %v2227 = vunpack.c.l.b16 %v1810
          %v2228 = vunpack.c.h.b16 %v1810
          %v2229 = vunpack.c.l.b16 %v1811
          %v2230 = vunpack.c.h.b16 %v1811
          %v2231 = vunpack.c.l.b16 %v1812
          %v2232 = vunpack.c.h.b16 %v1812
          %v2233 = vunpack.c.l.b16 %v1813
          %v2234 = vunpack.c.h.b16 %v1813
          %v2235 = vunpack.c.l.b16 %v1814
          %v2236 = vunpack.c.h.b16 %v1814
          %v2237 = vunpack.c.l.b16 %v1815
          %v2238 = vunpack.c.h.b16 %v1815
          %v2239 = vunpack.c.l.b16 %v1816
          %v2240 = vunpack.c.h.b16 %v1816
          %v2241 = vunpack.c.l.b16 %v1817
          %v2242 = vunpack.c.h.b16 %v1817
          %v2243 = vunpack.c.l.b16 %v1818
          %v2244 = vunpack.c.h.b16 %v1818
          %v2245 = vunpack.c.l.b16 %v1819
          %v2246 = vunpack.c.h.b16 %v1819
          %v2247 = vunpack.c.l.b16 %v1820
          %v2248 = vunpack.c.h.b16 %v1820
          %v2249 = vunpack.c.l.b16 %v1821
          %v2250 = vunpack.c.h.b16 %v1821
          %v2251 = vunpack.c.l.b16 %v1822
          %v2252 = vunpack.c.h.b16 %v1822
          %v2253 = vunpack.c.l.b16 %v1823
          %v2254 = vunpack.c.h.b16 %v1823
          %v2255 = vunpack.c.l.b16 %v1824
          %v2256 = vunpack.c.h.b16 %v1824
          %v2257 = vunpack.c.l.b16 %v1825
          %v2258 = vunpack.c.h.b16 %v1825
          %v2259 = vunpack.c.l.b16 %v1826
          %v2260 = vunpack.c.h.b16 %v1826
          %v2261 = vunpack.c.l.b16 %v1827
          %v2262 = vunpack.c.h.b16 %v1827
          %v2263 = vunpack.c.l.b16 %v1828
          %v2264 = vunpack.c.h.b16 %v1828
          %v2265 = vunpack.c.l.b16 %v1829
          %v2266 = vunpack.c.h.b16 %v1829
          %v2267 = vunpack.c.l.b16 %v1830
          %v2268 = vunpack.c.h.b16 %v1830
          %v2269 = vunpack.c.l.b16 %v1831
          %v2270 = vunpack.c.h.b16 %v1831
          %v2271 = vunpack.c.l.b16 %v1832
          %v2272 = vunpack.c.h.b16 %v1832
          %v2273 = vunpack.c.l.b16 %v1833
          %v2274 = vunpack.c.h.b16 %v1833
          %v2275 = vunpack.c.l.b16 %v1834
          %v2276 = vunpack.c.h.b16 %v1834
          %v2277 = vunpack.c.l.b16 %v1835
          %v2278 = vunpack.c.h.b16 %v1835
          %v2279 = vunpack.c.l.b16 %v1836
          %v2280 = vunpack.c.h.b16 %v1836
          %v2281 = vunpack.c.l.b16 %v1837
          %v2282 = vunpack.c.h.b16 %v1837
          %v2283 = vunpack.c.l.b16 %v1838
          %v2284 = vunpack.c.h.b16 %v1838
          %v2285 = vunpack.c.l.b16 %v1839
          %v2286 = vunpack.c.h.b16 %v1839
          %v2287 = vunpack.c.l.b16 %v1840
          %v2288 = vunpack.c.h.b16 %v1840
          %v2289 = vunpack.c.l.b16 %v1841
          %v2290 = vunpack.c.h.b16 %v1841
          %v2291 = vpack.c.b16 %v2039, %v2035
          %v2292 = vpack.c.b16 %v2040, %v2036
          %v2293 = vpack.c.b16 %v2041, %v2037
          %v2294 = vpack.c.b16 %v2042, %v2038
          %v2295 = vpack.c.b16 %v2047, %v2043
          %v2296 = vpack.c.b16 %v2048, %v2044
          %v2297 = vpack.c.b16 %v2049, %v2045
          %v2298 = vpack.c.b16 %v2050, %v2046
          %v2299 = vpack.c.b16 %v2055, %v2051
          %v2300 = vpack.c.b16 %v2056, %v2052
          %v2301 = vpack.c.b16 %v2057, %v2053
          %v2302 = vpack.c.b16 %v2058, %v2054
          %v2303 = vpack.c.b16 %v2063, %v2059
          %v2304 = vpack.c.b16 %v2064, %v2060
          %v2305 = vpack.c.b16 %v2065, %v2061
          %v2306 = vpack.c.b16 %v2066, %v2062
          %v2307 = vpack.c.b16 %v2071, %v2067
          %v2308 = vpack.c.b16 %v2072, %v2068
          %v2309 = vpack.c.b16 %v2073, %v2069
          %v2310 = vpack.c.b16 %v2074, %v2070
          %v2311 = vpack.c.b16 %v2079, %v2075
          %v2312 = vpack.c.b16 %v2080, %v2076
          %v2313 = vpack.c.b16 %v2081, %v2077
          %v2314 = vpack.c.b16 %v2082, %v2078
          %v2315 = vpack.c.b16 %v2087, %v2083
          %v2316 = vpack.c.b16 %v2088, %v2084
          %v2317 = vpack.c.b16 %v2089, %v2085
          %v2318 = vpack.c.b16 %v2090, %v2086
          %v2319 = vpack.c.b16 %v2095, %v2091
          %v2320 = vpack.c.b16 %v2096, %v2092
          %v2321 = vpack.c.b16 %v2097, %v2093
          %v2322 = vpack.c.b16 %v2098, %v2094
          %v2323 = vpack.c.b16 %v2103, %v2099
          %v2324 = vpack.c.b16 %v2104, %v2100
          %v2325 = vpack.c.b16 %v2105, %v2101
          %v2326 = vpack.c.b16 %v2106, %v2102
          %v2327 = vpack.c.b16 %v2111, %v2107
          %v2328 = vpack.c.b16 %v2112, %v2108
          %v2329 = vpack.c.b16 %v2113, %v2109
          %v2330 = vpack.c.b16 %v2114, %v2110
          %v2331 = vpack.c.b16 %v2119, %v2115
          %v2332 = vpack.c.b16 %v2120, %v2116
          %v2333 = vpack.c.b16 %v2121, %v2117
          %v2334 = vpack.c.b16 %v2122, %v2118
          %v2335 = vpack.c.b16 %v2127, %v2123
          %v2336 = vpack.c.b16 %v2128, %v2124
          %v2337 = vpack.c.b16 %v2129, %v2125
          %v2338 = vpack.c.b16 %v2130, %v2126
          %v2339 = vpack.c.b16 %v2135, %v2131
          %v2340 = vpack.c.b16 %v2136, %v2132
          %v2341 = vpack.c.b16 %v2137, %v2133
          %v2342 = vpack.c.b16 %v2138, %v2134
          %v2343 = vpack.c.b16 %v2143, %v2139
          %v2344 = vpack.c.b16 %v2144, %v2140
          %v2345 = vpack.c.b16 %v2145, %v2141
          %v2346 = vpack.c.b16 %v2146, %v2142
          %v2347 = vpack.c.b16 %v2151, %v2147
          %v2348 = vpack.c.b16 %v2152, %v2148
          %v2349 = vpack.c.b16 %v2153, %v2149
          %v2350 = vpack.c.b16 %v2154, %v2150
          %v2351 = vpack.c.b16 %v2159, %v2155
          %v2352 = vpack.c.b16 %v2160, %v2156
          %v2353 = vpack.c.b16 %v2161, %v2157
          %v2354 = vpack.c.b16 %v2162, %v2158
          %v2355 = vpack.c.b16 %v2167, %v2163
          %v2356 = vpack.c.b16 %v2168, %v2164
          %v2357 = vpack.c.b16 %v2169, %v2165
          %v2358 = vpack.c.b16 %v2170, %v2166
          %v2359 = vpack.c.b16 %v2175, %v2171
          %v2360 = vpack.c.b16 %v2176, %v2172
          %v2361 = vpack.c.b16 %v2177, %v2173
          %v2362 = vpack.c.b16 %v2178, %v2174
          %v2363 = vpack.c.b16 %v2183, %v2179
          %v2364 = vpack.c.b16 %v2184, %v2180
          %v2365 = vpack.c.b16 %v2185, %v2181
          %v2366 = vpack.c.b16 %v2186, %v2182
          %v2367 = vpack.c.b16 %v2191, %v2187
          %v2368 = vpack.c.b16 %v2192, %v2188
          %v2369 = vpack.c.b16 %v2193, %v2189
          %v2370 = vpack.c.b16 %v2194, %v2190
          %v2371 = vpack.c.b16 %v2199, %v2195
          %v2372 = vpack.c.b16 %v2200, %v2196
          %v2373 = vpack.c.b16 %v2201, %v2197
          %v2374 = vpack.c.b16 %v2202, %v2198
          %v2375 = vpack.c.b16 %v2207, %v2203
          %v2376 = vpack.c.b16 %v2208, %v2204
          %v2377 = vpack.c.b16 %v2209, %v2205
          %v2378 = vpack.c.b16 %v2210, %v2206
          %v2379 = vpack.c.b16 %v2215, %v2211
          %v2380 = vpack.c.b16 %v2216, %v2212
          %v2381 = vpack.c.b16 %v2217, %v2213
          %v2382 = vpack.c.b16 %v2218, %v2214
          %v2383 = vpack.c.b16 %v2223, %v2219
          %v2384 = vpack.c.b16 %v2224, %v2220
          %v2385 = vpack.c.b16 %v2225, %v2221
          %v2386 = vpack.c.b16 %v2226, %v2222
          %v2387 = vpack.c.b16 %v2231, %v2227
          %v2388 = vpack.c.b16 %v2232, %v2228
          %v2389 = vpack.c.b16 %v2233, %v2229
          %v2390 = vpack.c.b16 %v2234, %v2230
          %v2391 = vpack.c.b16 %v2239, %v2235
          %v2392 = vpack.c.b16 %v2240, %v2236
          %v2393 = vpack.c.b16 %v2241, %v2237
          %v2394 = vpack.c.b16 %v2242, %v2238
          %v2395 = vpack.c.b16 %v2247, %v2243
          %v2396 = vpack.c.b16 %v2248, %v2244
          %v2397 = vpack.c.b16 %v2249, %v2245
          %v2398 = vpack.c.b16 %v2250, %v2246
          %v2399 = vpack.c.b16 %v2255, %v2251
          %v2400 = vpack.c.b16 %v2256, %v2252
          %v2401 = vpack.c.b16 %v2257, %v2253
          %v2402 = vpack.c.b16 %v2258, %v2254
          %v2403 = vpack.c.b16 %v2263, %v2259
          %v2404 = vpack.c.b16 %v2264, %v2260
          %v2405 = vpack.c.b16 %v2265, %v2261
          %v2406 = vpack.c.b16 %v2266, %v2262
          %v2407 = vpack.c.b16 %v2271, %v2267
          %v2408 = vpack.c.b16 %v2272, %v2268
          %v2409 = vpack.c.b16 %v2273, %v2269
          %v2410 = vpack.c.b16 %v2274, %v2270
          %v2411 = vpack.c.b16 %v2279, %v2275
          %v2412 = vpack.c.b16 %v2280, %v2276
          %v2413 = vpack.c.b16 %v2281, %v2277
          %v2414 = vpack.c.b16 %v2282, %v2278
          %v2415 = vpack.c.b16 %v2287, %v2283
          %v2416 = vpack.c.b16 %v2288, %v2284
          %v2417 = vpack.c.b16 %v2289, %v2285
          %v2418 = vpack.c.b16 %v2290, %v2286
          %2547 = vmatprep.subr.bf16.mxu0 0
          %2548 = vmatpush1.bf16.msra.mxu0 %v1677
          %2549 = vmatprep.subr.bf16.mxu0 0
          %2550 = vmatpush1.bf16.msra.mxu0 %v1678
          %2551 = vmatprep.subr.bf16.mxu0 0
          %2552 = vmatpush1.bf16.msra.mxu0 %v1679
          %2553 = vmatprep.subr.bf16.mxu0 0
          %2554 = vmatpush1.bf16.msra.mxu0 %v1680
          %2555 = vmatprep.subr.bf16.mxu0 0
          %2556 = vmatpush1.bf16.msra.mxu0 %v1681
          %2557 = vmatprep.subr.bf16.mxu0 0
          %2558 = vmatpush1.bf16.msra.mxu0 %v1682
          %2559 = vmatprep.subr.bf16.mxu0 0
          %2560 = vmatpush1.bf16.msra.mxu0 %v1683
          %2561 = vmatprep.subr.bf16.mxu0 0
          %2562 = vmatpush1.bf16.msra.mxu0 %v1684
          %2563 = vmatprep.subr.bf16.mxu0 0
          %2564 = vmatpush1.bf16.msra.mxu0 %v1685
          %2565 = vmatprep.subr.bf16.mxu0 0
          %2566 = vmatpush1.bf16.msra.mxu0 %v1686
          %2567 = vmatprep.subr.bf16.mxu0 0
          %2568 = vmatpush1.bf16.msra.mxu0 %v1687
          %2569 = vmatprep.subr.bf16.mxu0 0
          %2570 = vmatpush1.bf16.msra.mxu0 %v1688
          %2571 = vmatprep.subr.bf16.mxu0 0
          %2572 = vmatpush1.bf16.msra.mxu0 %v1689
          %2573 = vmatprep.subr.bf16.mxu0 0
          %2574 = vmatpush1.bf16.msra.mxu0 %v1690
          %2575 = vmatprep.subr.bf16.mxu0 0
          %2576 = vmatpush1.bf16.msra.mxu0 %v1691
          %2577 = vmatprep.subr.bf16.mxu0 0
          %2578 = vmatpush1.bf16.msra.mxu0 %v1692
          %2579 = vmatprep.mubr.bf16.mxu0 %v2292
          %2580 = vmatmul.mubr.bf16.gmra.mrb[0].mxu0 %v2291
          %v2581 = vpop.f32.mrb[0].mxu0
          %v2582 = vadd.f32 %v1843, %v2581
          %v2583 = vpop.f32.mrb[0].mxu0
          %v2584 = vpop.f32.mrb[0].mxu0
          %v2585 = vadd.f32 %v1844, %v2584
          %v2586 = vpop.f32.mrb[0].mxu0
          %2587 = vmatprep.mubr.bf16.mxu0 %v2296
          %2588 = vmatmul.mubr.bf16.gmra.mrb[0].mxu0 %v2295
          %v2589 = vpop.f32.mrb[0].mxu0
          %v2590 = vadd.f32 %v1845, %v2589
          %v2591 = vpop.f32.mrb[0].mxu0
          %v2592 = vpop.f32.mrb[0].mxu0
          %v2593 = vadd.f32 %v1846, %v2592
          %v2594 = vpop.f32.mrb[0].mxu0
          %2595 = vmatprep.mubr.bf16.mxu0 %v2300
          %2596 = vmatmul.mubr.bf16.gmra.mrb[0].mxu0 %v2299
          %v2597 = vpop.f32.mrb[0].mxu0
          %v2598 = vadd.f32 %v1847, %v2597
          %v2599 = vpop.f32.mrb[0].mxu0
          %v2600 = vpop.f32.mrb[0].mxu0
          %v2601 = vadd.f32 %v1848, %v2600
          %v2602 = vpop.f32.mrb[0].mxu0
          %2603 = vmatprep.mubr.bf16.mxu0 %v2304
          %2604 = vmatmul.mubr.bf16.gmra.mrb[0].mxu0 %v2303
          %v2605 = vpop.f32.mrb[0].mxu0
          %v2606 = vadd.f32 %v1849, %v2605
          %v2607 = vpop.f32.mrb[0].mxu0
          %v2608 = vpop.f32.mrb[0].mxu0
          %v2609 = vadd.f32 %v1850, %v2608
          %v2610 = vpop.f32.mrb[0].mxu0
          %2611 = vmatprep.mubr.bf16.mxu0 %v2308
          %2612 = vmatmul.mubr.bf16.gmra.mrb[0].mxu0 %v2307
          %v2613 = vpop.f32.mrb[0].mxu0
          %v2614 = vadd.f32 %v1851, %v2613
          %v2615 = vpop.f32.mrb[0].mxu0
          %v2616 = vpop.f32.mrb[0].mxu0
          %v2617 = vadd.f32 %v1852, %v2616
          %v2618 = vpop.f32.mrb[0].mxu0
          %2619 = vmatprep.mubr.bf16.mxu0 %v2312
          %2620 = vmatmul.mubr.bf16.gmra.mrb[0].mxu0 %v2311
          %v2621 = vpop.f32.mrb[0].mxu0
          %v2622 = vadd.f32 %v1853, %v2621
          %v2623 = vpop.f32.mrb[0].mxu0
          %v2624 = vpop.f32.mrb[0].mxu0
          %v2625 = vadd.f32 %v1854, %v2624
          %v2626 = vpop.f32.mrb[0].mxu0
          %2627 = vmatprep.mubr.bf16.mxu0 %v2316
          %2628 = vmatmul.mubr.bf16.gmra.mrb[0].mxu0 %v2315
          %v2629 = vpop.f32.mrb[0].mxu0
          %v2630 = vadd.f32 %v1855, %v2629
          %v2631 = vpop.f32.mrb[0].mxu0
          %v2632 = vpop.f32.mrb[0].mxu0
          %v2633 = vadd.f32 %v1856, %v2632
          %v2634 = vpop.f32.mrb[0].mxu0
          %2635 = vmatprep.mubr.bf16.mxu0 %v2320
          %2636 = vmatmul.mubr.bf16.gmra.mrb[0].mxu0 %v2319
          %v2637 = vpop.f32.mrb[0].mxu0
          %v2638 = vadd.f32 %v1857, %v2637
          %v2639 = vpop.f32.mrb[0].mxu0
          %v2640 = vpop.f32.mrb[0].mxu0
          %v2641 = vadd.f32 %v1858, %v2640
          %v2642 = vpop.f32.mrb[0].mxu0
          %2643 = vmatprep.mubr.bf16.mxu0 %v2324
          %2644 = vmatmul.mubr.bf16.gmra.mrb[0].mxu0 %v2323
          %v2645 = vpop.f32.mrb[0].mxu0
          %v2646 = vadd.f32 %v1859, %v2645
          %v2647 = vpop.f32.mrb[0].mxu0
          %v2648 = vpop.f32.mrb[0].mxu0
          %v2649 = vadd.f32 %v1860, %v2648
          %v2650 = vpop.f32.mrb[0].mxu0
          %2651 = vmatprep.mubr.bf16.mxu0 %v2328
          %2652 = vmatmul.mubr.bf16.gmra.mrb[0].mxu0 %v2327
          %v2653 = vpop.f32.mrb[0].mxu0
          %v2654 = vadd.f32 %v1861, %v2653
          %v2655 = vpop.f32.mrb[0].mxu0
          %v2656 = vpop.f32.mrb[0].mxu0
          %v2657 = vadd.f32 %v1862, %v2656
          %v2658 = vpop.f32.mrb[0].mxu0
          %2659 = vmatprep.mubr.bf16.mxu0 %v2332
          %2660 = vmatmul.mubr.bf16.gmra.mrb[0].mxu0 %v2331
          %v2661 = vpop.f32.mrb[0].mxu0
          %v2662 = vadd.f32 %v1863, %v2661
          %v2663 = vpop.f32.mrb[0].mxu0
          %v2664 = vpop.f32.mrb[0].mxu0
          %v2665 = vadd.f32 %v1864, %v2664
          %v2666 = vpop.f32.mrb[0].mxu0
          %2667 = vmatprep.mubr.bf16.mxu0 %v2336
          %2668 = vmatmul.mubr.bf16.gmra.mrb[0].mxu0 %v2335
          %v2669 = vpop.f32.mrb[0].mxu0
          %v2670 = vadd.f32 %v1865, %v2669
          %v2671 = vpop.f32.mrb[0].mxu0
          %v2672 = vpop.f32.mrb[0].mxu0
          %v2673 = vadd.f32 %v1866, %v2672
          %v2674 = vpop.f32.mrb[0].mxu0
          %2675 = vmatprep.mubr.bf16.mxu0 %v2340
          %2676 = vmatmul.mubr.bf16.gmra.mrb[0].mxu0 %v2339
          %v2677 = vpop.f32.mrb[0].mxu0
          %v2678 = vadd.f32 %v1867, %v2677
          %v2679 = vpop.f32.mrb[0].mxu0
          %v2680 = vpop.f32.mrb[0].mxu0
          %v2681 = vadd.f32 %v1868, %v2680
          %v2682 = vpop.f32.mrb[0].mxu0
          %2683 = vmatprep.mubr.bf16.mxu0 %v2344
          %2684 = vmatmul.mubr.bf16.gmra.mrb[0].mxu0 %v2343
          %v2685 = vpop.f32.mrb[0].mxu0
          %v2686 = vadd.f32 %v1869, %v2685
          %v2687 = vpop.f32.mrb[0].mxu0
          %v2688 = vpop.f32.mrb[0].mxu0
          %v2689 = vadd.f32 %v1870, %v2688
          %v2690 = vpop.f32.mrb[0].mxu0
          %2691 = vmatprep.mubr.bf16.mxu0 %v2348
          %2692 = vmatmul.mubr.bf16.gmra.mrb[0].mxu0 %v2347
          %v2693 = vpop.f32.mrb[0].mxu0
          %v2694 = vadd.f32 %v1871, %v2693
          %v2695 = vpop.f32.mrb[0].mxu0
          %v2696 = vpop.f32.mrb[0].mxu0
          %v2697 = vadd.f32 %v1872, %v2696
          %v2698 = vpop.f32.mrb[0].mxu0
          %2699 = vmatprep.mubr.bf16.mxu0 %v2352
          %2700 = vmatmul.mubr.bf16.gmra.mrb[0].mxu0 %v2351
          %v2701 = vpop.f32.mrb[0].mxu0
          %v2702 = vadd.f32 %v1873, %v2701
          %v2703 = vpop.f32.mrb[0].mxu0
          %v2704 = vpop.f32.mrb[0].mxu0
          %v2705 = vadd.f32 %v1874, %v2704
          %v2706 = vpop.f32.mrb[0].mxu0
          %2707 = vmatprep.mubr.bf16.mxu0 %v2356
          %2708 = vmatmul.mubr.bf16.gmra.mrb[0].mxu0 %v2355
          %v2709 = vpop.f32.mrb[0].mxu0
          %v2710 = vadd.f32 %v1875, %v2709
          %v2711 = vpop.f32.mrb[0].mxu0
          %v2712 = vpop.f32.mrb[0].mxu0
          %v2713 = vadd.f32 %v1876, %v2712
          %v2714 = vpop.f32.mrb[0].mxu0
          %2715 = vmatprep.mubr.bf16.mxu0 %v2360
          %2716 = vmatmul.mubr.bf16.gmra.mrb[0].mxu0 %v2359
          %v2717 = vpop.f32.mrb[0].mxu0
          %v2718 = vadd.f32 %v1877, %v2717
          %v2719 = vpop.f32.mrb[0].mxu0
          %v2720 = vpop.f32.mrb[0].mxu0
          %v2721 = vadd.f32 %v1878, %v2720
          %v2722 = vpop.f32.mrb[0].mxu0
          %2723 = vmatprep.mubr.bf16.mxu0 %v2364
          %2724 = vmatmul.mubr.bf16.gmra.mrb[0].mxu0 %v2363
          %v2725 = vpop.f32.mrb[0].mxu0
          %v2726 = vadd.f32 %v1879, %v2725
          %v2727 = vpop.f32.mrb[0].mxu0
          %v2728 = vpop.f32.mrb[0].mxu0
          %v2729 = vadd.f32 %v1880, %v2728
          %v2730 = vpop.f32.mrb[0].mxu0
          %2731 = vmatprep.mubr.bf16.mxu0 %v2368
          %2732 = vmatmul.mubr.bf16.gmra.mrb[0].mxu0 %v2367
          %v2733 = vpop.f32.mrb[0].mxu0
          %v2734 = vadd.f32 %v1881, %v2733
          %v2735 = vpop.f32.mrb[0].mxu0
          %v2736 = vpop.f32.mrb[0].mxu0
          %v2737 = vadd.f32 %v1882, %v2736
          %v2738 = vpop.f32.mrb[0].mxu0
          %2739 = vmatprep.mubr.bf16.mxu0 %v2372
          %2740 = vmatmul.mubr.bf16.gmra.mrb[0].mxu0 %v2371
          %v2741 = vpop.f32.mrb[0].mxu0
          %v2742 = vadd.f32 %v1883, %v2741
          %v2743 = vpop.f32.mrb[0].mxu0
          %v2744 = vpop.f32.mrb[0].mxu0
          %v2745 = vadd.f32 %v1884, %v2744
          %v2746 = vpop.f32.mrb[0].mxu0
          %2747 = vmatprep.mubr.bf16.mxu0 %v2376
          %2748 = vmatmul.mubr.bf16.gmra.mrb[0].mxu0 %v2375
          %v2749 = vpop.f32.mrb[0].mxu0
          %v2750 = vadd.f32 %v1885, %v2749
          %v2751 = vpop.f32.mrb[0].mxu0
          %v2752 = vpop.f32.mrb[0].mxu0
          %v2753 = vadd.f32 %v1886, %v2752
          %v2754 = vpop.f32.mrb[0].mxu0
          %2755 = vmatprep.mubr.bf16.mxu0 %v2380
          %2756 = vmatmul.mubr.bf16.gmra.mrb[0].mxu0 %v2379
          %v2757 = vpop.f32.mrb[0].mxu0
          %v2758 = vadd.f32 %v1887, %v2757
          %v2759 = vpop.f32.mrb[0].mxu0
          %v2760 = vpop.f32.mrb[0].mxu0
          %v2761 = vadd.f32 %v1888, %v2760
          %v2762 = vpop.f32.mrb[0].mxu0
          %2763 = vmatprep.mubr.bf16.mxu0 %v2384
          %2764 = vmatmul.mubr.bf16.gmra.mrb[0].mxu0 %v2383
          %v2765 = vpop.f32.mrb[0].mxu0
          %v2766 = vadd.f32 %v1889, %v2765
          %v2767 = vpop.f32.mrb[0].mxu0
          %v2768 = vpop.f32.mrb[0].mxu0
          %v2769 = vadd.f32 %v1890, %v2768
          %v2770 = vpop.f32.mrb[0].mxu0
          %2771 = vmatprep.mubr.bf16.mxu0 %v2388
          %2772 = vmatmul.mubr.bf16.gmra.mrb[0].mxu0 %v2387
          %v2773 = vpop.f32.mrb[0].mxu0
          %v2774 = vadd.f32 %v1891, %v2773
          %v2775 = vpop.f32.mrb[0].mxu0
          %v2776 = vpop.f32.mrb[0].mxu0
          %v2777 = vadd.f32 %v1892, %v2776
          %v2778 = vpop.f32.mrb[0].mxu0
          %2779 = vmatprep.mubr.bf16.mxu0 %v2392
          %2780 = vmatmul.mubr.bf16.gmra.mrb[0].mxu0 %v2391
          %v2781 = vpop.f32.mrb[0].mxu0
          %v2782 = vadd.f32 %v1893, %v2781
          %v2783 = vpop.f32.mrb[0].mxu0
          %v2784 = vpop.f32.mrb[0].mxu0
          %v2785 = vadd.f32 %v1894, %v2784
          %v2786 = vpop.f32.mrb[0].mxu0
          %2787 = vmatprep.mubr.bf16.mxu0 %v2396
          %2788 = vmatmul.mubr.bf16.gmra.mrb[0].mxu0 %v2395
          %v2789 = vpop.f32.mrb[0].mxu0
          %v2790 = vadd.f32 %v1895, %v2789
          %v2791 = vpop.f32.mrb[0].mxu0
          %v2792 = vpop.f32.mrb[0].mxu0
          %v2793 = vadd.f32 %v1896, %v2792
          %v2794 = vpop.f32.mrb[0].mxu0
          %2795 = vmatprep.mubr.bf16.mxu0 %v2400
          %2796 = vmatmul.mubr.bf16.gmra.mrb[0].mxu0 %v2399
          %v2797 = vpop.f32.mrb[0].mxu0
          %v2798 = vadd.f32 %v1897, %v2797
          %v2799 = vpop.f32.mrb[0].mxu0
          %v2800 = vpop.f32.mrb[0].mxu0
          %v2801 = vadd.f32 %v1898, %v2800
          %v2802 = vpop.f32.mrb[0].mxu0
          %2803 = vmatprep.mubr.bf16.mxu0 %v2404
          %2804 = vmatmul.mubr.bf16.gmra.mrb[0].mxu0 %v2403
          %v2805 = vpop.f32.mrb[0].mxu0
          %v2806 = vadd.f32 %v1899, %v2805
          %v2807 = vpop.f32.mrb[0].mxu0
          %v2808 = vpop.f32.mrb[0].mxu0
          %v2809 = vadd.f32 %v1900, %v2808
          %v2810 = vpop.f32.mrb[0].mxu0
          %2811 = vmatprep.mubr.bf16.mxu0 %v2408
          %2812 = vmatmul.mubr.bf16.gmra.mrb[0].mxu0 %v2407
          %v2813 = vpop.f32.mrb[0].mxu0
          %v2814 = vadd.f32 %v1901, %v2813
          %v2815 = vpop.f32.mrb[0].mxu0
          %v2816 = vpop.f32.mrb[0].mxu0
          %v2817 = vadd.f32 %v1902, %v2816
          %v2818 = vpop.f32.mrb[0].mxu0
          %2819 = vmatprep.mubr.bf16.mxu0 %v2412
          %2820 = vmatmul.mubr.bf16.gmra.mrb[0].mxu0 %v2411
          %v2821 = vpop.f32.mrb[0].mxu0
          %v2822 = vadd.f32 %v1903, %v2821
          %v2823 = vpop.f32.mrb[0].mxu0
          %v2824 = vpop.f32.mrb[0].mxu0
          %v2825 = vadd.f32 %v1904, %v2824
          %v2826 = vpop.f32.mrb[0].mxu0
          %2827 = vmatprep.mubr.bf16.mxu0 %v2416
          %2828 = vmatmul.mubr.bf16.gmra.mrb[0].mxu0 %v2415
          %v2829 = vpop.f32.mrb[0].mxu0
          %v2830 = vadd.f32 %v1905, %v2829
          %v2831 = vpop.f32.mrb[0].mxu0
          %v2832 = vpop.f32.mrb[0].mxu0
          %v2833 = vadd.f32 %v1906, %v2832
          %v2834 = vpop.f32.mrb[0].mxu0
          %2835 = vdwg.mxu0
          %2836 = vmatprep.subr.bf16.mxu0 0
          %2837 = vmatpush1.bf16.msra.mxu0 %v1693
          %2838 = vmatprep.subr.bf16.mxu0 0
          %2839 = vmatpush1.bf16.msra.mxu0 %v1694
          %2840 = vmatprep.subr.bf16.mxu0 0
          %2841 = vmatpush1.bf16.msra.mxu0 %v1695
          %2842 = vmatprep.subr.bf16.mxu0 0
          %2843 = vmatpush1.bf16.msra.mxu0 %v1696
          %2844 = vmatprep.subr.bf16.mxu0 0
          %2845 = vmatpush1.bf16.msra.mxu0 %v1697
          %2846 = vmatprep.subr.bf16.mxu0 0
          %2847 = vmatpush1.bf16.msra.mxu0 %v1698
          %2848 = vmatprep.subr.bf16.mxu0 0
          %2849 = vmatpush1.bf16.msra.mxu0 %v1699
          %2850 = vmatprep.subr.bf16.mxu0 0
          %2851 = vmatpush1.bf16.msra.mxu0 %v1700
          %2852 = vmatprep.subr.bf16.mxu0 0
          %2853 = vmatpush1.bf16.msra.mxu0 %v1701
          %2854 = vmatprep.subr.bf16.mxu0 0
          %2855 = vmatpush1.bf16.msra.mxu0 %v1702
          %2856 = vmatprep.subr.bf16.mxu0 0
          %2857 = vmatpush1.bf16.msra.mxu0 %v1703
          %2858 = vmatprep.subr.bf16.mxu0 0
          %2859 = vmatpush1.bf16.msra.mxu0 %v1704
          %2860 = vmatprep.subr.bf16.mxu0 0
          %2861 = vmatpush1.bf16.msra.mxu0 %v1705
          %2862 = vmatprep.subr.bf16.mxu0 0
          %2863 = vmatpush1.bf16.msra.mxu0 %v1706
          %2864 = vmatprep.subr.bf16.mxu0 0
          %2865 = vmatpush1.bf16.msra.mxu0 %v1707
          %2866 = vmatprep.subr.bf16.mxu0 0
          %2867 = vmatpush1.bf16.msra.mxu0 %v1708
          %2868 = vmatprep.mubr.bf16.mxu0 %v2294
          %2869 = vmatmul.mubr.bf16.gmra.mrb[0].mxu0 %v2293
          %v2870 = vpop.f32.mrb[0].mxu0
          %v2871 = vadd.f32 %v2582, %v2870
          %v2872 = vpop.f32.mrb[0].mxu0
          %v2873 = vpop.f32.mrb[0].mxu0
          %v2874 = vadd.f32 %v2585, %v2873
          %v2875 = vpop.f32.mrb[0].mxu0
          %2876 = vmatprep.mubr.bf16.mxu0 %v2298
          %2877 = vmatmul.mubr.bf16.gmra.mrb[0].mxu0 %v2297
          %v2878 = vpop.f32.mrb[0].mxu0
          %v2879 = vadd.f32 %v2590, %v2878
          %v2880 = vpop.f32.mrb[0].mxu0
          %v2881 = vpop.f32.mrb[0].mxu0
          %v2882 = vadd.f32 %v2593, %v2881
          %v2883 = vpop.f32.mrb[0].mxu0
          %2884 = vmatprep.mubr.bf16.mxu0 %v2302
          %2885 = vmatmul.mubr.bf16.gmra.mrb[0].mxu0 %v2301
          %v2886 = vpop.f32.mrb[0].mxu0
          %v2887 = vadd.f32 %v2598, %v2886
          %v2888 = vpop.f32.mrb[0].mxu0
          %v2889 = vpop.f32.mrb[0].mxu0
          %v2890 = vadd.f32 %v2601, %v2889
          %v2891 = vpop.f32.mrb[0].mxu0
          %2892 = vmatprep.mubr.bf16.mxu0 %v2306
          %2893 = vmatmul.mubr.bf16.gmra.mrb[0].mxu0 %v2305
          %v2894 = vpop.f32.mrb[0].mxu0
          %v2895 = vadd.f32 %v2606, %v2894
          %v2896 = vpop.f32.mrb[0].mxu0
          %v2897 = vpop.f32.mrb[0].mxu0
          %v2898 = vadd.f32 %v2609, %v2897
          %v2899 = vpop.f32.mrb[0].mxu0
          %2900 = vmatprep.mubr.bf16.mxu0 %v2310
          %2901 = vmatmul.mubr.bf16.gmra.mrb[0].mxu0 %v2309
          %v2902 = vpop.f32.mrb[0].mxu0
          %v2903 = vadd.f32 %v2614, %v2902
          %v2904 = vpop.f32.mrb[0].mxu0
          %v2905 = vpop.f32.mrb[0].mxu0
          %v2906 = vadd.f32 %v2617, %v2905
          %v2907 = vpop.f32.mrb[0].mxu0
          %2908 = vmatprep.mubr.bf16.mxu0 %v2314
          %2909 = vmatmul.mubr.bf16.gmra.mrb[0].mxu0 %v2313
          %v2910 = vpop.f32.mrb[0].mxu0
          %v2911 = vadd.f32 %v2622, %v2910
          %v2912 = vpop.f32.mrb[0].mxu0
          %v2913 = vpop.f32.mrb[0].mxu0
          %v2914 = vadd.f32 %v2625, %v2913
          %v2915 = vpop.f32.mrb[0].mxu0
          %2916 = vmatprep.mubr.bf16.mxu0 %v2318
          %2917 = vmatmul.mubr.bf16.gmra.mrb[0].mxu0 %v2317
          %v2918 = vpop.f32.mrb[0].mxu0
          %v2919 = vadd.f32 %v2630, %v2918
          %v2920 = vpop.f32.mrb[0].mxu0
          %v2921 = vpop.f32.mrb[0].mxu0
          %v2922 = vadd.f32 %v2633, %v2921
          %v2923 = vpop.f32.mrb[0].mxu0
          %2924 = vmatprep.mubr.bf16.mxu0 %v2322
          %2925 = vmatmul.mubr.bf16.gmra.mrb[0].mxu0 %v2321
          %v2926 = vpop.f32.mrb[0].mxu0
          %v2927 = vadd.f32 %v2638, %v2926
          %v2928 = vpop.f32.mrb[0].mxu0
          %v2929 = vpop.f32.mrb[0].mxu0
          %v2930 = vadd.f32 %v2641, %v2929
          %v2931 = vpop.f32.mrb[0].mxu0
          %2932 = vmatprep.mubr.bf16.mxu0 %v2326
          %2933 = vmatmul.mubr.bf16.gmra.mrb[0].mxu0 %v2325
          %v2934 = vpop.f32.mrb[0].mxu0
          %v2935 = vadd.f32 %v2646, %v2934
          %v2936 = vpop.f32.mrb[0].mxu0
          %v2937 = vpop.f32.mrb[0].mxu0
          %v2938 = vadd.f32 %v2649, %v2937
          %v2939 = vpop.f32.mrb[0].mxu0
          %2940 = vmatprep.mubr.bf16.mxu0 %v2330
          %2941 = vmatmul.mubr.bf16.gmra.mrb[0].mxu0 %v2329
          %v2942 = vpop.f32.mrb[0].mxu0
          %v2943 = vadd.f32 %v2654, %v2942
          %v2944 = vpop.f32.mrb[0].mxu0
          %v2945 = vpop.f32.mrb[0].mxu0
          %v2946 = vadd.f32 %v2657, %v2945
          %v2947 = vpop.f32.mrb[0].mxu0
          %2948 = vmatprep.mubr.bf16.mxu0 %v2334
          %2949 = vmatmul.mubr.bf16.gmra.mrb[0].mxu0 %v2333
          %v2950 = vpop.f32.mrb[0].mxu0
          %v2951 = vadd.f32 %v2662, %v2950
          %v2952 = vpop.f32.mrb[0].mxu0
          %v2953 = vpop.f32.mrb[0].mxu0
          %v2954 = vadd.f32 %v2665, %v2953
          %v2955 = vpop.f32.mrb[0].mxu0
          %2956 = vmatprep.mubr.bf16.mxu0 %v2338
          %2957 = vmatmul.mubr.bf16.gmra.mrb[0].mxu0 %v2337
          %v2958 = vpop.f32.mrb[0].mxu0
          %v2959 = vadd.f32 %v2670, %v2958
          %v2960 = vpop.f32.mrb[0].mxu0
          %v2961 = vpop.f32.mrb[0].mxu0
          %v2962 = vadd.f32 %v2673, %v2961
          %v2963 = vpop.f32.mrb[0].mxu0
          %2964 = vmatprep.mubr.bf16.mxu0 %v2342
          %2965 = vmatmul.mubr.bf16.gmra.mrb[0].mxu0 %v2341
          %v2966 = vpop.f32.mrb[0].mxu0
          %v2967 = vadd.f32 %v2678, %v2966
          %v2968 = vpop.f32.mrb[0].mxu0
          %v2969 = vpop.f32.mrb[0].mxu0
          %v2970 = vadd.f32 %v2681, %v2969
          %v2971 = vpop.f32.mrb[0].mxu0
          %2972 = vmatprep.mubr.bf16.mxu0 %v2346
          %2973 = vmatmul.mubr.bf16.gmra.mrb[0].mxu0 %v2345
          %v2974 = vpop.f32.mrb[0].mxu0
          %v2975 = vadd.f32 %v2686, %v2974
          %v2976 = vpop.f32.mrb[0].mxu0
          %v2977 = vpop.f32.mrb[0].mxu0
          %v2978 = vadd.f32 %v2689, %v2977
          %v2979 = vpop.f32.mrb[0].mxu0
          %2980 = vmatprep.mubr.bf16.mxu0 %v2350
          %2981 = vmatmul.mubr.bf16.gmra.mrb[0].mxu0 %v2349
          %v2982 = vpop.f32.mrb[0].mxu0
          %v2983 = vadd.f32 %v2694, %v2982
          %v2984 = vpop.f32.mrb[0].mxu0
          %v2985 = vpop.f32.mrb[0].mxu0
          %v2986 = vadd.f32 %v2697, %v2985
          %v2987 = vpop.f32.mrb[0].mxu0
          %2988 = vmatprep.mubr.bf16.mxu0 %v2354
          %2989 = vmatmul.mubr.bf16.gmra.mrb[0].mxu0 %v2353
          %v2990 = vpop.f32.mrb[0].mxu0
          %v2991 = vadd.f32 %v2702, %v2990
          %v2992 = vpop.f32.mrb[0].mxu0
          %v2993 = vpop.f32.mrb[0].mxu0
          %v2994 = vadd.f32 %v2705, %v2993
          %v2995 = vpop.f32.mrb[0].mxu0
          %2996 = vmatprep.mubr.bf16.mxu0 %v2358
          %2997 = vmatmul.mubr.bf16.gmra.mrb[0].mxu0 %v2357
          %v2998 = vpop.f32.mrb[0].mxu0
          %v2999 = vadd.f32 %v2710, %v2998
          %v3000 = vpop.f32.mrb[0].mxu0
          %v3001 = vpop.f32.mrb[0].mxu0
          %v3002 = vadd.f32 %v2713, %v3001
          %v3003 = vpop.f32.mrb[0].mxu0
          %3004 = vmatprep.mubr.bf16.mxu0 %v2362
          %3005 = vmatmul.mubr.bf16.gmra.mrb[0].mxu0 %v2361
          %v3006 = vpop.f32.mrb[0].mxu0
          %v3007 = vadd.f32 %v2718, %v3006
          %v3008 = vpop.f32.mrb[0].mxu0
          %v3009 = vpop.f32.mrb[0].mxu0
          %v3010 = vadd.f32 %v2721, %v3009
          %v3011 = vpop.f32.mrb[0].mxu0
          %3012 = vmatprep.mubr.bf16.mxu0 %v2366
          %3013 = vmatmul.mubr.bf16.gmra.mrb[0].mxu0 %v2365
          %v3014 = vpop.f32.mrb[0].mxu0
          %v3015 = vadd.f32 %v2726, %v3014
          %v3016 = vpop.f32.mrb[0].mxu0
          %v3017 = vpop.f32.mrb[0].mxu0
          %v3018 = vadd.f32 %v2729, %v3017
          %v3019 = vpop.f32.mrb[0].mxu0
          %3020 = vmatprep.mubr.bf16.mxu0 %v2370
          %3021 = vmatmul.mubr.bf16.gmra.mrb[0].mxu0 %v2369
          %v3022 = vpop.f32.mrb[0].mxu0
          %v3023 = vadd.f32 %v2734, %v3022
          %v3024 = vpop.f32.mrb[0].mxu0
          %v3025 = vpop.f32.mrb[0].mxu0
          %v3026 = vadd.f32 %v2737, %v3025
          %v3027 = vpop.f32.mrb[0].mxu0
          %3028 = vmatprep.mubr.bf16.mxu0 %v2374
          %3029 = vmatmul.mubr.bf16.gmra.mrb[0].mxu0 %v2373
          %v3030 = vpop.f32.mrb[0].mxu0
          %v3031 = vadd.f32 %v2742, %v3030
          %v3032 = vpop.f32.mrb[0].mxu0
          %v3033 = vpop.f32.mrb[0].mxu0
          %v3034 = vadd.f32 %v2745, %v3033
          %v3035 = vpop.f32.mrb[0].mxu0
          %3036 = vmatprep.mubr.bf16.mxu0 %v2378
          %3037 = vmatmul.mubr.bf16.gmra.mrb[0].mxu0 %v2377
          %v3038 = vpop.f32.mrb[0].mxu0
          %v3039 = vadd.f32 %v2750, %v3038
          %v3040 = vpop.f32.mrb[0].mxu0
          %v3041 = vpop.f32.mrb[0].mxu0
          %v3042 = vadd.f32 %v2753, %v3041
          %v3043 = vpop.f32.mrb[0].mxu0
          %3044 = vmatprep.mubr.bf16.mxu0 %v2382
          %3045 = vmatmul.mubr.bf16.gmra.mrb[0].mxu0 %v2381
          %v3046 = vpop.f32.mrb[0].mxu0
          %v3047 = vadd.f32 %v2758, %v3046
          %v3048 = vpop.f32.mrb[0].mxu0
          %v3049 = vpop.f32.mrb[0].mxu0
          %v3050 = vadd.f32 %v2761, %v3049
          %v3051 = vpop.f32.mrb[0].mxu0
          %3052 = vmatprep.mubr.bf16.mxu0 %v2386
          %3053 = vmatmul.mubr.bf16.gmra.mrb[0].mxu0 %v2385
          %v3054 = vpop.f32.mrb[0].mxu0
          %v3055 = vadd.f32 %v2766, %v3054
          %v3056 = vpop.f32.mrb[0].mxu0
          %v3057 = vpop.f32.mrb[0].mxu0
          %v3058 = vadd.f32 %v2769, %v3057
          %v3059 = vpop.f32.mrb[0].mxu0
          %3060 = vmatprep.mubr.bf16.mxu0 %v2390
          %3061 = vmatmul.mubr.bf16.gmra.mrb[0].mxu0 %v2389
          %v3062 = vpop.f32.mrb[0].mxu0
          %v3063 = vadd.f32 %v2774, %v3062
          %v3064 = vpop.f32.mrb[0].mxu0
          %v3065 = vpop.f32.mrb[0].mxu0
          %v3066 = vadd.f32 %v2777, %v3065
          %v3067 = vpop.f32.mrb[0].mxu0
          %3068 = vmatprep.mubr.bf16.mxu0 %v2394
          %3069 = vmatmul.mubr.bf16.gmra.mrb[0].mxu0 %v2393
          %v3070 = vpop.f32.mrb[0].mxu0
          %v3071 = vadd.f32 %v2782, %v3070
          %v3072 = vpop.f32.mrb[0].mxu0
          %v3073 = vpop.f32.mrb[0].mxu0
          %v3074 = vadd.f32 %v2785, %v3073
          %v3075 = vpop.f32.mrb[0].mxu0
          %3076 = vmatprep.mubr.bf16.mxu0 %v2398
          %3077 = vmatmul.mubr.bf16.gmra.mrb[0].mxu0 %v2397
          %v3078 = vpop.f32.mrb[0].mxu0
          %v3079 = vadd.f32 %v2790, %v3078
          %v3080 = vpop.f32.mrb[0].mxu0
          %v3081 = vpop.f32.mrb[0].mxu0
          %v3082 = vadd.f32 %v2793, %v3081
          %v3083 = vpop.f32.mrb[0].mxu0
          %3084 = vmatprep.mubr.bf16.mxu0 %v2402
          %3085 = vmatmul.mubr.bf16.gmra.mrb[0].mxu0 %v2401
          %v3086 = vpop.f32.mrb[0].mxu0
          %v3087 = vadd.f32 %v2798, %v3086
          %v3088 = vpop.f32.mrb[0].mxu0
          %v3089 = vpop.f32.mrb[0].mxu0
          %v3090 = vadd.f32 %v2801, %v3089
          %v3091 = vpop.f32.mrb[0].mxu0
          %3092 = vmatprep.mubr.bf16.mxu0 %v2406
          %3093 = vmatmul.mubr.bf16.gmra.mrb[0].mxu0 %v2405
          %v3094 = vpop.f32.mrb[0].mxu0
          %v3095 = vadd.f32 %v2806, %v3094
          %v3096 = vpop.f32.mrb[0].mxu0
          %v3097 = vpop.f32.mrb[0].mxu0
          %v3098 = vadd.f32 %v2809, %v3097
          %v3099 = vpop.f32.mrb[0].mxu0
          %3100 = vmatprep.mubr.bf16.mxu0 %v2410
          %3101 = vmatmul.mubr.bf16.gmra.mrb[0].mxu0 %v2409
          %v3102 = vpop.f32.mrb[0].mxu0
          %v3103 = vadd.f32 %v2814, %v3102
          %v3104 = vpop.f32.mrb[0].mxu0
          %v3105 = vpop.f32.mrb[0].mxu0
          %v3106 = vadd.f32 %v2817, %v3105
          %v3107 = vpop.f32.mrb[0].mxu0
          %3108 = vmatprep.mubr.bf16.mxu0 %v2414
          %3109 = vmatmul.mubr.bf16.gmra.mrb[0].mxu0 %v2413
          %v3110 = vpop.f32.mrb[0].mxu0
          %v3111 = vadd.f32 %v2822, %v3110
          %v3112 = vpop.f32.mrb[0].mxu0
          %v3113 = vpop.f32.mrb[0].mxu0
          %v3114 = vadd.f32 %v2825, %v3113
          %v3115 = vpop.f32.mrb[0].mxu0
          %3116 = vmatprep.mubr.bf16.mxu0 %v2418
          %3117 = vmatmul.mubr.bf16.gmra.mrb[0].mxu0 %v2417
          %v3118 = vpop.f32.mrb[0].mxu0
          %v3119 = vadd.f32 %v2830, %v3118
          %v3120 = vpop.f32.mrb[0].mxu0
          %v3121 = vpop.f32.mrb[0].mxu0
          %v3122 = vadd.f32 %v2833, %v3121
          %v3123 = vpop.f32.mrb[0].mxu0
          %3124 = vdwg.mxu0
          %v3125 = vpack.c.bf16 %v2874, %v2871
          %v3126 = vpack.c.bf16 %v2882, %v2879
          %v3127 = vpack.c.bf16 %v2890, %v2887
          %v3128 = vpack.c.bf16 %v2898, %v2895
          %v3129 = vpack.c.bf16 %v2906, %v2903
          %v3130 = vpack.c.bf16 %v2914, %v2911
          %v3131 = vpack.c.bf16 %v2922, %v2919
          %v3132 = vpack.c.bf16 %v2930, %v2927
          %v3133 = vpack.c.bf16 %v2938, %v2935
          %v3134 = vpack.c.bf16 %v2946, %v2943
          %v3135 = vpack.c.bf16 %v2954, %v2951
          %v3136 = vpack.c.bf16 %v2962, %v2959
          %v3137 = vpack.c.bf16 %v2970, %v2967
          %v3138 = vpack.c.bf16 %v2978, %v2975
          %v3139 = vpack.c.bf16 %v2986, %v2983
          %v3140 = vpack.c.bf16 %v2994, %v2991
          %v3141 = vpack.c.bf16 %v3002, %v2999
          %v3142 = vpack.c.bf16 %v3010, %v3007
          %v3143 = vpack.c.bf16 %v3018, %v3015
          %v3144 = vpack.c.bf16 %v3026, %v3023
          %v3145 = vpack.c.bf16 %v3034, %v3031
          %v3146 = vpack.c.bf16 %v3042, %v3039
          %v3147 = vpack.c.bf16 %v3050, %v3047
          %v3148 = vpack.c.bf16 %v3058, %v3055
          %v3149 = vpack.c.bf16 %v3066, %v3063
          %v3150 = vpack.c.bf16 %v3074, %v3071
          %v3151 = vpack.c.bf16 %v3082, %v3079
          %v3152 = vpack.c.bf16 %v3090, %v3087
          %v3153 = vpack.c.bf16 %v3098, %v3095
          %v3154 = vpack.c.bf16 %v3106, %v3103
          %v3155 = vpack.c.bf16 %v3114, %v3111
          %v3156 = vpack.c.bf16 %v3122, %v3119
          %s3157 = sshra.s32 %s301, 4
          %s3158 = sand.u32 %s301, 15
          %s3159 = smul.u32 %s1673, 32
          %s3160 = sadd.s32 %s3157, %s3159
          %s3161 = smul.addr %s3160, 8
          %s3162 = scalar_lea.vmem [#allocation2], %s3161
          %3163 = vst [vmem:[%s3162] sm:$0xff] %v3125
          %3164 = vst [vmem:[%s3162 + $0x8] sm:$0xff] %v3126
          %3165 = vst [vmem:[%s3162 + $0x10] sm:$0xff] %v3127
          %3166 = vst [vmem:[%s3162 + $0x18] sm:$0xff] %v3128
          %3167 = vst [vmem:[%s3162 + $0x20] sm:$0xff] %v3129
          %3168 = vst [vmem:[%s3162 + $0x28] sm:$0xff] %v3130
          %3169 = vst [vmem:[%s3162 + $0x30] sm:$0xff] %v3131
          %3170 = vst [vmem:[%s3162 + $0x38] sm:$0xff] %v3132
          %3171 = vst [vmem:[%s3162 + $0x40] sm:$0xff] %v3133
          %3172 = vst [vmem:[%s3162 + $0x48] sm:$0xff] %v3134
          %3173 = vst [vmem:[%s3162 + $0x50] sm:$0xff] %v3135
          %3174 = vst [vmem:[%s3162 + $0x58] sm:$0xff] %v3136
          %3175 = vst [vmem:[%s3162 + $0x60] sm:$0xff] %v3137
          %3176 = vst [vmem:[%s3162 + $0x68] sm:$0xff] %v3138
          %3177 = vst [vmem:[%s3162 + $0x70] sm:$0xff] %v3139
          %3178 = vst [vmem:[%s3162 + $0x78] sm:$0xff] %v3140
          %3179 = vst [vmem:[%s3162 + $0x80] sm:$0xff] %v3141
          %3180 = vst [vmem:[%s3162 + $0x88] sm:$0xff] %v3142
          %3181 = vst [vmem:[%s3162 + $0x90] sm:$0xff] %v3143
          %3182 = vst [vmem:[%s3162 + $0x98] sm:$0xff] %v3144
          %3183 = vst [vmem:[%s3162 + $0xa0] sm:$0xff] %v3145
          %3184 = vst [vmem:[%s3162 + $0xa8] sm:$0xff] %v3146
          %3185 = vst [vmem:[%s3162 + $0xb0] sm:$0xff] %v3147
          %3186 = vst [vmem:[%s3162 + $0xb8] sm:$0xff] %v3148
          %3187 = vst [vmem:[%s3162 + $0xc0] sm:$0xff] %v3149
          %3188 = vst [vmem:[%s3162 + $0xc8] sm:$0xff] %v3150
          %3189 = vst [vmem:[%s3162 + $0xd0] sm:$0xff] %v3151
          %3190 = vst [vmem:[%s3162 + $0xd8] sm:$0xff] %v3152
          %3191 = vst [vmem:[%s3162 + $0xe0] sm:$0xff] %v3153
          %3192 = vst [vmem:[%s3162 + $0xe8] sm:$0xff] %v3154
          %3193 = vst [vmem:[%s3162 + $0xf0] sm:$0xff] %v3155
          %3194 = vst [vmem:[%s3162 + $0xf8] sm:$0xff] %v3156
          %p3195 = scmp.eq.s32.totalorder %s25, 4
          // Predicated region
          $region57: #{tpu_custom_call.1} parent=55 // pred_check
            %p3196 = pneg %p3195
          $region58: #{tpu_custom_call.1} parent=55 // pred_check_branch
            %3198 = sbr.rel (%p3196) target = $region60
          $region59: #{tpu_custom_call.1} parent=55 // pred_region
            %v3199 = vlaneseq
            %v3200 = vand.u32 %v3199, 127
            %vm3201 = vcmp.lt.s32.totalorder %v3200, 16
            %v3202 = vsel %vm3201, %v2871, -1e+30
            %v3203 = vsel %vm3201, %v2874, -1e+30
            %v3204 = vsel %vm3201, %v2879, -1e+30
            %v3205 = vsel %vm3201, %v2882, -1e+30
            %v3206 = vsel %vm3201, %v2887, -1e+30
            %v3207 = vsel %vm3201, %v2890, -1e+30
            %v3208 = vsel %vm3201, %v2895, -1e+30
            %v3209 = vsel %vm3201, %v2898, -1e+30
            %v3210 = vsel %vm3201, %v2903, -1e+30
            %v3211 = vsel %vm3201, %v2906, -1e+30
            %v3212 = vsel %vm3201, %v2911, -1e+30
            %v3213 = vsel %vm3201, %v2914, -1e+30
            %v3214 = vsel %vm3201, %v2919, -1e+30
            %v3215 = vsel %vm3201, %v2922, -1e+30
            %v3216 = vsel %vm3201, %v2927, -1e+30
            %v3217 = vsel %vm3201, %v2930, -1e+30
            %v3218 = vsel %vm3201, %v2935, -1e+30
            %v3219 = vsel %vm3201, %v2938, -1e+30
            %v3220 = vsel %vm3201, %v2943, -1e+30
            %v3221 = vsel %vm3201, %v2946, -1e+30
            %v3222 = vsel %vm3201, %v2951, -1e+30
            %v3223 = vsel %vm3201, %v2954, -1e+30
            %v3224 = vsel %vm3201, %v2959, -1e+30
            %v3225 = vsel %vm3201, %v2962, -1e+30
            %v3226 = vsel %vm3201, %v2967, -1e+30
            %v3227 = vsel %vm3201, %v2970, -1e+30
            %v3228 = vsel %vm3201, %v2975, -1e+30
            %v3229 = vsel %vm3201, %v2978, -1e+30
            %v3230 = vsel %vm3201, %v2983, -1e+30
            %v3231 = vsel %vm3201, %v2986, -1e+30
            %v3232 = vsel %vm3201, %v2991, -1e+30
            %v3233 = vsel %vm3201, %v2994, -1e+30
            %v3234 = vsel %vm3201, %v2999, -1e+30
            %v3235 = vsel %vm3201, %v3002, -1e+30
            %v3236 = vsel %vm3201, %v3007, -1e+30
            %v3237 = vsel %vm3201, %v3010, -1e+30
            %v3238 = vsel %vm3201, %v3015, -1e+30
            %v3239 = vsel %vm3201, %v3018, -1e+30
            %v3240 = vsel %vm3201, %v3023, -1e+30
            %v3241 = vsel %vm3201, %v3026, -1e+30
            %v3242 = vsel %vm3201, %v3031, -1e+30
            %v3243 = vsel %vm3201, %v3034, -1e+30
            %v3244 = vsel %vm3201, %v3039, -1e+30
            %v3245 = vsel %vm3201, %v3042, -1e+30
            %v3246 = vsel %vm3201, %v3047, -1e+30
            %v3247 = vsel %vm3201, %v3050, -1e+30
            %v3248 = vsel %vm3201, %v3055, -1e+30
            %v3249 = vsel %vm3201, %v3058, -1e+30
            %v3250 = vsel %vm3201, %v3063, -1e+30
            %v3251 = vsel %vm3201, %v3066, -1e+30
            %v3252 = vsel %vm3201, %v3071, -1e+30
            %v3253 = vsel %vm3201, %v3074, -1e+30
            %v3254 = vsel %vm3201, %v3079, -1e+30
            %v3255 = vsel %vm3201, %v3082, -1e+30
            %v3256 = vsel %vm3201, %v3087, -1e+30
            %v3257 = vsel %vm3201, %v3090, -1e+30
            %v3258 = vsel %vm3201, %v3095, -1e+30
            %v3259 = vsel %vm3201, %v3098, -1e+30
            %v3260 = vsel %vm3201, %v3103, -1e+30
            %v3261 = vsel %vm3201, %v3106, -1e+30
            %v3262 = vsel %vm3201, %v3111, -1e+30
            %v3263 = vsel %vm3201, %v3114, -1e+30
            %v3264 = vsel %vm3201, %v3119, -1e+30
            %v3265 = vsel %vm3201, %v3122, -1e+30
            %3266 = vmax.xlane.f32.xlu0 %v3202
            %v3267 = vpop.xlane.xlu0 %3266
            %3268 = vmax.xlane.f32.xlu0 %v3203
            %v3269 = vpop.xlane.xlu0 %3268
            %3270 = vmax.xlane.f32.xlu0 %v3204
            %v3271 = vpop.xlane.xlu0 %3270
            %3272 = vmax.xlane.f32.xlu0 %v3205
            %v3273 = vpop.xlane.xlu0 %3272
            %3274 = vmax.xlane.f32.xlu0 %v3206
            %v3275 = vpop.xlane.xlu0 %3274
            %3276 = vmax.xlane.f32.xlu0 %v3207
            %v3277 = vpop.xlane.xlu0 %3276
            %3278 = vmax.xlane.f32.xlu0 %v3208
            %v3279 = vpop.xlane.xlu0 %3278
            %3280 = vmax.xlane.f32.xlu0 %v3209
            %v3281 = vpop.xlane.xlu0 %3280
            %3282 = vmax.xlane.f32.xlu0 %v3210
            %v3283 = vpop.xlane.xlu0 %3282
            %3284 = vmax.xlane.f32.xlu0 %v3211
            %v3285 = vpop.xlane.xlu0 %3284
            %3286 = vmax.xlane.f32.xlu0 %v3212
            %v3287 = vpop.xlane.xlu0 %3286
            %3288 = vmax.xlane.f32.xlu0 %v3213
            %v3289 = vpop.xlane.xlu0 %3288
            %3290 = vmax.xlane.f32.xlu0 %v3214
            %v3291 = vpop.xlane.xlu0 %3290
            %3292 = vmax.xlane.f32.xlu0 %v3215
            %v3293 = vpop.xlane.xlu0 %3292
            %3294 = vmax.xlane.f32.xlu0 %v3216
            %v3295 = vpop.xlane.xlu0 %3294
            %3296 = vmax.xlane.f32.xlu0 %v3217
            %v3297 = vpop.xlane.xlu0 %3296
            %3298 = vmax.xlane.f32.xlu0 %v3218
            %v3299 = vpop.xlane.xlu0 %3298
            %3300 = vmax.xlane.f32.xlu0 %v3219
            %v3301 = vpop.xlane.xlu0 %3300
            %3302 = vmax.xlane.f32.xlu0 %v3220
            %v3303 = vpop.xlane.xlu0 %3302
            %3304 = vmax.xlane.f32.xlu0 %v3221
            %v3305 = vpop.xlane.xlu0 %3304
            %3306 = vmax.xlane.f32.xlu0 %v3222
            %v3307 = vpop.xlane.xlu0 %3306
            %3308 = vmax.xlane.f32.xlu0 %v3223
            %v3309 = vpop.xlane.xlu0 %3308
            %3310 = vmax.xlane.f32.xlu0 %v3224
            %v3311 = vpop.xlane.xlu0 %3310
            %3312 = vmax.xlane.f32.xlu0 %v3225
            %v3313 = vpop.xlane.xlu0 %3312
            %3314 = vmax.xlane.f32.xlu0 %v3226
            %v3315 = vpop.xlane.xlu0 %3314
            %3316 = vmax.xlane.f32.xlu0 %v3227
            %v3317 = vpop.xlane.xlu0 %3316
            %3318 = vmax.xlane.f32.xlu0 %v3228
            %v3319 = vpop.xlane.xlu0 %3318
            %3320 = vmax.xlane.f32.xlu0 %v3229
            %v3321 = vpop.xlane.xlu0 %3320
            %3322 = vmax.xlane.f32.xlu0 %v3230
            %v3323 = vpop.xlane.xlu0 %3322
            %3324 = vmax.xlane.f32.xlu0 %v3231
            %v3325 = vpop.xlane.xlu0 %3324
            %3326 = vmax.xlane.f32.xlu0 %v3232
            %v3327 = vpop.xlane.xlu0 %3326
            %3328 = vmax.xlane.f32.xlu0 %v3233
            %v3329 = vpop.xlane.xlu0 %3328
            %3330 = vmax.xlane.f32.xlu0 %v3234
            %v3331 = vpop.xlane.xlu0 %3330
            %3332 = vmax.xlane.f32.xlu0 %v3235
            %v3333 = vpop.xlane.xlu0 %3332
            %3334 = vmax.xlane.f32.xlu0 %v3236
            %v3335 = vpop.xlane.xlu0 %3334
            %3336 = vmax.xlane.f32.xlu0 %v3237
            %v3337 = vpop.xlane.xlu0 %3336
            %3338 = vmax.xlane.f32.xlu0 %v3238
            %v3339 = vpop.xlane.xlu0 %3338
            %3340 = vmax.xlane.f32.xlu0 %v3239
            %v3341 = vpop.xlane.xlu0 %3340
            %3342 = vmax.xlane.f32.xlu0 %v3240
            %v3343 = vpop.xlane.xlu0 %3342
            %3344 = vmax.xlane.f32.xlu0 %v3241
            %v3345 = vpop.xlane.xlu0 %3344
            %3346 = vmax.xlane.f32.xlu0 %v3242
            %v3347 = vpop.xlane.xlu0 %3346
            %3348 = vmax.xlane.f32.xlu0 %v3243
            %v3349 = vpop.xlane.xlu0 %3348
            %3350 = vmax.xlane.f32.xlu0 %v3244
            %v3351 = vpop.xlane.xlu0 %3350
            %3352 = vmax.xlane.f32.xlu0 %v3245
            %v3353 = vpop.xlane.xlu0 %3352
            %3354 = vmax.xlane.f32.xlu0 %v3246
            %v3355 = vpop.xlane.xlu0 %3354
            %3356 = vmax.xlane.f32.xlu0 %v3247
            %v3357 = vpop.xlane.xlu0 %3356
            %3358 = vmax.xlane.f32.xlu0 %v3248
            %v3359 = vpop.xlane.xlu0 %3358
            %3360 = vmax.xlane.f32.xlu0 %v3249
            %v3361 = vpop.xlane.xlu0 %3360
            %3362 = vmax.xlane.f32.xlu0 %v3250
            %v3363 = vpop.xlane.xlu0 %3362
            %3364 = vmax.xlane.f32.xlu0 %v3251
            %v3365 = vpop.xlane.xlu0 %3364
            %3366 = vmax.xlane.f32.xlu0 %v3252
            %v3367 = vpop.xlane.xlu0 %3366
            %3368 = vmax.xlane.f32.xlu0 %v3253
            %v3369 = vpop.xlane.xlu0 %3368
            %3370 = vmax.xlane.f32.xlu0 %v3254
            %v3371 = vpop.xlane.xlu0 %3370
            %3372 = vmax.xlane.f32.xlu0 %v3255
            %v3373 = vpop.xlane.xlu0 %3372
            %3374 = vmax.xlane.f32.xlu0 %v3256
            %v3375 = vpop.xlane.xlu0 %3374
            %3376 = vmax.xlane.f32.xlu0 %v3257
            %v3377 = vpop.xlane.xlu0 %3376
            %3378 = vmax.xlane.f32.xlu0 %v3258
            %v3379 = vpop.xlane.xlu0 %3378
            %3380 = vmax.xlane.f32.xlu0 %v3259
            %v3381 = vpop.xlane.xlu0 %3380
            %3382 = vmax.xlane.f32.xlu0 %v3260
            %v3383 = vpop.xlane.xlu0 %3382
            %3384 = vmax.xlane.f32.xlu0 %v3261
            %v3385 = vpop.xlane.xlu0 %3384
            %3386 = vmax.xlane.f32.xlu0 %v3262
            %v3387 = vpop.xlane.xlu0 %3386
            %3388 = vmax.xlane.f32.xlu0 %v3263
            %v3389 = vpop.xlane.xlu0 %3388
            %3390 = vmax.xlane.f32.xlu0 %v3264
            %v3391 = vpop.xlane.xlu0 %3390
            %3392 = vmax.xlane.f32.xlu0 %v3265
            %v3393 = vpop.xlane.xlu0 %3392
            %v3394 = vsub.f32 %v3202, %v3267
            %v3395 = vsub.f32 %v3203, %v3269
            %v3396 = vsub.f32 %v3204, %v3271
            %v3397 = vsub.f32 %v3205, %v3273
            %v3398 = vsub.f32 %v3206, %v3275
            %v3399 = vsub.f32 %v3207, %v3277
            %v3400 = vsub.f32 %v3208, %v3279
            %v3401 = vsub.f32 %v3209, %v3281
            %v3402 = vsub.f32 %v3210, %v3283
            %v3403 = vsub.f32 %v3211, %v3285
            %v3404 = vsub.f32 %v3212, %v3287
            %v3405 = vsub.f32 %v3213, %v3289
            %v3406 = vsub.f32 %v3214, %v3291
            %v3407 = vsub.f32 %v3215, %v3293
            %v3408 = vsub.f32 %v3216, %v3295
            %v3409 = vsub.f32 %v3217, %v3297
            %v3410 = vsub.f32 %v3218, %v3299
            %v3411 = vsub.f32 %v3219, %v3301
            %v3412 = vsub.f32 %v3220, %v3303
            %v3413 = vsub.f32 %v3221, %v3305
            %v3414 = vsub.f32 %v3222, %v3307
            %v3415 = vsub.f32 %v3223, %v3309
            %v3416 = vsub.f32 %v3224, %v3311
            %v3417 = vsub.f32 %v3225, %v3313
            %v3418 = vsub.f32 %v3226, %v3315
            %v3419 = vsub.f32 %v3227, %v3317
            %v3420 = vsub.f32 %v3228, %v3319
            %v3421 = vsub.f32 %v3229, %v3321
            %v3422 = vsub.f32 %v3230, %v3323
            %v3423 = vsub.f32 %v3231, %v3325
            %v3424 = vsub.f32 %v3232, %v3327
            %v3425 = vsub.f32 %v3233, %v3329
            %v3426 = vsub.f32 %v3234, %v3331
            %v3427 = vsub.f32 %v3235, %v3333
            %v3428 = vsub.f32 %v3236, %v3335
            %v3429 = vsub.f32 %v3237, %v3337
            %v3430 = vsub.f32 %v3238, %v3339
            %v3431 = vsub.f32 %v3239, %v3341
            %v3432 = vsub.f32 %v3240, %v3343
            %v3433 = vsub.f32 %v3241, %v3345
            %v3434 = vsub.f32 %v3242, %v3347
            %v3435 = vsub.f32 %v3243, %v3349
            %v3436 = vsub.f32 %v3244, %v3351
            %v3437 = vsub.f32 %v3245, %v3353
            %v3438 = vsub.f32 %v3246, %v3355
            %v3439 = vsub.f32 %v3247, %v3357
            %v3440 = vsub.f32 %v3248, %v3359
            %v3441 = vsub.f32 %v3249, %v3361
            %v3442 = vsub.f32 %v3250, %v3363
            %v3443 = vsub.f32 %v3251, %v3365
            %v3444 = vsub.f32 %v3252, %v3367
            %v3445 = vsub.f32 %v3253, %v3369
            %v3446 = vsub.f32 %v3254, %v3371
            %v3447 = vsub.f32 %v3255, %v3373
            %v3448 = vsub.f32 %v3256, %v3375
            %v3449 = vsub.f32 %v3257, %v3377
            %v3450 = vsub.f32 %v3258, %v3379
            %v3451 = vsub.f32 %v3259, %v3381
            %v3452 = vsub.f32 %v3260, %v3383
            %v3453 = vsub.f32 %v3261, %v3385
            %v3454 = vsub.f32 %v3262, %v3387
            %v3455 = vsub.f32 %v3263, %v3389
            %v3456 = vsub.f32 %v3264, %v3391
            %v3457 = vsub.f32 %v3265, %v3393
            %v3458 = vmul.f32 %v3394, 1.442695
            %v3459 = vpow.pop %v3458
            %v3460 = vmul.f32 %v3395, 1.442695
            %v3461 = vpow.pop %v3460
            %v3462 = vmul.f32 %v3396, 1.442695
            %v3463 = vpow.pop %v3462
            %v3464 = vmul.f32 %v3397, 1.442695
            %v3465 = vpow.pop %v3464
            %v3466 = vmul.f32 %v3398, 1.442695
            %v3467 = vpow.pop %v3466
            %v3468 = vmul.f32 %v3399, 1.442695
            %v3469 = vpow.pop %v3468
            %v3470 = vmul.f32 %v3400, 1.442695
            %v3471 = vpow.pop %v3470
            %v3472 = vmul.f32 %v3401, 1.442695
            %v3473 = vpow.pop %v3472
            %v3474 = vmul.f32 %v3402, 1.442695
            %v3475 = vpow.pop %v3474
            %v3476 = vmul.f32 %v3403, 1.442695
            %v3477 = vpow.pop %v3476
            %v3478 = vmul.f32 %v3404, 1.442695
            %v3479 = vpow.pop %v3478
            %v3480 = vmul.f32 %v3405, 1.442695
            %v3481 = vpow.pop %v3480
            %v3482 = vmul.f32 %v3406, 1.442695
            %v3483 = vpow.pop %v3482
            %v3484 = vmul.f32 %v3407, 1.442695
            %v3485 = vpow.pop %v3484
            %v3486 = vmul.f32 %v3408, 1.442695
            %v3487 = vpow.pop %v3486
            %v3488 = vmul.f32 %v3409, 1.442695
            %v3489 = vpow.pop %v3488
            %v3490 = vmul.f32 %v3410, 1.442695
            %v3491 = vpow.pop %v3490
            %v3492 = vmul.f32 %v3411, 1.442695
            %v3493 = vpow.pop %v3492
            %v3494 = vmul.f32 %v3412, 1.442695
            %v3495 = vpow.pop %v3494
            %v3496 = vmul.f32 %v3413, 1.442695
            %v3497 = vpow.pop %v3496
            %v3498 = vmul.f32 %v3414, 1.442695
            %v3499 = vpow.pop %v3498
            %v3500 = vmul.f32 %v3415, 1.442695
            %v3501 = vpow.pop %v3500
            %v3502 = vmul.f32 %v3416, 1.442695
            %v3503 = vpow.pop %v3502
            %v3504 = vmul.f32 %v3417, 1.442695
            %v3505 = vpow.pop %v3504
            %v3506 = vmul.f32 %v3418, 1.442695
            %v3507 = vpow.pop %v3506
            %v3508 = vmul.f32 %v3419, 1.442695
            %v3509 = vpow.pop %v3508
            %v3510 = vmul.f32 %v3420, 1.442695
            %v3511 = vpow.pop %v3510
            %v3512 = vmul.f32 %v3421, 1.442695
            %v3513 = vpow.pop %v3512
            %v3514 = vmul.f32 %v3422, 1.442695
            %v3515 = vpow.pop %v3514
            %v3516 = vmul.f32 %v3423, 1.442695
            %v3517 = vpow.pop %v3516
            %v3518 = vmul.f32 %v3424, 1.442695
            %v3519 = vpow.pop %v3518
            %v3520 = vmul.f32 %v3425, 1.442695
            %v3521 = vpow.pop %v3520
            %v3522 = vmul.f32 %v3426, 1.442695
            %v3523 = vpow.pop %v3522
            %v3524 = vmul.f32 %v3427, 1.442695
            %v3525 = vpow.pop %v3524
            %v3526 = vmul.f32 %v3428, 1.442695
            %v3527 = vpow.pop %v3526
            %v3528 = vmul.f32 %v3429, 1.442695
            %v3529 = vpow.pop %v3528
            %v3530 = vmul.f32 %v3430, 1.442695
            %v3531 = vpow.pop %v3530
            %v3532 = vmul.f32 %v3431, 1.442695
            %v3533 = vpow.pop %v3532
            %v3534 = vmul.f32 %v3432, 1.442695
            %v3535 = vpow.pop %v3534
            %v3536 = vmul.f32 %v3433, 1.442695
            %v3537 = vpow.pop %v3536
            %v3538 = vmul.f32 %v3434, 1.442695
            %v3539 = vpow.pop %v3538
            %v3540 = vmul.f32 %v3435, 1.442695
            %v3541 = vpow.pop %v3540
            %v3542 = vmul.f32 %v3436, 1.442695
            %v3543 = vpow.pop %v3542
            %v3544 = vmul.f32 %v3437, 1.442695
            %v3545 = vpow.pop %v3544
            %v3546 = vmul.f32 %v3438, 1.442695
            %v3547 = vpow.pop %v3546
            %v3548 = vmul.f32 %v3439, 1.442695
            %v3549 = vpow.pop %v3548
            %v3550 = vmul.f32 %v3440, 1.442695
            %v3551 = vpow.pop %v3550
            %v3552 = vmul.f32 %v3441, 1.442695
            %v3553 = vpow.pop %v3552
            %v3554 = vmul.f32 %v3442, 1.442695
            %v3555 = vpow.pop %v3554
            %v3556 = vmul.f32 %v3443, 1.442695
            %v3557 = vpow.pop %v3556
            %v3558 = vmul.f32 %v3444, 1.442695
            %v3559 = vpow.pop %v3558
            %v3560 = vmul.f32 %v3445, 1.442695
            %v3561 = vpow.pop %v3560
            %v3562 = vmul.f32 %v3446, 1.442695
            %v3563 = vpow.pop %v3562
            %v3564 = vmul.f32 %v3447, 1.442695
            %v3565 = vpow.pop %v3564
            %v3566 = vmul.f32 %v3448, 1.442695
            %v3567 = vpow.pop %v3566
            %v3568 = vmul.f32 %v3449, 1.442695
            %v3569 = vpow.pop %v3568
            %v3570 = vmul.f32 %v3450, 1.442695
            %v3571 = vpow.pop %v3570
            %v3572 = vmul.f32 %v3451, 1.442695
            %v3573 = vpow.pop %v3572
            %v3574 = vmul.f32 %v3452, 1.442695
            %v3575 = vpow.pop %v3574
            %v3576 = vmul.f32 %v3453, 1.442695
            %v3577 = vpow.pop %v3576
            %v3578 = vmul.f32 %v3454, 1.442695
            %v3579 = vpow.pop %v3578
            %v3580 = vmul.f32 %v3455, 1.442695
            %v3581 = vpow.pop %v3580
            %v3582 = vmul.f32 %v3456, 1.442695
            %v3583 = vpow.pop %v3582
            %v3584 = vmul.f32 %v3457, 1.442695
            %v3585 = vpow.pop %v3584
            %3586 = vadd.xlane.f32.xlu0 %v3459
            %v3587 = vpop.xlane.xlu0 %3586
            %3588 = vadd.xlane.f32.xlu0 %v3461
            %v3589 = vpop.xlane.xlu0 %3588
            %3590 = vadd.xlane.f32.xlu0 %v3463
            %v3591 = vpop.xlane.xlu0 %3590
            %3592 = vadd.xlane.f32.xlu0 %v3465
            %v3593 = vpop.xlane.xlu0 %3592
            %3594 = vadd.xlane.f32.xlu0 %v3467
            %v3595 = vpop.xlane.xlu0 %3594
            %3596 = vadd.xlane.f32.xlu0 %v3469
            %v3597 = vpop.xlane.xlu0 %3596
            %3598 = vadd.xlane.f32.xlu0 %v3471
            %v3599 = vpop.xlane.xlu0 %3598
            %3600 = vadd.xlane.f32.xlu0 %v3473
            %v3601 = vpop.xlane.xlu0 %3600
            %3602 = vadd.xlane.f32.xlu0 %v3475
            %v3603 = vpop.xlane.xlu0 %3602
            %3604 = vadd.xlane.f32.xlu0 %v3477
            %v3605 = vpop.xlane.xlu0 %3604
            %3606 = vadd.xlane.f32.xlu0 %v3479
            %v3607 = vpop.xlane.xlu0 %3606
            %3608 = vadd.xlane.f32.xlu0 %v3481
            %v3609 = vpop.xlane.xlu0 %3608
            %3610 = vadd.xlane.f32.xlu0 %v3483
            %v3611 = vpop.xlane.xlu0 %3610
            %3612 = vadd.xlane.f32.xlu0 %v3485
            %v3613 = vpop.xlane.xlu0 %3612
            %3614 = vadd.xlane.f32.xlu0 %v3487
            %v3615 = vpop.xlane.xlu0 %3614
            %3616 = vadd.xlane.f32.xlu0 %v3489
            %v3617 = vpop.xlane.xlu0 %3616
            %3618 = vadd.xlane.f32.xlu0 %v3491
            %v3619 = vpop.xlane.xlu0 %3618
            %3620 = vadd.xlane.f32.xlu0 %v3493
            %v3621 = vpop.xlane.xlu0 %3620
            %3622 = vadd.xlane.f32.xlu0 %v3495
            %v3623 = vpop.xlane.xlu0 %3622
            %3624 = vadd.xlane.f32.xlu0 %v3497
            %v3625 = vpop.xlane.xlu0 %3624
            %3626 = vadd.xlane.f32.xlu0 %v3499
            %v3627 = vpop.xlane.xlu0 %3626
            %3628 = vadd.xlane.f32.xlu0 %v3501
            %v3629 = vpop.xlane.xlu0 %3628
            %3630 = vadd.xlane.f32.xlu0 %v3503
            %v3631 = vpop.xlane.xlu0 %3630
            %3632 = vadd.xlane.f32.xlu0 %v3505
            %v3633 = vpop.xlane.xlu0 %3632
            %3634 = vadd.xlane.f32.xlu0 %v3507
            %v3635 = vpop.xlane.xlu0 %3634
            %3636 = vadd.xlane.f32.xlu0 %v3509
            %v3637 = vpop.xlane.xlu0 %3636
            %3638 = vadd.xlane.f32.xlu0 %v3511
            %v3639 = vpop.xlane.xlu0 %3638
            %3640 = vadd.xlane.f32.xlu0 %v3513
            %v3641 = vpop.xlane.xlu0 %3640
            %3642 = vadd.xlane.f32.xlu0 %v3515
            %v3643 = vpop.xlane.xlu0 %3642
            %3644 = vadd.xlane.f32.xlu0 %v3517
            %v3645 = vpop.xlane.xlu0 %3644
            %3646 = vadd.xlane.f32.xlu0 %v3519
            %v3647 = vpop.xlane.xlu0 %3646
            %3648 = vadd.xlane.f32.xlu0 %v3521
            %v3649 = vpop.xlane.xlu0 %3648
            %3650 = vadd.xlane.f32.xlu0 %v3523
            %v3651 = vpop.xlane.xlu0 %3650
            %3652 = vadd.xlane.f32.xlu0 %v3525
            %v3653 = vpop.xlane.xlu0 %3652
            %3654 = vadd.xlane.f32.xlu0 %v3527
            %v3655 = vpop.xlane.xlu0 %3654
            %3656 = vadd.xlane.f32.xlu0 %v3529
            %v3657 = vpop.xlane.xlu0 %3656
            %3658 = vadd.xlane.f32.xlu0 %v3531
            %v3659 = vpop.xlane.xlu0 %3658
            %3660 = vadd.xlane.f32.xlu0 %v3533
            %v3661 = vpop.xlane.xlu0 %3660
            %3662 = vadd.xlane.f32.xlu0 %v3535
            %v3663 = vpop.xlane.xlu0 %3662
            %3664 = vadd.xlane.f32.xlu0 %v3537
            %v3665 = vpop.xlane.xlu0 %3664
            %3666 = vadd.xlane.f32.xlu0 %v3539
            %v3667 = vpop.xlane.xlu0 %3666
            %3668 = vadd.xlane.f32.xlu0 %v3541
            %v3669 = vpop.xlane.xlu0 %3668
            %3670 = vadd.xlane.f32.xlu0 %v3543
            %v3671 = vpop.xlane.xlu0 %3670
            %3672 = vadd.xlane.f32.xlu0 %v3545
            %v3673 = vpop.xlane.xlu0 %3672
            %3674 = vadd.xlane.f32.xlu0 %v3547
            %v3675 = vpop.xlane.xlu0 %3674
            %3676 = vadd.xlane.f32.xlu0 %v3549
            %v3677 = vpop.xlane.xlu0 %3676
            %3678 = vadd.xlane.f32.xlu0 %v3551
            %v3679 = vpop.xlane.xlu0 %3678
            %3680 = vadd.xlane.f32.xlu0 %v3553
            %v3681 = vpop.xlane.xlu0 %3680
            %3682 = vadd.xlane.f32.xlu0 %v3555
            %v3683 = vpop.xlane.xlu0 %3682
            %3684 = vadd.xlane.f32.xlu0 %v3557
            %v3685 = vpop.xlane.xlu0 %3684
            %3686 = vadd.xlane.f32.xlu0 %v3559
            %v3687 = vpop.xlane.xlu0 %3686
            %3688 = vadd.xlane.f32.xlu0 %v3561
            %v3689 = vpop.xlane.xlu0 %3688
            %3690 = vadd.xlane.f32.xlu0 %v3563
            %v3691 = vpop.xlane.xlu0 %3690
            %3692 = vadd.xlane.f32.xlu0 %v3565
            %v3693 = vpop.xlane.xlu0 %3692
            %3694 = vadd.xlane.f32.xlu0 %v3567
            %v3695 = vpop.xlane.xlu0 %3694
            %3696 = vadd.xlane.f32.xlu0 %v3569
            %v3697 = vpop.xlane.xlu0 %3696
            %3698 = vadd.xlane.f32.xlu0 %v3571
            %v3699 = vpop.xlane.xlu0 %3698
            %3700 = vadd.xlane.f32.xlu0 %v3573
            %v3701 = vpop.xlane.xlu0 %3700
            %3702 = vadd.xlane.f32.xlu0 %v3575
            %v3703 = vpop.xlane.xlu0 %3702
            %3704 = vadd.xlane.f32.xlu0 %v3577
            %v3705 = vpop.xlane.xlu0 %3704
            %3706 = vadd.xlane.f32.xlu0 %v3579
            %v3707 = vpop.xlane.xlu0 %3706
            %3708 = vadd.xlane.f32.xlu0 %v3581
            %v3709 = vpop.xlane.xlu0 %3708
            %3710 = vadd.xlane.f32.xlu0 %v3583
            %v3711 = vpop.xlane.xlu0 %3710
            %3712 = vadd.xlane.f32.xlu0 %v3585
            %v3713 = vpop.xlane.xlu0 %3712
            %v3714 = vlog2.pop %v3587
            %v3715 = vmul.f32 %v3714, 0.6931472
            %v3716 = vlog2.pop %v3589
            %v3717 = vmul.f32 %v3716, 0.6931472
            %v3718 = vlog2.pop %v3591
            %v3719 = vmul.f32 %v3718, 0.6931472
            %v3720 = vlog2.pop %v3593
            %v3721 = vmul.f32 %v3720, 0.6931472
            %v3722 = vlog2.pop %v3595
            %v3723 = vmul.f32 %v3722, 0.6931472
            %v3724 = vlog2.pop %v3597
            %v3725 = vmul.f32 %v3724, 0.6931472
            %v3726 = vlog2.pop %v3599
            %v3727 = vmul.f32 %v3726, 0.6931472
            %v3728 = vlog2.pop %v3601
            %v3729 = vmul.f32 %v3728, 0.6931472
            %v3730 = vlog2.pop %v3603
            %v3731 = vmul.f32 %v3730, 0.6931472
            %v3732 = vlog2.pop %v3605
            %v3733 = vmul.f32 %v3732, 0.6931472
            %v3734 = vlog2.pop %v3607
            %v3735 = vmul.f32 %v3734, 0.6931472
            %v3736 = vlog2.pop %v3609
            %v3737 = vmul.f32 %v3736, 0.6931472
            %v3738 = vlog2.pop %v3611
            %v3739 = vmul.f32 %v3738, 0.6931472
            %v3740 = vlog2.pop %v3613
            %v3741 = vmul.f32 %v3740, 0.6931472
            %v3742 = vlog2.pop %v3615
            %v3743 = vmul.f32 %v3742, 0.6931472
            %v3744 = vlog2.pop %v3617
            %v3745 = vmul.f32 %v3744, 0.6931472
            %v3746 = vlog2.pop %v3619
            %v3747 = vmul.f32 %v3746, 0.6931472
            %v3748 = vlog2.pop %v3621
            %v3749 = vmul.f32 %v3748, 0.6931472
            %v3750 = vlog2.pop %v3623
            %v3751 = vmul.f32 %v3750, 0.6931472
            %v3752 = vlog2.pop %v3625
            %v3753 = vmul.f32 %v3752, 0.6931472
            %v3754 = vlog2.pop %v3627
            %v3755 = vmul.f32 %v3754, 0.6931472
            %v3756 = vlog2.pop %v3629
            %v3757 = vmul.f32 %v3756, 0.6931472
            %v3758 = vlog2.pop %v3631
            %v3759 = vmul.f32 %v3758, 0.6931472
            %v3760 = vlog2.pop %v3633
            %v3761 = vmul.f32 %v3760, 0.6931472
            %v3762 = vlog2.pop %v3635
            %v3763 = vmul.f32 %v3762, 0.6931472
            %v3764 = vlog2.pop %v3637
            %v3765 = vmul.f32 %v3764, 0.6931472
            %v3766 = vlog2.pop %v3639
            %v3767 = vmul.f32 %v3766, 0.6931472
            %v3768 = vlog2.pop %v3641
            %v3769 = vmul.f32 %v3768, 0.6931472
            %v3770 = vlog2.pop %v3643
            %v3771 = vmul.f32 %v3770, 0.6931472
            %v3772 = vlog2.pop %v3645
            %v3773 = vmul.f32 %v3772, 0.6931472
            %v3774 = vlog2.pop %v3647
            %v3775 = vmul.f32 %v3774, 0.6931472
            %v3776 = vlog2.pop %v3649
            %v3777 = vmul.f32 %v3776, 0.6931472
            %v3778 = vlog2.pop %v3651
            %v3779 = vmul.f32 %v3778, 0.6931472
            %v3780 = vlog2.pop %v3653
            %v3781 = vmul.f32 %v3780, 0.6931472
            %v3782 = vlog2.pop %v3655
            %v3783 = vmul.f32 %v3782, 0.6931472
            %v3784 = vlog2.pop %v3657
            %v3785 = vmul.f32 %v3784, 0.6931472
            %v3786 = vlog2.pop %v3659
            %v3787 = vmul.f32 %v3786, 0.6931472
            %v3788 = vlog2.pop %v3661
            %v3789 = vmul.f32 %v3788, 0.6931472
            %v3790 = vlog2.pop %v3663
            %v3791 = vmul.f32 %v3790, 0.6931472
            %v3792 = vlog2.pop %v3665
            %v3793 = vmul.f32 %v3792, 0.6931472
            %v3794 = vlog2.pop %v3667
            %v3795 = vmul.f32 %v3794, 0.6931472
            %v3796 = vlog2.pop %v3669
            %v3797 = vmul.f32 %v3796, 0.6931472
            %v3798 = vlog2.pop %v3671
            %v3799 = vmul.f32 %v3798, 0.6931472
            %v3800 = vlog2.pop %v3673
            %v3801 = vmul.f32 %v3800, 0.6931472
            %v3802 = vlog2.pop %v3675
            %v3803 = vmul.f32 %v3802, 0.6931472
            %v3804 = vlog2.pop %v3677
            %v3805 = vmul.f32 %v3804, 0.6931472
            %v3806 = vlog2.pop %v3679
            %v3807 = vmul.f32 %v3806, 0.6931472
            %v3808 = vlog2.pop %v3681
            %v3809 = vmul.f32 %v3808, 0.6931472
            %v3810 = vlog2.pop %v3683
            %v3811 = vmul.f32 %v3810, 0.6931472
            %v3812 = vlog2.pop %v3685
            %v3813 = vmul.f32 %v3812, 0.6931472
            %v3814 = vlog2.pop %v3687
            %v3815 = vmul.f32 %v3814, 0.6931472
            %v3816 = vlog2.pop %v3689
            %v3817 = vmul.f32 %v3816, 0.6931472
            %v3818 = vlog2.pop %v3691
            %v3819 = vmul.f32 %v3818, 0.6931472
            %v3820 = vlog2.pop %v3693
            %v3821 = vmul.f32 %v3820, 0.6931472
            %v3822 = vlog2.pop %v3695
            %v3823 = vmul.f32 %v3822, 0.6931472
            %v3824 = vlog2.pop %v3697
            %v3825 = vmul.f32 %v3824, 0.6931472
            %v3826 = vlog2.pop %v3699
            %v3827 = vmul.f32 %v3826, 0.6931472
            %v3828 = vlog2.pop %v3701
            %v3829 = vmul.f32 %v3828, 0.6931472
            %v3830 = vlog2.pop %v3703
            %v3831 = vmul.f32 %v3830, 0.6931472
            %v3832 = vlog2.pop %v3705
            %v3833 = vmul.f32 %v3832, 0.6931472
            %v3834 = vlog2.pop %v3707
            %v3835 = vmul.f32 %v3834, 0.6931472
            %v3836 = vlog2.pop %v3709
            %v3837 = vmul.f32 %v3836, 0.6931472
            %v3838 = vlog2.pop %v3711
            %v3839 = vmul.f32 %v3838, 0.6931472
            %v3840 = vlog2.pop %v3713
            %v3841 = vmul.f32 %v3840, 0.6931472
            %v3842 = vsub.f32 %v3394, %v3715
            %v3843 = vsub.f32 %v3395, %v3717
            %v3844 = vsub.f32 %v3396, %v3719
            %v3845 = vsub.f32 %v3397, %v3721
            %v3846 = vsub.f32 %v3398, %v3723
            %v3847 = vsub.f32 %v3399, %v3725
            %v3848 = vsub.f32 %v3400, %v3727
            %v3849 = vsub.f32 %v3401, %v3729
            %v3850 = vsub.f32 %v3402, %v3731
            %v3851 = vsub.f32 %v3403, %v3733
            %v3852 = vsub.f32 %v3404, %v3735
            %v3853 = vsub.f32 %v3405, %v3737
            %v3854 = vsub.f32 %v3406, %v3739
            %v3855 = vsub.f32 %v3407, %v3741
            %v3856 = vsub.f32 %v3408, %v3743
            %v3857 = vsub.f32 %v3409, %v3745
            %v3858 = vsub.f32 %v3410, %v3747
            %v3859 = vsub.f32 %v3411, %v3749
            %v3860 = vsub.f32 %v3412, %v3751
            %v3861 = vsub.f32 %v3413, %v3753
            %v3862 = vsub.f32 %v3414, %v3755
            %v3863 = vsub.f32 %v3415, %v3757
            %v3864 = vsub.f32 %v3416, %v3759
            %v3865 = vsub.f32 %v3417, %v3761
            %v3866 = vsub.f32 %v3418, %v3763
            %v3867 = vsub.f32 %v3419, %v3765
            %v3868 = vsub.f32 %v3420, %v3767
            %v3869 = vsub.f32 %v3421, %v3769
            %v3870 = vsub.f32 %v3422, %v3771
            %v3871 = vsub.f32 %v3423, %v3773
            %v3872 = vsub.f32 %v3424, %v3775
            %v3873 = vsub.f32 %v3425, %v3777
            %v3874 = vsub.f32 %v3426, %v3779
            %v3875 = vsub.f32 %v3427, %v3781
            %v3876 = vsub.f32 %v3428, %v3783
            %v3877 = vsub.f32 %v3429, %v3785
            %v3878 = vsub.f32 %v3430, %v3787
            %v3879 = vsub.f32 %v3431, %v3789
            %v3880 = vsub.f32 %v3432, %v3791
            %v3881 = vsub.f32 %v3433, %v3793
            %v3882 = vsub.f32 %v3434, %v3795
            %v3883 = vsub.f32 %v3435, %v3797
            %v3884 = vsub.f32 %v3436, %v3799
            %v3885 = vsub.f32 %v3437, %v3801
            %v3886 = vsub.f32 %v3438, %v3803
            %v3887 = vsub.f32 %v3439, %v3805
            %v3888 = vsub.f32 %v3440, %v3807
            %v3889 = vsub.f32 %v3441, %v3809
            %v3890 = vsub.f32 %v3442, %v3811
            %v3891 = vsub.f32 %v3443, %v3813
            %v3892 = vsub.f32 %v3444, %v3815
            %v3893 = vsub.f32 %v3445, %v3817
            %v3894 = vsub.f32 %v3446, %v3819
            %v3895 = vsub.f32 %v3447, %v3821
            %v3896 = vsub.f32 %v3448, %v3823
            %v3897 = vsub.f32 %v3449, %v3825
            %v3898 = vsub.f32 %v3450, %v3827
            %v3899 = vsub.f32 %v3451, %v3829
            %v3900 = vsub.f32 %v3452, %v3831
            %v3901 = vsub.f32 %v3453, %v3833
            %v3902 = vsub.f32 %v3454, %v3835
            %v3903 = vsub.f32 %v3455, %v3837
            %v3904 = vsub.f32 %v3456, %v3839
            %v3905 = vsub.f32 %v3457, %v3841
            %3906 = vst [vmem:[%s286] sm:$0xff] %v3842
            %3907 = vst [vmem:[%s286 + $0x8] sm:$0xff] %v3843
            %3908 = vst [vmem:[%s286 + $0x10] sm:$0xff] %v3844
            %3909 = vst [vmem:[%s286 + $0x18] sm:$0xff] %v3845
            %3910 = vst [vmem:[%s286 + $0x20] sm:$0xff] %v3846
            %3911 = vst [vmem:[%s286 + $0x28] sm:$0xff] %v3847
            %3912 = vst [vmem:[%s286 + $0x30] sm:$0xff] %v3848
            %3913 = vst [vmem:[%s286 + $0x38] sm:$0xff] %v3849
            %3914 = vst [vmem:[%s286 + $0x40] sm:$0xff] %v3850
            %3915 = vst [vmem:[%s286 + $0x48] sm:$0xff] %v3851
            %3916 = vst [vmem:[%s286 + $0x50] sm:$0xff] %v3852
            %3917 = vst [vmem:[%s286 + $0x58] sm:$0xff] %v3853
            %3918 = vst [vmem:[%s286 + $0x60] sm:$0xff] %v3854
            %3919 = vst [vmem:[%s286 + $0x68] sm:$0xff] %v3855
            %3920 = vst [vmem:[%s286 + $0x70] sm:$0xff] %v3856
            %3921 = vst [vmem:[%s286 + $0x78] sm:$0xff] %v3857
            %3922 = vst [vmem:[%s286 + $0x80] sm:$0xff] %v3858
            %3923 = vst [vmem:[%s286 + $0x88] sm:$0xff] %v3859
            %3924 = vst [vmem:[%s286 + $0x90] sm:$0xff] %v3860
            %3925 = vst [vmem:[%s286 + $0x98] sm:$0xff] %v3861
            %3926 = vst [vmem:[%s286 + $0xa0] sm:$0xff] %v3862
            %3927 = vst [vmem:[%s286 + $0xa8] sm:$0xff] %v3863
            %3928 = vst [vmem:[%s286 + $0xb0] sm:$0xff] %v3864
            %3929 = vst [vmem:[%s286 + $0xb8] sm:$0xff] %v3865
            %3930 = vst [vmem:[%s286 + $0xc0] sm:$0xff] %v3866
            %3931 = vst [vmem:[%s286 + $0xc8] sm:$0xff] %v3867
            %3932 = vst [vmem:[%s286 + $0xd0] sm:$0xff] %v3868
            %3933 = vst [vmem:[%s286 + $0xd8] sm:$0xff] %v3869
            %3934 = vst [vmem:[%s286 + $0xe0] sm:$0xff] %v3870
            %3935 = vst [vmem:[%s286 + $0xe8] sm:$0xff] %v3871
            %3936 = vst [vmem:[%s286 + $0xf0] sm:$0xff] %v3872
            %3937 = vst [vmem:[%s286 + $0xf8] sm:$0xff] %v3873
            %3938 = vst [vmem:[%s286 + $0x100] sm:$0xff] %v3874
            %3939 = vst [vmem:[%s286 + $0x108] sm:$0xff] %v3875
            %3940 = vst [vmem:[%s286 + $0x110] sm:$0xff] %v3876
            %3941 = vst [vmem:[%s286 + $0x118] sm:$0xff] %v3877
            %3942 = vst [vmem:[%s286 + $0x120] sm:$0xff] %v3878
            %3943 = vst [vmem:[%s286 + $0x128] sm:$0xff] %v3879
            %3944 = vst [vmem:[%s286 + $0x130] sm:$0xff] %v3880
            %3945 = vst [vmem:[%s286 + $0x138] sm:$0xff] %v3881
            %3946 = vst [vmem:[%s286 + $0x140] sm:$0xff] %v3882
            %3947 = vst [vmem:[%s286 + $0x148] sm:$0xff] %v3883
            %3948 = vst [vmem:[%s286 + $0x150] sm:$0xff] %v3884
            %3949 = vst [vmem:[%s286 + $0x158] sm:$0xff] %v3885
            %3950 = vst [vmem:[%s286 + $0x160] sm:$0xff] %v3886
            %3951 = vst [vmem:[%s286 + $0x168] sm:$0xff] %v3887
            %3952 = vst [vmem:[%s286 + $0x170] sm:$0xff] %v3888
            %3953 = vst [vmem:[%s286 + $0x178] sm:$0xff] %v3889
            %3954 = vst [vmem:[%s286 + $0x180] sm:$0xff] %v3890
            %3955 = vst [vmem:[%s286 + $0x188] sm:$0xff] %v3891
            %3956 = vst [vmem:[%s286 + $0x190] sm:$0xff] %v3892
            %3957 = vst [vmem:[%s286 + $0x198] sm:$0xff] %v3893
            %3958 = vst [vmem:[%s286 + $0x1a0] sm:$0xff] %v3894
            %3959 = vst [vmem:[%s286 + $0x1a8] sm:$0xff] %v3895
            %3960 = vst [vmem:[%s286 + $0x1b0] sm:$0xff] %v3896
            %3961 = vst [vmem:[%s286 + $0x1b8] sm:$0xff] %v3897
            %3962 = vst [vmem:[%s286 + $0x1c0] sm:$0xff] %v3898
            %3963 = vst [vmem:[%s286 + $0x1c8] sm:$0xff] %v3899
            %3964 = vst [vmem:[%s286 + $0x1d0] sm:$0xff] %v3900
            %3965 = vst [vmem:[%s286 + $0x1d8] sm:$0xff] %v3901
            %3966 = vst [vmem:[%s286 + $0x1e0] sm:$0xff] %v3902
            %3967 = vst [vmem:[%s286 + $0x1e8] sm:$0xff] %v3903
            %3968 = vst [vmem:[%s286 + $0x1f0] sm:$0xff] %v3904
            %3969 = vst [vmem:[%s286 + $0x1f8] sm:$0xff] %v3905
          $region60: #{tpu_custom_call.1} parent=55 // pred_fallthru
            _
        $region56: #{tpu_custom_call.1} parent=43 // pred_fallthru
          _
        %s3970 = sand.u32 %s180, 1
        %s3971 = scalar_lea.sflag [#allocation6], %s3970
        %s3972 = sand.u32 %s180, 1
        %s3973 = smul.addr %s3972, 512
        %s3974 = scalar_lea.vmem [#allocation7], %s3973
        // Predicated region
        $region61: #{tpu_custom_call.1} parent=43 // pred_check
          %p3975 = pneg %p190
        $region62: #{tpu_custom_call.1} parent=43 // pred_check_branch
          %3977 = sbr.rel (%p3975) target = $region64
        $region63: #{tpu_custom_call.1} parent=43 // pred_region
          %p3978 = scmp.eq.s32.totalorder %s25, 4
          %s3979 = scalar_select %p3978, %s26, 0
          %s3980 = smul.u32 64, %s3979
          %s3982 = ssub.s32 8192, 8192
          %3983 = vsyncadd %s3971, %s3982
          %s3984 = smul.addr %s3980, 128
          %s3985 = scalar_lea.hbm %s6, %s3984
          %s3986 = sshll.u32 %s3974, 4
          %s3987 = int_to_ptr.vmem [resolvable:$true] %s3986
          %3992 = dma.vmem_to_hbm [thread:$0]  %s3987, 8192, %s3985, %s3971, 128, 128, 8
        $region64: #{tpu_custom_call.1} parent=43 // pred_fallthru
          _
      $region44: #{tpu_custom_call.1} parent=5 // pred_fallthru
        _
      %p3993 = scmp.le.s32.totalorder 2, %s16
      // Predicated region
      $region65: #{tpu_custom_call.1} parent=5 // pred_check
        %p3994 = pneg %p3993
      $region66: #{tpu_custom_call.1} parent=5 // pred_check_branch
        %3996 = sbr.rel (%p3994) target = $region68
      $region67: #{tpu_custom_call.1} parent=5 // pred_region
        %s3997 = ssub.s32 %s16, 2
        // Predicated region
        $region69: #{tpu_custom_call.1} parent=67 // pred_check
          %p3998 = pneg %p196
        $region70: #{tpu_custom_call.1} parent=67 // pred_check_branch
          %4000 = sbr.rel (%p3998) target = $region72
        $region71: #{tpu_custom_call.1} parent=67 // pred_region
          %s4001 = sand.u32 %s181, 1
          %s4002 = scalar_lea.sflag [#allocation6], %s4001
          %s4003 = sand.u32 %s181, 1
          %s4004 = smul.addr %s4003, 512
          %s4005 = scalar_lea.vmem [#allocation7], %s4004
          %4006 = dma.done %s4002, 8192
        $region72: #{tpu_custom_call.1} parent=67 // pred_fallthru
          _
      $region68: #{tpu_custom_call.1} parent=5 // pred_fallthru
        _
    $region6: #{tpu_custom_call.1} parent=1 // loop_footer
      %s20 = sadd.s32 1, %s16
    $region7: #{tpu_custom_call.1} parent=1 // loop_footer_branch
      %15 = sbr.rel target = $region3
    $region8: #{tpu_custom_call.1} parent=1 // loop_exit
      _
    %4007 = vsyncpa [#allocation5], 1
    %s4008 = scalar_lea.sflag [#allocation5], 1
    %4009 = vsyncpa %s4008, 1
    %4010 = vsyncpa [#allocation6], 1
    %s4011 = scalar_lea.sflag [#allocation6], 1
    %4012 = vsyncpa %s4011, 1

</llo_original>
